<compile_context>
chip_gen: v7x
topology: tpu7x:2x2x1
jax: 0.10.0
libtpu: 0.0.40
codegen_flags: <defaults>
</compile_context>

<pallas_src>
from math import sqrt

import jax
import jax.numpy as jnp
from jax import lax
from jax.experimental import pallas as pl
from jax.experimental.pallas import tpu as pltpu

EPS = 0.1                          # map_pixels / unmap_pixels epsilon
INV_SCALE = 1.0 / (1.0 - 2.0 * EPS)
IN_CH = 3                          # RGB input
PAD_CH = 16                        # encoder input channels padded 3(+1 bias) -> 16
HID = 128                          # synthetic encoder/decoder hidden width
NUM_TOKENS = 512                   # scaled down from 8192 (same dataflow)
DEC_OUT_CH = 6                     # decoder emits 2*3 channels; only first 3 used
OUT_PAD = 8                        # decoder output channels padded 3 -> 8 (full vregs)
VCHUNK = 256                       # vocab tile for the encoder's chunked argmax
TM_CAP = 2048                      # max pixel-tile (lane) width per grid step

assert NUM_TOKENS % VCHUNK == 0


def _choose_tile(m):
    """Largest 128-multiple tile <= TM_CAP (one big tile per grid step).

    The previous ">= 2 grid steps" preference only helped v7x megacore and cost
    an extra ~0.35us pipeline step on single-TC v5e/v6e; at realistic image
    sizes the grid has many steps anyway, so megacore sharding still applies.
    """
    m128 = -(-m // 128) * 128
    return min(TM_CAP, m128)


def _rep_spec(arr):
    """Whole-array block, resident in VMEM across the pixel grid.

    (At the real NUM_TOKENS=8192 scale, add pipeline_mode=pl.Buffered(1) here so
    the resident w3 / embedding table are not double-buffered on v7x's 64 MiB.)
    """
    zeros = (0,) * arr.ndim
    return pl.BlockSpec(arr.shape, lambda i: zeros)


# ---------------------------------------------------------------------------
# Encoder kernel (channel-major): folded map_pixels + bias -> 3-layer channel
# MLP -> vocab-chunked running argmax -> lane-dense (1, TM) codes.
# ---------------------------------------------------------------------------
def _encoder_kernel(x_ref, w1_ref, w2_ref, b2_ref, w3_ref, b3_ref, code_ref):
    tm = code_ref.shape[-1]
    x = x_ref[...]                                                 # (PAD_CH, tm) bf16
    # map_pixels and the layer-1 bias are folded into w1 host-side (bias rides
    # on a constant ones channel of x), so layer 1 is a pure matmul + ReLU.
    h = jnp.dot(w1_ref[...], x, preferred_element_type=jnp.float32)
    h = jnp.maximum(h, 0.0).astype(jnp.bfloat16)                   # (HID, tm)
    h = jnp.dot(w2_ref[...], h, preferred_element_type=jnp.float32) + b2_ref[...]
    h = jnp.maximum(h, 0.0).astype(jnp.bfloat16)                   # (HID, tm)

    num_tokens = w3_ref.shape[0]
    n_chunks = num_tokens // VCHUNK

    def vocab_chunk(c, carry):
        run_max, run_arg = carry                                   # (1, tm) f32 / i32
        off = pl.multiple_of(c * VCHUNK, VCHUNK)
        w3c = w3_ref[pl.ds(off, VCHUNK), :]                        # (VCHUNK, HID) bf16
        b3c = b3_ref[pl.ds(off, VCHUNK), :]                        # (VCHUNK, 1) f32
        logits = jnp.dot(w3c, h, preferred_element_type=jnp.float32) + b3c
        cmax = jnp.max(logits, axis=0, keepdims=True)              # (1, tm)
        iota = lax.broadcasted_iota(jnp.int32, logits.shape, 0)
        # first-max index within this vocab chunk
        in_chunk = jnp.min(jnp.where(logits == cmax, iota, num_tokens),
                           axis=0, keepdims=True)
        carg = in_chunk + off
        upd = cmax > run_max          # strict: earlier chunk wins ties (torch.argmax)
        return (jnp.where(upd, cmax, run_max), jnp.where(upd, carg, run_arg))

    init = (jnp.full((1, tm), -jnp.inf, dtype=jnp.float32),
            jnp.zeros((1, tm), dtype=jnp.int32))
    # Only 2 chunks at vocab=512, so full unroll is fine; use unroll=2..4 at 8192.
    _, arg = lax.fori_loop(0, n_chunks, vocab_chunk, init, unroll=True)
    code_ref[...] = arg                                            # lane-dense store


# ---------------------------------------------------------------------------
# Decoder kernel (channel-major): codes -> one-hot (VPU) -> embedding matmul
# (MXU, K = vocab) -> 2 more channel-MLP layers -> sigmoid -> unmap_pixels ->
# lane-dense (OUT_PAD, tm) output.
# ---------------------------------------------------------------------------
def _decoder_kernel(codes_ref, emb_ref, w2_ref, b2_ref, w3_ref, b3_ref, out_ref):
    codes = codes_ref[...]                                         # (1, tm) int32
    num_tokens = emb_ref.shape[1]
    tm = codes.shape[-1]

    # One-hot built on the VPU; a single (HID, V)@(V, tm) MXU matmul replaces
    # the former per-row scalar gather.  Layer-1 bias + ReLU are folded into
    # emb_ref host-side, so selecting a row already yields h1.
    iota_v = lax.broadcasted_iota(jnp.int32, (num_tokens, tm), 0)
    onehot = (iota_v == codes).astype(jnp.bfloat16)                # (V, tm)
    h = jnp.dot(emb_ref[...], onehot, preferred_element_type=jnp.float32)
    h = h.astype(jnp.bfloat16)                                     # (HID, tm)

    h = jnp.dot(w2_ref[...], h, preferred_element_type=jnp.float32) + b2_ref[...]
    h = jnp.maximum(h, 0.0).astype(jnp.bfloat16)                   # (HID, tm)
    x_stats = jnp.dot(w3_ref[...], h, preferred_element_type=jnp.float32) + b3_ref[...]
    x_rec = jax.nn.sigmoid(x_stats)                                # (OUT_PAD, tm)
    # unmap_pixels: clamp((x - eps) / (1 - 2 eps), 0, 1), divide pre-inverted.
    out_ref[...] = jnp.clip((x_rec - EPS) * INV_SCALE, 0.0, 1.0)   # full-vreg store


# ---------------------------------------------------------------------------
# Wrappers
# ---------------------------------------------------------------------------
def get_codebook_indices(img_nchw, enc_params):
    """img_nchw: (B, 3, H, W) float32 in [0, 1] -> (B, H*W) int32 codebook indices."""
    B, C, H, W = img_nchw.shape
    assert C == IN_CH
    M = B * H * W
    tm = _choose_tile(M)
    m_pad = -(-M // tm) * tm

    # Channel-major (C, B*H*W): pixels on the lane axis (dense loads/stores),
    # channels/features on sublanes.  Channel IN_CH is a constant 1.0 carrying
    # the folded layer-1 bias; remaining channels are zero pad up to PAD_CH.
    x = jnp.transpose(img_nchw, (1, 0, 2, 3)).reshape(C, M)
    x = jnp.concatenate([x, jnp.ones((1, M), x.dtype)], axis=0)
    x = jnp.pad(x, ((0, PAD_CH - (C + 1)), (0, m_pad - M))).astype(jnp.bfloat16)

    w1t, w2t, b2t, w3t, b3t = enc_params

    codes = pl.pallas_call(
        _encoder_kernel,
        out_shape=jax.ShapeDtypeStruct((1, m_pad), jnp.int32),
        grid_spec=pltpu.PrefetchScalarGridSpec(
            num_scalar_prefetch=0,
            grid=(m_pad // tm,),
            in_specs=[
                pl.BlockSpec((PAD_CH, tm), lambda i: (0, i)),
                _rep_spec(w1t), _rep_spec(w2t), _rep_spec(b2t),
                _rep_spec(w3t), _rep_spec(b3t),
            ],
            out_specs=pl.BlockSpec((1, tm), lambda i: (0, i)),
        ),
        compiler_params=pltpu.CompilerParams(
            dimension_semantics=("parallel",)),
    )(x, w1t, w2t, b2t, w3t, b3t)

    return codes[0, :M].reshape(B, H * W)      # rearrange 'b h w -> b (h w)'


def decode(img_seq, dec_params):
    """img_seq: (B, n) int token indices -> (B, 3, h, h) float32, h = sqrt(n)."""
    B, n = img_seq.shape
    hh = int(sqrt(n))
    M = B * n
    tm = _choose_tile(M)
    m_pad = -(-M // tm) * tm

    codes = jnp.pad(img_seq.reshape(1, M).astype(jnp.int32),
                    ((0, 0), (0, m_pad - M)))
    embT, w2t, b2t, w3t, b3t = dec_params

    out = pl.pallas_call(
        _decoder_kernel,
        out_shape=jax.ShapeDtypeStruct((OUT_PAD, m_pad), jnp.float32),
        grid_spec=pltpu.PrefetchScalarGridSpec(
            num_scalar_prefetch=0,
            grid=(m_pad // tm,),
            in_specs=[
                pl.BlockSpec((1, tm), lambda i: (0, i)),
                _rep_spec(embT), _rep_spec(w2t), _rep_spec(b2t),
                _rep_spec(w3t), _rep_spec(b3t),
            ],
            out_specs=pl.BlockSpec((OUT_PAD, tm), lambda i: (0, i)),
        ),
        compiler_params=pltpu.CompilerParams(
            dimension_semantics=("parallel",)),
    )(codes, embT, w2t, b2t, w3t, b3t)

    # channel-major flat -> NCHW, matching the PyTorch decode() output convention.
    x_rec = out[:IN_CH, :M]
    return jnp.transpose(x_rec.reshape(IN_CH, B, hh, hh), (1, 0, 2, 3))


# ---------------------------------------------------------------------------
# Synthetic weights + host-side folding into kernel-ready (channel-major) form
# ---------------------------------------------------------------------------
def init_raw_params(key):
    """Synthetic stand-in for the downloaded dVAE checkpoints (3 layers each)."""
    keys = jax.random.split(key, 6)

    def dense(k, fan_in, fan_out):
        w = jax.random.normal(k, (fan_in, fan_out), jnp.float32) / jnp.sqrt(
            jnp.float32(fan_in))
        b = jnp.zeros((fan_out,), jnp.float32)
        return w, b

    enc = (dense(keys[0], IN_CH, HID),
           dense(keys[1], HID, HID),
           dense(keys[2], HID, NUM_TOKENS))
    dec = (dense(keys[3], NUM_TOKENS, HID),
           dense(keys[4], HID, HID),
           dense(keys[5], HID, DEC_OUT_CH))
    return enc, dec


def prep_encoder_params(enc_raw):
    """map_pixels + layer-1 bias folded into layer-1 weights (bias rides on a
    constant ones input channel), feature-major transpose, channel pad to
    PAD_CH, bf16 matmul weights, f32 biases."""
    (w1, b1), (w2, b2), (w3, b3) = enc_raw
    w1f = (1.0 - 2.0 * EPS) * w1                        # fold map_pixels scale
    b1f = b1 + EPS * jnp.sum(w1, axis=0)                # fold map_pixels offset
    w1aug = jnp.concatenate([w1f, b1f[None, :]], axis=0)    # (IN_CH+1, HID)
    w1p = jnp.pad(w1aug, ((0, PAD_CH - (IN_CH + 1)), (0, 0)))  # (PAD_CH, HID)
    return (w1p.T.astype(jnp.bfloat16),                 # (HID, PAD_CH)
            w2.T.astype(jnp.bfloat16),                  # (HID, HID)
            b2.reshape(HID, 1),
            w3.T.astype(jnp.bfloat16),                  # (NUM_TOKENS, HID)
            b3.reshape(NUM_TOKENS, 1))


def prep_decoder_params(dec_raw):
    """Layer 1 (one_hot @ w1 + b1, ReLU) folded into a bf16 embedding table
    (stored transposed, channel-major); layer 3 sliced to the 3 used output
    channels then padded to OUT_PAD lanes-of-sublanes with large-negative bias
    so padded rows decode to exactly 0 (and are sliced off host-side)."""
    (w1, b1), (w2, b2), (w3, b3) = dec_raw
    emb = jnp.maximum(w1 + b1[None, :], 0.0)            # (NUM_TOKENS, HID)
    w3c = jnp.pad(w3[:, :IN_CH], ((0, 0), (0, OUT_PAD - IN_CH)))   # (HID, OUT_PAD)
    b3c = jnp.concatenate([b3[:IN_CH],
                           jnp.full((OUT_PAD - IN_CH,), -30.0, jnp.float32)])
    return (emb.T.astype(jnp.bfloat16),                 # (HID, NUM_TOKENS)
            w2.T.astype(jnp.bfloat16),                  # (HID, HID)
            b2.reshape(HID, 1),
            w3c.T.astype(jnp.bfloat16),                 # (OUT_PAD, HID)
            b3c.reshape(OUT_PAD, 1))


# ---------------------------------------------------------------------------
# Pure-JAX references mirroring the kernel math (bf16 operands, f32 accumulate)
# ---------------------------------------------------------------------------
def _encoder_ref(img_nchw, enc_params):
    w1t, w2t, b2t, w3t, b3t = enc_params
    B, C, H, W = img_nchw.shape
    x = jnp.transpose(img_nchw, (1, 0, 2, 3)).reshape(C, -1)
    x = jnp.concatenate([x, jnp.ones((1, x.shape[1]), x.dtype)], axis=0)
    x = jnp.pad(x, ((0, PAD_CH - (C + 1)), (0, 0)))
    x = x.astype(jnp.bfloat16).astype(jnp.float32)
    f32 = lambda a: a.astype(jnp.float32)
    h = jnp.maximum(f32(w1t) @ x, 0.0).astype(jnp.bfloat16).astype(jnp.float32)
    h = jnp.maximum(f32(w2t) @ h + b2t, 0.0).astype(jnp.bfloat16).astype(jnp.float32)
    logits = f32(w3t) @ h + b3t
    return jnp.argmax(logits, axis=0).astype(jnp.int32).reshape(B, H * W)


def _decoder_ref(img_seq, dec_params):
    embT, w2t, b2t, w3t, b3t = dec_params
    B, n = img_seq.shape
    hh = int(sqrt(n))
    f32 = lambda a: a.astype(jnp.float32)
    h = f32(embT)[:, img_seq.reshape(-1)]                # (HID, M) gather == one-hot mm
    h = h.astype(jnp.bfloat16).astype(jnp.float32)
    h = jnp.maximum(f32(w2t) @ h + b2t, 0.0)
    h = h.astype(jnp.bfloat16).astype(jnp.float32)
    x_stats = f32(w3t) @ h + b3t                         # (OUT_PAD, M)
    x_rec = jnp.clip((jax.nn.sigmoid(x_stats[:IN_CH]) - EPS) * INV_SCALE, 0.0, 1.0)
    return jnp.transpose(x_rec.reshape(IN_CH, B, hh, hh), (1, 0, 2, 3))


if __name__ == "__main__":
    key = jax.random.PRNGKey(0)
    pkey, xkey = jax.random.split(key)
    enc_raw, dec_raw = init_raw_params(pkey)
    enc_params = prep_encoder_params(enc_raw)
    dec_params = prep_decoder_params(dec_raw)

    # Small image consistent with the module: batch=2, RGB, 16x16 spatial, NCHW in [0,1).
    img = jax.random.uniform(xkey, (2, 3, 16, 16), jnp.float32)

    codes = get_codebook_indices(img, enc_params)        # (2, 256) int32
    x_rec = decode(codes, dec_params)                    # (2, 3, 16, 16) float32
    jax.block_until_ready(codes)
    jax.block_until_ready(x_rec)

    # Shape / dtype / range contracts of the PyTorch module.
    assert codes.shape == (2, 16 * 16) and codes.dtype == jnp.int32
    assert bool(jnp.all((codes >= 0) & (codes < NUM_TOKENS)))
    assert x_rec.shape == (2, 3, 16, 16) and x_rec.dtype == jnp.float32
    assert bool(jnp.all((x_rec >= 0.0) & (x_rec <= 1.0)))

    # Numerical checks vs pure-JAX references using the same (bf16) weights.
    ref_codes = _encoder_ref(img, enc_params)
    agree = float(jnp.mean((codes == ref_codes).astype(jnp.float32)))
    assert agree >= 0.98, f"codebook agreement too low: {agree}"
    ref_rec = _decoder_ref(codes, dec_params)
    assert bool(jnp.allclose(x_rec, ref_rec, atol=1e-2)), "decode mismatch"

    print("KERNEL_OK")
</pallas_src>

<mosaic_0001>
module attributes {stable_mosaic.version = 11 : i64} {
  func.func @_encoder_kernel(%arg0: i32, %arg1: memref<16x512xbf16, #tpu.memory_space<vmem>>, %arg2: memref<128x16xbf16, #tpu.memory_space<vmem>>, %arg3: memref<128x128xbf16, #tpu.memory_space<vmem>>, %arg4: memref<128x1xf32, #tpu.memory_space<vmem>>, %arg5: memref<512x128xbf16, #tpu.memory_space<vmem>>, %arg6: memref<512x1xf32, #tpu.memory_space<vmem>>, %arg7: memref<1x512xi32, #tpu.memory_space<vmem>>) attributes {dimension_semantics = [#tpu.dimension_semantics<parallel>], iteration_bounds = array<i64: 1>, scalar_prefetch = 0 : i64, scratch_operands = 0 : i64, tpu.core_type = #tpu.core_type<tc>, window_params = [{transform_indices = @transform_0, window_bounds = array<i64: 16, 512>}, {pipeline_mode = #tpu.pipeline_mode<synchronous>, transform_indices = @transform_1, window_bounds = array<i64: 128, 16>}, {pipeline_mode = #tpu.pipeline_mode<synchronous>, transform_indices = @transform_2, window_bounds = array<i64: 128, 128>}, {pipeline_mode = #tpu.pipeline_mode<synchronous>, transform_indices = @transform_3, window_bounds = array<i64: 128, 1>}, {pipeline_mode = #tpu.pipeline_mode<synchronous>, transform_indices = @transform_4, window_bounds = array<i64: 512, 128>}, {pipeline_mode = #tpu.pipeline_mode<synchronous>, transform_indices = @transform_5, window_bounds = array<i64: 512, 1>}, {transform_indices = @transform_6, window_bounds = array<i64: 1, 512>}]} {
    %c0 = arith.constant 0 : index
    %c0_0 = arith.constant 0 : index
    %0 = vector.load %arg1[%c0, %c0_0] : memref<16x512xbf16, #tpu.memory_space<vmem>>, vector<16x512xbf16>
    %c0_1 = arith.constant 0 : index
    %c0_2 = arith.constant 0 : index
    %1 = vector.load %arg2[%c0_1, %c0_2] : memref<128x16xbf16, #tpu.memory_space<vmem>>, vector<128x16xbf16>
    %cst = arith.constant dense<0.000000e+00> : vector<128x512xf32>
    %2 = tpu.matmul %1, %0, %cst {dimension_numbers = #tpu.dot_dimension_numbers<[1], [0], [0], [1], [0, 0, 1, 1], [], []>} : vector<128x16xbf16>, vector<16x512xbf16>, vector<128x512xf32> -> vector<128x512xf32>
    %cst_3 = arith.constant 0.000000e+00 : f32
    %3 = vector.broadcast %cst_3 : f32 to vector<128x512xf32>
    %4 = arith.maximumf %2, %3 : vector<128x512xf32>
    %5 = arith.truncf %4 : vector<128x512xf32> to vector<128x512xbf16>
    %c0_4 = arith.constant 0 : index
    %c0_5 = arith.constant 0 : index
    %6 = vector.load %arg3[%c0_4, %c0_5] : memref<128x128xbf16, #tpu.memory_space<vmem>>, vector<128x128xbf16>
    %cst_6 = arith.constant dense<0.000000e+00> : vector<128x512xf32>
    %7 = tpu.matmul %6, %5, %cst_6 {dimension_numbers = #tpu.dot_dimension_numbers<[1], [0], [0], [1], [0, 0, 1, 1], [], []>} : vector<128x128xbf16>, vector<128x512xbf16>, vector<128x512xf32> -> vector<128x512xf32>
    %c0_7 = arith.constant 0 : index
    %c0_8 = arith.constant 0 : index
    %8 = vector.load %arg4[%c0_7, %c0_8] : memref<128x1xf32, #tpu.memory_space<vmem>>, vector<128x1xf32>
    %9 = vector.broadcast %8 : vector<128x1xf32> to vector<128x512xf32>
    %10 = arith.addf %7, %9 : vector<128x512xf32>
    %cst_9 = arith.constant 0.000000e+00 : f32
    %11 = vector.broadcast %cst_9 : f32 to vector<128x512xf32>
    %12 = arith.maximumf %10, %11 : vector<128x512xf32>
    %13 = arith.truncf %12 : vector<128x512xf32> to vector<128x512xbf16>
    %cst_10 = arith.constant 0xFF800000 : f32
    %14 = vector.broadcast %cst_10 : f32 to vector<1x512xf32>
    %c0_i32 = arith.constant 0 : i32
    %15 = vector.broadcast %c0_i32 : i32 to vector<1x512xi32>
    %c0_i32_11 = arith.constant 0 : i32
    %c256_i32 = arith.constant 256 : i32
    %16 = arith.muli %c0_i32_11, %c256_i32 : i32
    %17 = tpu.assume_multiple %16, 256 : i32
    %18 = arith.index_cast %17 : i32 to index
    %c0_12 = arith.constant 0 : index
    %19 = vector.load %arg5[%18, %c0_12] : memref<512x128xbf16, #tpu.memory_space<vmem>>, vector<256x128xbf16>
    %20 = arith.index_cast %17 : i32 to index
    %c0_13 = arith.constant 0 : index
    %21 = vector.load %arg6[%20, %c0_13] : memref<512x1xf32, #tpu.memory_space<vmem>>, vector<256x1xf32>
    %cst_14 = arith.constant dense<0.000000e+00> : vector<256x512xf32>
    %22 = tpu.matmul %19, %13, %cst_14 {dimension_numbers = #tpu.dot_dimension_numbers<[1], [0], [0], [1], [0, 0, 1, 1], [], []>} : vector<256x128xbf16>, vector<128x512xbf16>, vector<256x512xf32> -> vector<256x512xf32>
    %23 = vector.broadcast %21 : vector<256x1xf32> to vector<256x512xf32>
    %24 = arith.addf %22, %23 : vector<256x512xf32>
    %cst_15 = arith.constant dense<0xFF800000> : vector<512xf32>
    %25 = vector.multi_reduction <maximumf>, %24, %cst_15 [0] : vector<256x512xf32> to vector<512xf32>
    %26 = vector.shape_cast %25 : vector<512xf32> to vector<1x512xf32>
    %27 = tpu.iota {dimensions = array<i32: 0>} : vector<256x512xi32>
    %28 = vector.broadcast %26 : vector<1x512xf32> to vector<256x512xf32>
    %29 = arith.cmpf oeq, %24, %28 : vector<256x512xf32>
    %c512_i32 = arith.constant 512 : i32
    %30 = vector.broadcast %c512_i32 : i32 to vector<256x512xi32>
    %31 = arith.select %29, %27, %30 : vector<256x512xi1>, vector<256x512xi32>
    %cst_16 = arith.constant dense<2147483647> : vector<512xi32>
    %32 = vector.multi_reduction <minsi>, %31, %cst_16 [0] : vector<256x512xi32> to vector<512xi32>
    %33 = vector.shape_cast %32 : vector<512xi32> to vector<1x512xi32>
    %34 = vector.broadcast %17 : i32 to vector<1x512xi32>
    %35 = arith.addi %33, %34 : vector<1x512xi32>
    %36 = arith.cmpf ogt, %26, %14 : vector<1x512xf32>
    %37 = arith.select %36, %26, %14 : vector<1x512xi1>, vector<1x512xf32>
    %38 = arith.select %36, %35, %15 : vector<1x512xi1>, vector<1x512xi32>
    %c1_i32 = arith.constant 1 : i32
    %c256_i32_17 = arith.constant 256 : i32
    %39 = arith.muli %c1_i32, %c256_i32_17 : i32
    %40 = tpu.assume_multiple %39, 256 : i32
    %41 = arith.index_cast %40 : i32 to index
    %c0_18 = arith.constant 0 : index
    %42 = vector.load %arg5[%41, %c0_18] : memref<512x128xbf16, #tpu.memory_space<vmem>>, vector<256x128xbf16>
    %43 = arith.index_cast %40 : i32 to index
    %c0_19 = arith.constant 0 : index
    %44 = vector.load %arg6[%43, %c0_19] : memref<512x1xf32, #tpu.memory_space<vmem>>, vector<256x1xf32>
    %cst_20 = arith.constant dense<0.000000e+00> : vector<256x512xf32>
    %45 = tpu.matmul %42, %13, %cst_20 {dimension_numbers = #tpu.dot_dimension_numbers<[1], [0], [0], [1], [0, 0, 1, 1], [], []>} : vector<256x128xbf16>, vector<128x512xbf16>, vector<256x512xf32> -> vector<256x512xf32>
    %46 = vector.broadcast %44 : vector<256x1xf32> to vector<256x512xf32>
    %47 = arith.addf %45, %46 : vector<256x512xf32>
    %cst_21 = arith.constant dense<0xFF800000> : vector<512xf32>
    %48 = vector.multi_reduction <maximumf>, %47, %cst_21 [0] : vector<256x512xf32> to vector<512xf32>
    %49 = vector.shape_cast %48 : vector<512xf32> to vector<1x512xf32>
    %50 = tpu.iota {dimensions = array<i32: 0>} : vector<256x512xi32>
    %51 = vector.broadcast %49 : vector<1x512xf32> to vector<256x512xf32>
    %52 = arith.cmpf oeq, %47, %51 : vector<256x512xf32>
    %c512_i32_22 = arith.constant 512 : i32
    %53 = vector.broadcast %c512_i32_22 : i32 to vector<256x512xi32>
    %54 = arith.select %52, %50, %53 : vector<256x512xi1>, vector<256x512xi32>
    %cst_23 = arith.constant dense<2147483647> : vector<512xi32>
    %55 = vector.multi_reduction <minsi>, %54, %cst_23 [0] : vector<256x512xi32> to vector<512xi32>
    %56 = vector.shape_cast %55 : vector<512xi32> to vector<1x512xi32>
    %57 = vector.broadcast %40 : i32 to vector<1x512xi32>
    %58 = arith.addi %56, %57 : vector<1x512xi32>
    %59 = arith.cmpf ogt, %49, %37 : vector<1x512xf32>
    %60 = arith.select %59, %49, %37 : vector<1x512xi1>, vector<1x512xf32>
    %61 = arith.select %59, %58, %38 : vector<1x512xi1>, vector<1x512xi32>
    %c2_i32 = arith.constant 2 : i32
    %c0_24 = arith.constant 0 : index
    %c0_25 = arith.constant 0 : index
    %62 = vector.load %arg7[%c0_24, %c0_25] : memref<1x512xi32, #tpu.memory_space<vmem>>, vector<1x512xi32>
    tpu.vector_store %arg7[%c0_24, %c0_25], %61 {strides = array<i32>} : memref<1x512xi32, #tpu.memory_space<vmem>>, vector<1x512xi32>,
    return
  }
  func.func @transform_0(%arg0: i32) -> (i32, i32) {
    %c0_i32 = arith.constant 0 : i32
    %c0_i32_0 = arith.constant 0 : i32
    return %c0_i32, %arg0 : i32, i32
  }
  func.func @transform_1(%arg0: i32) -> (i32, i32) {
    %c0_i32 = arith.constant 0 : i32
    %c0_i32_0 = arith.constant 0 : i32
    %c0_i32_1 = arith.constant 0 : i32
    return %c0_i32, %c0_i32_0 : i32, i32
  }
  func.func @transform_2(%arg0: i32) -> (i32, i32) {
    %c0_i32 = arith.constant 0 : i32
    %c0_i32_0 = arith.constant 0 : i32
    %c0_i32_1 = arith.constant 0 : i32
    return %c0_i32, %c0_i32_0 : i32, i32
  }
  func.func @transform_3(%arg0: i32) -> (i32, i32) {
    %c0_i32 = arith.constant 0 : i32
    %c0_i32_0 = arith.constant 0 : i32
    %c0_i32_1 = arith.constant 0 : i32
    return %c0_i32, %c0_i32_0 : i32, i32
  }
  func.func @transform_4(%arg0: i32) -> (i32, i32) {
    %c0_i32 = arith.constant 0 : i32
    %c0_i32_0 = arith.constant 0 : i32
    %c0_i32_1 = arith.constant 0 : i32
    return %c0_i32, %c0_i32_0 : i32, i32
  }
  func.func @transform_5(%arg0: i32) -> (i32, i32) {
    %c0_i32 = arith.constant 0 : i32
    %c0_i32_0 = arith.constant 0 : i32
    %c0_i32_1 = arith.constant 0 : i32
    return %c0_i32, %c0_i32_0 : i32, i32
  }
  func.func @transform_6(%arg0: i32) -> (i32, i32) {
    %c0_i32 = arith.constant 0 : i32
    %c0_i32_0 = arith.constant 0 : i32
    return %c0_i32, %arg0 : i32, i32
  }
}

</mosaic_0001>

<llo_original>
// kernel: tpu_custom_call.1
$region0: #{tpu_custom_call.1}
  #allocation0 [shape = 'u32[]', space=smem, size = 0x4, offset = 0x4, fixed_abs, tag = 'smem constant byte address 0x4 - core index']
  #allocation1 [shape = 'u32[144,128]{1,0:T(1,128)}', space=vmem, size = 0x12000, scoped, tag = 'internal scratch']
  %s0 = inlined_call_operand.vmem [shape: bf16[16,512], index: 0, kind: input, shape index: {}]
  %s1 = inlined_call_operand.vmem [shape: bf16[128,16], index: 1, kind: input, shape index: {}]
  %s2 = inlined_call_operand.vmem [shape: bf16[128,128], index: 2, kind: input, shape index: {}]
  %s3 = inlined_call_operand.vmem [shape: f32[128,1], index: 3, kind: input, shape index: {}]
  %s4 = inlined_call_operand.vmem [shape: bf16[512,128], index: 4, kind: input, shape index: {}]
  %s5 = inlined_call_operand.vmem [shape: f32[512,1], index: 5, kind: input, shape index: {}]
  %s6 = inlined_call_operand.hbm [shape: s32[1,512], index: 6, kind: output, shape index: {}]
  %s7 = sld [smem:[#allocation0]]
  $region34: #{tpu_custom_call.1} parent=0
    _
  %s9 = ssub.s32 1, %s7
  %s10 = scalar_select 0, %s9, %s7
  $region1: #{tpu_custom_call.1} parent=0
    #allocation2 [shape = 'u8[2048]{0}', space=vmem, size = 0x800, scoped, tag = 'output window, operand 0, single buffered']
    #allocation3 [shape = 's32[1]{0}', space=sflag, size = 0x4, scoped, tag = 'scoped memory for tpu_custom_call.1']
    %11 = vsyncpa [#allocation3], 0
    // Predicated region
    $region2: #{tpu_custom_call.1} parent=1 // pred_check
      _
    $region3: #{tpu_custom_call.1} parent=1 // pred_check_branch
      %13 = sbr.rel (0) target = $region5
    $region4: #{tpu_custom_call.1} parent=1 // pred_region
      _
    $region5: #{tpu_custom_call.1} parent=1 // pred_fallthru
      _
    // Predicated region
    $region6: #{tpu_custom_call.1} parent=1 // pred_check
      _
    $region7: #{tpu_custom_call.1} parent=1 // pred_check_branch
      %15 = sbr.rel (0) target = $region9
    $region8: #{tpu_custom_call.1} parent=1 // pred_region
      _
    $region9: #{tpu_custom_call.1} parent=1 // pred_fallthru
      _
    // Predicated region
    $region10: #{tpu_custom_call.1} parent=1 // pred_check
      _
    $region11: #{tpu_custom_call.1} parent=1 // pred_check_branch
      %17 = sbr.rel (0) target = $region13
    $region12: #{tpu_custom_call.1} parent=1 // pred_region
      _
    $region13: #{tpu_custom_call.1} parent=1 // pred_fallthru
      _
    // Predicated region
    $region14: #{tpu_custom_call.1} parent=1 // pred_check
      _
    $region15: #{tpu_custom_call.1} parent=1 // pred_check_branch
      %19 = sbr.rel (0) target = $region17
    $region16: #{tpu_custom_call.1} parent=1 // pred_region
      _
    $region17: #{tpu_custom_call.1} parent=1 // pred_fallthru
      _
    // Predicated region
    $region18: #{tpu_custom_call.1} parent=1 // pred_check
      _
    $region19: #{tpu_custom_call.1} parent=1 // pred_check_branch
      %21 = sbr.rel (0) target = $region21
    $region20: #{tpu_custom_call.1} parent=1 // pred_region
      _
    $region21: #{tpu_custom_call.1} parent=1 // pred_fallthru
      _
    // Predicated region
    $region22: #{tpu_custom_call.1} parent=1 // pred_check
      _
    $region23: #{tpu_custom_call.1} parent=1 // pred_check_branch
      %23 = sbr.rel (0) target = $region25
    $region24: #{tpu_custom_call.1} parent=1 // pred_region
      _
    $region25: #{tpu_custom_call.1} parent=1 // pred_fallthru
      _
    %v25 = vld [vmem:[%s0] sm:$0xff]
    %v26 = vld [vmem:[%s0 + $0x8] sm:$0xff]
    %v27 = vld [vmem:[%s0 + $0x10] sm:$0xff]
    %v28 = vld [vmem:[%s0 + $0x18] sm:$0xff]
    %v29 = vld [vmem:[%s1] sm:$0xf]
    %v30 = vld [vmem:[%s1 + $0x4] sm:$0xf]
    %v31 = vld [vmem:[%s1 + $0x8] sm:$0xf]
    %v32 = vld [vmem:[%s1 + $0xc] sm:$0xf]
    %v33 = vld [vmem:[%s1 + $0x10] sm:$0xf]
    %v34 = vld [vmem:[%s1 + $0x14] sm:$0xf]
    %v35 = vld [vmem:[%s1 + $0x18] sm:$0xf]
    %v36 = vld [vmem:[%s1 + $0x1c] sm:$0xf]
    %v37 = vld [vmem:[%s1 + $0x20] sm:$0xf]
    %v38 = vld [vmem:[%s1 + $0x24] sm:$0xf]
    %v39 = vld [vmem:[%s1 + $0x28] sm:$0xf]
    %v40 = vld [vmem:[%s1 + $0x2c] sm:$0xf]
    %v41 = vld [vmem:[%s1 + $0x30] sm:$0xf]
    %v42 = vld [vmem:[%s1 + $0x34] sm:$0xf]
    %v43 = vld [vmem:[%s1 + $0x38] sm:$0xf]
    %v44 = vld [vmem:[%s1 + $0x3c] sm:$0xf]
    %v61 = vunpack.c.l.b16 %v29
    %v62 = vunpack.c.l.b16 %v30
    %v63 = vunpack.c.l.b16 %v31
    %v64 = vunpack.c.l.b16 %v32
    %v65 = vunpack.c.l.b16 %v33
    %v66 = vunpack.c.l.b16 %v34
    %v67 = vunpack.c.l.b16 %v35
    %v68 = vunpack.c.l.b16 %v36
    %v69 = vunpack.c.l.b16 %v37
    %v70 = vunpack.c.l.b16 %v38
    %v71 = vunpack.c.l.b16 %v39
    %v72 = vunpack.c.l.b16 %v40
    %v73 = vunpack.c.l.b16 %v41
    %v74 = vunpack.c.l.b16 %v42
    %v75 = vunpack.c.l.b16 %v43
    %v76 = vunpack.c.l.b16 %v44
    %v77 = vpack.c.b16 %v62, %v61
    %v78 = vpack.c.b16 %v64, %v63
    %v79 = vpack.c.b16 %v66, %v65
    %v80 = vpack.c.b16 %v68, %v67
    %v81 = vpack.c.b16 %v70, %v69
    %v82 = vpack.c.b16 %v72, %v71
    %v83 = vpack.c.b16 %v74, %v73
    %v84 = vpack.c.b16 %v76, %v75
    %v89 = vunpack.c.l.b16 %v25
    %v90 = vunpack.c.h.b16 %v25
    %v91 = vunpack.c.l.b16 %v26
    %v92 = vunpack.c.h.b16 %v26
    %v93 = vunpack.c.l.b16 %v27
    %v94 = vunpack.c.h.b16 %v27
    %v95 = vunpack.c.l.b16 %v28
    %v96 = vunpack.c.h.b16 %v28
    %v97 = vpack.c.b16 %v93, %v89
    %v98 = vpack.c.b16 %v94, %v90
    %v99 = vpack.c.b16 %v95, %v91
    %v100 = vpack.c.b16 %v96, %v92
    %vm105 = vcmask 130048
    %v107 = vsel %vm105, %v77, 0
    %v110 = vsel %vm105, %v78, 0
    %v113 = vsel %vm105, %v79, 0
    %v116 = vsel %vm105, %v80, 0
    %v119 = vsel %vm105, %v81, 0
    %v122 = vsel %vm105, %v82, 0
    %v125 = vsel %vm105, %v83, 0
    %v128 = vsel %vm105, %v84, 0
    %130 = vmatprep.subr.bf16.mxu0 %v98
    %131 = vmatpush1.bf16.msra.mxu0 %v97
    %132 = vmatprep.subr.bf16.mxu0 0
    %133 = vmatpush1.bf16.msra.mxu0 0
    %134 = vmatprep.subr.bf16.mxu0 0
    %135 = vmatpush1.bf16.msra.mxu0 0
    %136 = vmatprep.subr.bf16.mxu0 0
    %137 = vmatpush1.bf16.msra.mxu0 0
    %138 = vmatprep.subr.bf16.mxu0 0
    %139 = vmatpush1.bf16.msra.mxu0 0
    %140 = vmatprep.subr.bf16.mxu0 0
    %141 = vmatpush1.bf16.msra.mxu0 0
    %142 = vmatprep.subr.bf16.mxu0 0
    %143 = vmatpush1.bf16.msra.mxu0 0
    %144 = vmatprep.subr.bf16.mxu0 0
    %145 = vmatpush1.bf16.msra.mxu0 0
    %146 = vmatprep.subr.bf16.mxu0 0
    %147 = vmatpush1.bf16.msra.mxu0 0
    %148 = vmatprep.subr.bf16.mxu0 0
    %149 = vmatpush1.bf16.msra.mxu0 0
    %150 = vmatprep.subr.bf16.mxu0 0
    %151 = vmatpush1.bf16.msra.mxu0 0
    %152 = vmatprep.subr.bf16.mxu0 0
    %153 = vmatpush1.bf16.msra.mxu0 0
    %154 = vmatprep.subr.bf16.mxu0 0
    %155 = vmatpush1.bf16.msra.mxu0 0
    %156 = vmatprep.subr.bf16.mxu0 0
    %157 = vmatpush1.bf16.msra.mxu0 0
    %158 = vmatprep.subr.bf16.mxu0 0
    %159 = vmatpush1.bf16.msra.mxu0 0
    %160 = vmatprep.subr.bf16.mxu0 0
    %161 = vmatpush1.bf16.msra.mxu0 0
    %162 = vmatprep.mubr.bf16.mxu0 0
    %163 = vmatmul.mubr.bf16.gmra.mrb[0].mxu0 %v107
    %v164 = vpop.f32.mrb[0].mxu0
    %v165 = vadd.f32 0.0, %v164
    %v166 = vpop.f32.mrb[0].mxu0
    %v167 = vadd.f32 0.0, %v166
    %v168 = vpop.f32.mrb[0].mxu0
    %v169 = vadd.f32 0.0, %v168
    %v170 = vpop.f32.mrb[0].mxu0
    %v171 = vadd.f32 0.0, %v170
    %172 = vmatprep.mubr.bf16.mxu0 0
    %173 = vmatmul.mubr.bf16.gmra.mrb[0].mxu0 %v110
    %v174 = vpop.f32.mrb[0].mxu0
    %v175 = vadd.f32 0.0, %v174
    %v176 = vpop.f32.mrb[0].mxu0
    %v177 = vadd.f32 0.0, %v176
    %v178 = vpop.f32.mrb[0].mxu0
    %v179 = vadd.f32 0.0, %v178
    %v180 = vpop.f32.mrb[0].mxu0
    %v181 = vadd.f32 0.0, %v180
    %182 = vmatprep.mubr.bf16.mxu0 0
    %183 = vmatmul.mubr.bf16.gmra.mrb[0].mxu0 %v113
    %v184 = vpop.f32.mrb[0].mxu0
    %v185 = vadd.f32 0.0, %v184
    %v186 = vpop.f32.mrb[0].mxu0
    %v187 = vadd.f32 0.0, %v186
    %v188 = vpop.f32.mrb[0].mxu0
    %v189 = vadd.f32 0.0, %v188
    %v190 = vpop.f32.mrb[0].mxu0
    %v191 = vadd.f32 0.0, %v190
    %192 = vmatprep.mubr.bf16.mxu0 0
    %193 = vmatmul.mubr.bf16.gmra.mrb[0].mxu0 %v116
    %v194 = vpop.f32.mrb[0].mxu0
    %v195 = vadd.f32 0.0, %v194
    %v196 = vpop.f32.mrb[0].mxu0
    %v197 = vadd.f32 0.0, %v196
    %v198 = vpop.f32.mrb[0].mxu0
    %v199 = vadd.f32 0.0, %v198
    %v200 = vpop.f32.mrb[0].mxu0
    %v201 = vadd.f32 0.0, %v200
    %202 = vmatprep.mubr.bf16.mxu0 0
    %203 = vmatmul.mubr.bf16.gmra.mrb[0].mxu0 %v119
    %v204 = vpop.f32.mrb[0].mxu0
    %v205 = vadd.f32 0.0, %v204
    %v206 = vpop.f32.mrb[0].mxu0
    %v207 = vadd.f32 0.0, %v206
    %v208 = vpop.f32.mrb[0].mxu0
    %v209 = vadd.f32 0.0, %v208
    %v210 = vpop.f32.mrb[0].mxu0
    %v211 = vadd.f32 0.0, %v210
    %212 = vmatprep.mubr.bf16.mxu0 0
    %213 = vmatmul.mubr.bf16.gmra.mrb[0].mxu0 %v122
    %v214 = vpop.f32.mrb[0].mxu0
    %v215 = vadd.f32 0.0, %v214
    %v216 = vpop.f32.mrb[0].mxu0
    %v217 = vadd.f32 0.0, %v216
    %v218 = vpop.f32.mrb[0].mxu0
    %v219 = vadd.f32 0.0, %v218
    %v220 = vpop.f32.mrb[0].mxu0
    %v221 = vadd.f32 0.0, %v220
    %222 = vmatprep.mubr.bf16.mxu0 0
    %223 = vmatmul.mubr.bf16.gmra.mrb[0].mxu0 %v125
    %v224 = vpop.f32.mrb[0].mxu0
    %v225 = vadd.f32 0.0, %v224
    %v226 = vpop.f32.mrb[0].mxu0
    %v227 = vadd.f32 0.0, %v226
    %v228 = vpop.f32.mrb[0].mxu0
    %v229 = vadd.f32 0.0, %v228
    %v230 = vpop.f32.mrb[0].mxu0
    %v231 = vadd.f32 0.0, %v230
    %232 = vmatprep.mubr.bf16.mxu0 0
    %233 = vmatmul.mubr.bf16.gmra.mrb[0].mxu0 %v128
    %v234 = vpop.f32.mrb[0].mxu0
    %v235 = vadd.f32 0.0, %v234
    %v236 = vpop.f32.mrb[0].mxu0
    %v237 = vadd.f32 0.0, %v236
    %v238 = vpop.f32.mrb[0].mxu0
    %v239 = vadd.f32 0.0, %v238
    %v240 = vpop.f32.mrb[0].mxu0
    %v241 = vadd.f32 0.0, %v240
    %242 = vdwg.mxu0
    %243 = vmatprep.subr.bf16.mxu0 %v100
    %244 = vmatpush1.bf16.msra.mxu0 %v99
    %245 = vmatprep.subr.bf16.mxu0 0
    %246 = vmatpush1.bf16.msra.mxu0 0
    %247 = vmatprep.subr.bf16.mxu0 0
    %248 = vmatpush1.bf16.msra.mxu0 0
    %249 = vmatprep.subr.bf16.mxu0 0
    %250 = vmatpush1.bf16.msra.mxu0 0
    %251 = vmatprep.subr.bf16.mxu0 0
    %252 = vmatpush1.bf16.msra.mxu0 0
    %253 = vmatprep.subr.bf16.mxu0 0
    %254 = vmatpush1.bf16.msra.mxu0 0
    %255 = vmatprep.subr.bf16.mxu0 0
    %256 = vmatpush1.bf16.msra.mxu0 0
    %257 = vmatprep.subr.bf16.mxu0 0
    %258 = vmatpush1.bf16.msra.mxu0 0
    %259 = vmatprep.subr.bf16.mxu0 0
    %260 = vmatpush1.bf16.msra.mxu0 0
    %261 = vmatprep.subr.bf16.mxu0 0
    %262 = vmatpush1.bf16.msra.mxu0 0
    %263 = vmatprep.subr.bf16.mxu0 0
    %264 = vmatpush1.bf16.msra.mxu0 0
    %265 = vmatprep.subr.bf16.mxu0 0
    %266 = vmatpush1.bf16.msra.mxu0 0
    %267 = vmatprep.subr.bf16.mxu0 0
    %268 = vmatpush1.bf16.msra.mxu0 0
    %269 = vmatprep.subr.bf16.mxu0 0
    %270 = vmatpush1.bf16.msra.mxu0 0
    %271 = vmatprep.subr.bf16.mxu0 0
    %272 = vmatpush1.bf16.msra.mxu0 0
    %273 = vmatprep.subr.bf16.mxu0 0
    %274 = vmatpush1.bf16.msra.mxu0 0
    %275 = vmatprep.mubr.bf16.mxu0 0
    %276 = vmatmul.mubr.bf16.gmra.mrb[0].mxu0 %v107
    %v277 = vpop.f32.mrb[0].mxu0
    %v278 = vadd.f32 0.0, %v277
    %v279 = vpop.f32.mrb[0].mxu0
    %v280 = vadd.f32 0.0, %v279
    %v281 = vpop.f32.mrb[0].mxu0
    %v282 = vadd.f32 0.0, %v281
    %v283 = vpop.f32.mrb[0].mxu0
    %v284 = vadd.f32 0.0, %v283
    %285 = vmatprep.mubr.bf16.mxu0 0
    %286 = vmatmul.mubr.bf16.gmra.mrb[0].mxu0 %v110
    %v287 = vpop.f32.mrb[0].mxu0
    %v288 = vadd.f32 0.0, %v287
    %v289 = vpop.f32.mrb[0].mxu0
    %v290 = vadd.f32 0.0, %v289
    %v291 = vpop.f32.mrb[0].mxu0
    %v292 = vadd.f32 0.0, %v291
    %v293 = vpop.f32.mrb[0].mxu0
    %v294 = vadd.f32 0.0, %v293
    %295 = vmatprep.mubr.bf16.mxu0 0
    %296 = vmatmul.mubr.bf16.gmra.mrb[0].mxu0 %v113
    %v297 = vpop.f32.mrb[0].mxu0
    %v298 = vadd.f32 0.0, %v297
    %v299 = vpop.f32.mrb[0].mxu0
    %v300 = vadd.f32 0.0, %v299
    %v301 = vpop.f32.mrb[0].mxu0
    %v302 = vadd.f32 0.0, %v301
    %v303 = vpop.f32.mrb[0].mxu0
    %v304 = vadd.f32 0.0, %v303
    %305 = vmatprep.mubr.bf16.mxu0 0
    %306 = vmatmul.mubr.bf16.gmra.mrb[0].mxu0 %v116
    %v307 = vpop.f32.mrb[0].mxu0
    %v308 = vadd.f32 0.0, %v307
    %v309 = vpop.f32.mrb[0].mxu0
    %v310 = vadd.f32 0.0, %v309
    %v311 = vpop.f32.mrb[0].mxu0
    %v312 = vadd.f32 0.0, %v311
    %v313 = vpop.f32.mrb[0].mxu0
    %v314 = vadd.f32 0.0, %v313
    %315 = vmatprep.mubr.bf16.mxu0 0
    %316 = vmatmul.mubr.bf16.gmra.mrb[0].mxu0 %v119
    %v317 = vpop.f32.mrb[0].mxu0
    %v318 = vadd.f32 0.0, %v317
    %v319 = vpop.f32.mrb[0].mxu0
    %v320 = vadd.f32 0.0, %v319
    %v321 = vpop.f32.mrb[0].mxu0
    %v322 = vadd.f32 0.0, %v321
    %v323 = vpop.f32.mrb[0].mxu0
    %v324 = vadd.f32 0.0, %v323
    %325 = vmatprep.mubr.bf16.mxu0 0
    %326 = vmatmul.mubr.bf16.gmra.mrb[0].mxu0 %v122
    %v327 = vpop.f32.mrb[0].mxu0
    %v328 = vadd.f32 0.0, %v327
    %v329 = vpop.f32.mrb[0].mxu0
    %v330 = vadd.f32 0.0, %v329
    %v331 = vpop.f32.mrb[0].mxu0
    %v332 = vadd.f32 0.0, %v331
    %v333 = vpop.f32.mrb[0].mxu0
    %v334 = vadd.f32 0.0, %v333
    %335 = vmatprep.mubr.bf16.mxu0 0
    %336 = vmatmul.mubr.bf16.gmra.mrb[0].mxu0 %v125
    %v337 = vpop.f32.mrb[0].mxu0
    %v338 = vadd.f32 0.0, %v337
    %v339 = vpop.f32.mrb[0].mxu0
    %v340 = vadd.f32 0.0, %v339
    %v341 = vpop.f32.mrb[0].mxu0
    %v342 = vadd.f32 0.0, %v341
    %v343 = vpop.f32.mrb[0].mxu0
    %v344 = vadd.f32 0.0, %v343
    %345 = vmatprep.mubr.bf16.mxu0 0
    %346 = vmatmul.mubr.bf16.gmra.mrb[0].mxu0 %v128
    %v347 = vpop.f32.mrb[0].mxu0
    %v348 = vadd.f32 0.0, %v347
    %v349 = vpop.f32.mrb[0].mxu0
    %v350 = vadd.f32 0.0, %v349
    %v351 = vpop.f32.mrb[0].mxu0
    %v352 = vadd.f32 0.0, %v351
    %v353 = vpop.f32.mrb[0].mxu0
    %v354 = vadd.f32 0.0, %v353
    %355 = vdwg.mxu0
    %v356 = vmax.f32 %v165, 0.0
    %v357 = vmax.f32 %v167, 0.0
    %v358 = vmax.f32 %v278, 0.0
    %v359 = vmax.f32 %v280, 0.0
    %v360 = vmax.f32 %v169, 0.0
    %v361 = vmax.f32 %v171, 0.0
    %v362 = vmax.f32 %v282, 0.0
    %v363 = vmax.f32 %v284, 0.0
    %v364 = vmax.f32 %v175, 0.0
    %v365 = vmax.f32 %v177, 0.0
    %v366 = vmax.f32 %v288, 0.0
    %v367 = vmax.f32 %v290, 0.0
    %v368 = vmax.f32 %v179, 0.0
    %v369 = vmax.f32 %v181, 0.0
    %v370 = vmax.f32 %v292, 0.0
    %v371 = vmax.f32 %v294, 0.0
    %v372 = vmax.f32 %v185, 0.0
    %v373 = vmax.f32 %v187, 0.0
    %v374 = vmax.f32 %v298, 0.0
    %v375 = vmax.f32 %v300, 0.0
    %v376 = vmax.f32 %v189, 0.0
    %v377 = vmax.f32 %v191, 0.0
    %v378 = vmax.f32 %v302, 0.0
    %v379 = vmax.f32 %v304, 0.0
    %v380 = vmax.f32 %v195, 0.0
    %v381 = vmax.f32 %v197, 0.0
    %v382 = vmax.f32 %v308, 0.0
    %v383 = vmax.f32 %v310, 0.0
    %v384 = vmax.f32 %v199, 0.0
    %v385 = vmax.f32 %v201, 0.0
    %v386 = vmax.f32 %v312, 0.0
    %v387 = vmax.f32 %v314, 0.0
    %v388 = vmax.f32 %v205, 0.0
    %v389 = vmax.f32 %v207, 0.0
    %v390 = vmax.f32 %v318, 0.0
    %v391 = vmax.f32 %v320, 0.0
    %v392 = vmax.f32 %v209, 0.0
    %v393 = vmax.f32 %v211, 0.0
    %v394 = vmax.f32 %v322, 0.0
    %v395 = vmax.f32 %v324, 0.0
    %v396 = vmax.f32 %v215, 0.0
    %v397 = vmax.f32 %v217, 0.0
    %v398 = vmax.f32 %v328, 0.0
    %v399 = vmax.f32 %v330, 0.0
    %v400 = vmax.f32 %v219, 0.0
    %v401 = vmax.f32 %v221, 0.0
    %v402 = vmax.f32 %v332, 0.0
    %v403 = vmax.f32 %v334, 0.0
    %v404 = vmax.f32 %v225, 0.0
    %v405 = vmax.f32 %v227, 0.0
    %v406 = vmax.f32 %v338, 0.0
    %v407 = vmax.f32 %v340, 0.0
    %v408 = vmax.f32 %v229, 0.0
    %v409 = vmax.f32 %v231, 0.0
    %v410 = vmax.f32 %v342, 0.0
    %v411 = vmax.f32 %v344, 0.0
    %v412 = vmax.f32 %v235, 0.0
    %v413 = vmax.f32 %v237, 0.0
    %v414 = vmax.f32 %v348, 0.0
    %v415 = vmax.f32 %v350, 0.0
    %v416 = vmax.f32 %v239, 0.0
    %v417 = vmax.f32 %v241, 0.0
    %v418 = vmax.f32 %v352, 0.0
    %v419 = vmax.f32 %v354, 0.0
    %v420 = vpack.c.bf16 %v360, %v356
    %v421 = vpack.c.bf16 %v361, %v357
    %v422 = vpack.c.bf16 %v362, %v358
    %v423 = vpack.c.bf16 %v363, %v359
    %v424 = vpack.c.bf16 %v368, %v364
    %v425 = vpack.c.bf16 %v369, %v365
    %v426 = vpack.c.bf16 %v370, %v366
    %v427 = vpack.c.bf16 %v371, %v367
    %v428 = vpack.c.bf16 %v376, %v372
    %v429 = vpack.c.bf16 %v377, %v373
    %v430 = vpack.c.bf16 %v378, %v374
    %v431 = vpack.c.bf16 %v379, %v375
    %v432 = vpack.c.bf16 %v384, %v380
    %v433 = vpack.c.bf16 %v385, %v381
    %v434 = vpack.c.bf16 %v386, %v382
    %v435 = vpack.c.bf16 %v387, %v383
    %v436 = vpack.c.bf16 %v392, %v388
    %v437 = vpack.c.bf16 %v393, %v389
    %v438 = vpack.c.bf16 %v394, %v390
    %v439 = vpack.c.bf16 %v395, %v391
    %v440 = vpack.c.bf16 %v400, %v396
    %v441 = vpack.c.bf16 %v401, %v397
    %v442 = vpack.c.bf16 %v402, %v398
    %v443 = vpack.c.bf16 %v403, %v399
    %v444 = vpack.c.bf16 %v408, %v404
    %v445 = vpack.c.bf16 %v409, %v405
    %v446 = vpack.c.bf16 %v410, %v406
    %v447 = vpack.c.bf16 %v411, %v407
    %v448 = vpack.c.bf16 %v416, %v412
    %v449 = vpack.c.bf16 %v417, %v413
    %v450 = vpack.c.bf16 %v418, %v414
    %v451 = vpack.c.bf16 %v419, %v415
    %v452 = vld [vmem:[%s2] sm:$0xf]
    %v453 = vld [vmem:[%s2 + $0x4] sm:$0xf]
    %v454 = vld [vmem:[%s2 + $0x8] sm:$0xf]
    %v455 = vld [vmem:[%s2 + $0xc] sm:$0xf]
    %v456 = vld [vmem:[%s2 + $0x10] sm:$0xf]
    %v457 = vld [vmem:[%s2 + $0x14] sm:$0xf]
    %v458 = vld [vmem:[%s2 + $0x18] sm:$0xf]
    %v459 = vld [vmem:[%s2 + $0x1c] sm:$0xf]
    %v460 = vld [vmem:[%s2 + $0x20] sm:$0xf]
    %v461 = vld [vmem:[%s2 + $0x24] sm:$0xf]
    %v462 = vld [vmem:[%s2 + $0x28] sm:$0xf]
    %v463 = vld [vmem:[%s2 + $0x2c] sm:$0xf]
    %v464 = vld [vmem:[%s2 + $0x30] sm:$0xf]
    %v465 = vld [vmem:[%s2 + $0x34] sm:$0xf]
    %v466 = vld [vmem:[%s2 + $0x38] sm:$0xf]
    %v467 = vld [vmem:[%s2 + $0x3c] sm:$0xf]
    %v468 = vld [vmem:[%s3] sm:$0xff]
    %v469 = vld [vmem:[%s3 + $0x8] sm:$0xff]
    %v470 = vld [vmem:[%s3 + $0x10] sm:$0xff]
    %v471 = vld [vmem:[%s3 + $0x18] sm:$0xff]
    %v472 = vld [vmem:[%s3 + $0x20] sm:$0xff]
    %v473 = vld [vmem:[%s3 + $0x28] sm:$0xff]
    %v474 = vld [vmem:[%s3 + $0x30] sm:$0xff]
    %v475 = vld [vmem:[%s3 + $0x38] sm:$0xff]
    %v476 = vld [vmem:[%s3 + $0x40] sm:$0xff]
    %v477 = vld [vmem:[%s3 + $0x48] sm:$0xff]
    %v478 = vld [vmem:[%s3 + $0x50] sm:$0xff]
    %v479 = vld [vmem:[%s3 + $0x58] sm:$0xff]
    %v480 = vld [vmem:[%s3 + $0x60] sm:$0xff]
    %v481 = vld [vmem:[%s3 + $0x68] sm:$0xff]
    %v482 = vld [vmem:[%s3 + $0x70] sm:$0xff]
    %v483 = vld [vmem:[%s3 + $0x78] sm:$0xff]
    %485 = vset.pattern.permute.xlu0 0
    %486 = vperm.xlu0 %485, %v468
    %v487 = vpop.permute.xlu0 %486
    %490 = vset.pattern.permute.xlu0 0
    %491 = vperm.xlu0 %490, %v469
    %v492 = vpop.permute.xlu0 %491
    %495 = vset.pattern.permute.xlu0 0
    %496 = vperm.xlu0 %495, %v470
    %v497 = vpop.permute.xlu0 %496
    %500 = vset.pattern.permute.xlu0 0
    %501 = vperm.xlu0 %500, %v471
    %v502 = vpop.permute.xlu0 %501
    %505 = vset.pattern.permute.xlu0 0
    %506 = vperm.xlu0 %505, %v472
    %v507 = vpop.permute.xlu0 %506
    %510 = vset.pattern.permute.xlu0 0
    %511 = vperm.xlu0 %510, %v473
    %v512 = vpop.permute.xlu0 %511
    %515 = vset.pattern.permute.xlu0 0
    %516 = vperm.xlu0 %515, %v474
    %v517 = vpop.permute.xlu0 %516
    %520 = vset.pattern.permute.xlu0 0
    %521 = vperm.xlu0 %520, %v475
    %v522 = vpop.permute.xlu0 %521
    %525 = vset.pattern.permute.xlu0 0
    %526 = vperm.xlu0 %525, %v476
    %v527 = vpop.permute.xlu0 %526
    %530 = vset.pattern.permute.xlu0 0
    %531 = vperm.xlu0 %530, %v477
    %v532 = vpop.permute.xlu0 %531
    %535 = vset.pattern.permute.xlu0 0
    %536 = vperm.xlu0 %535, %v478
    %v537 = vpop.permute.xlu0 %536
    %540 = vset.pattern.permute.xlu0 0
    %541 = vperm.xlu0 %540, %v479
    %v542 = vpop.permute.xlu0 %541
    %545 = vset.pattern.permute.xlu0 0
    %546 = vperm.xlu0 %545, %v480
    %v547 = vpop.permute.xlu0 %546
    %550 = vset.pattern.permute.xlu0 0
    %551 = vperm.xlu0 %550, %v481
    %v552 = vpop.permute.xlu0 %551
    %555 = vset.pattern.permute.xlu0 0
    %556 = vperm.xlu0 %555, %v482
    %v557 = vpop.permute.xlu0 %556
    %560 = vset.pattern.permute.xlu0 0
    %561 = vperm.xlu0 %560, %v483
    %v562 = vpop.permute.xlu0 %561
    %v580 = vunpack.c.l.b16 %v452
    %v581 = vunpack.c.l.b16 %v453
    %v582 = vunpack.c.l.b16 %v454
    %v583 = vunpack.c.l.b16 %v455
    %v584 = vunpack.c.l.b16 %v456
    %v585 = vunpack.c.l.b16 %v457
    %v586 = vunpack.c.l.b16 %v458
    %v587 = vunpack.c.l.b16 %v459
    %v588 = vunpack.c.l.b16 %v460
    %v589 = vunpack.c.l.b16 %v461
    %v590 = vunpack.c.l.b16 %v462
    %v591 = vunpack.c.l.b16 %v463
    %v592 = vunpack.c.l.b16 %v464
    %v593 = vunpack.c.l.b16 %v465
    %v594 = vunpack.c.l.b16 %v466
    %v595 = vunpack.c.l.b16 %v467
    %v596 = vpack.c.b16 %v581, %v580
    %v597 = vpack.c.b16 %v583, %v582
    %v598 = vpack.c.b16 %v585, %v584
    %v599 = vpack.c.b16 %v587, %v586
    %v600 = vpack.c.b16 %v589, %v588
    %v601 = vpack.c.b16 %v591, %v590
    %v602 = vpack.c.b16 %v593, %v592
    %v603 = vpack.c.b16 %v595, %v594
    %612 = vmatprep.subr.bf16.mxu0 %v421
    %613 = vmatpush1.bf16.msra.mxu0 %v420
    %614 = vmatprep.subr.bf16.mxu0 %v425
    %615 = vmatpush1.bf16.msra.mxu0 %v424
    %616 = vmatprep.subr.bf16.mxu0 %v429
    %617 = vmatpush1.bf16.msra.mxu0 %v428
    %618 = vmatprep.subr.bf16.mxu0 %v433
    %619 = vmatpush1.bf16.msra.mxu0 %v432
    %620 = vmatprep.subr.bf16.mxu0 %v437
    %621 = vmatpush1.bf16.msra.mxu0 %v436
    %622 = vmatprep.subr.bf16.mxu0 %v441
    %623 = vmatpush1.bf16.msra.mxu0 %v440
    %624 = vmatprep.subr.bf16.mxu0 %v445
    %625 = vmatpush1.bf16.msra.mxu0 %v444
    %626 = vmatprep.subr.bf16.mxu0 %v449
    %627 = vmatpush1.bf16.msra.mxu0 %v448
    %628 = vmatprep.subr.bf16.mxu0 0
    %629 = vmatpush1.bf16.msra.mxu0 0
    %630 = vmatprep.subr.bf16.mxu0 0
    %631 = vmatpush1.bf16.msra.mxu0 0
    %632 = vmatprep.subr.bf16.mxu0 0
    %633 = vmatpush1.bf16.msra.mxu0 0
    %634 = vmatprep.subr.bf16.mxu0 0
    %635 = vmatpush1.bf16.msra.mxu0 0
    %636 = vmatprep.subr.bf16.mxu0 0
    %637 = vmatpush1.bf16.msra.mxu0 0
    %638 = vmatprep.subr.bf16.mxu0 0
    %639 = vmatpush1.bf16.msra.mxu0 0
    %640 = vmatprep.subr.bf16.mxu0 0
    %641 = vmatpush1.bf16.msra.mxu0 0
    %642 = vmatprep.subr.bf16.mxu0 0
    %643 = vmatpush1.bf16.msra.mxu0 0
    %644 = vmatprep.mubr.bf16.mxu0 0
    %645 = vmatmul.mubr.bf16.gmra.mrb[0].mxu0 %v596
    %v646 = vpop.f32.mrb[0].mxu0
    %v647 = vadd.f32 %v487, %v646
    %v648 = vpop.f32.mrb[0].mxu0
    %v649 = vadd.f32 %v487, %v648
    %v650 = vpop.f32.mrb[0].mxu0
    %v651 = vadd.f32 %v492, %v650
    %v652 = vpop.f32.mrb[0].mxu0
    %v653 = vadd.f32 %v492, %v652
    %654 = vmatprep.mubr.bf16.mxu0 0
    %655 = vmatmul.mubr.bf16.gmra.mrb[0].mxu0 %v597
    %v656 = vpop.f32.mrb[0].mxu0
    %v657 = vadd.f32 %v497, %v656
    %v658 = vpop.f32.mrb[0].mxu0
    %v659 = vadd.f32 %v497, %v658
    %v660 = vpop.f32.mrb[0].mxu0
    %v661 = vadd.f32 %v502, %v660
    %v662 = vpop.f32.mrb[0].mxu0
    %v663 = vadd.f32 %v502, %v662
    %664 = vmatprep.mubr.bf16.mxu0 0
    %665 = vmatmul.mubr.bf16.gmra.mrb[0].mxu0 %v598
    %v666 = vpop.f32.mrb[0].mxu0
    %v667 = vadd.f32 %v507, %v666
    %v668 = vpop.f32.mrb[0].mxu0
    %v669 = vadd.f32 %v507, %v668
    %v670 = vpop.f32.mrb[0].mxu0
    %v671 = vadd.f32 %v512, %v670
    %v672 = vpop.f32.mrb[0].mxu0
    %v673 = vadd.f32 %v512, %v672
    %674 = vmatprep.mubr.bf16.mxu0 0
    %675 = vmatmul.mubr.bf16.gmra.mrb[0].mxu0 %v599
    %v676 = vpop.f32.mrb[0].mxu0
    %v677 = vadd.f32 %v517, %v676
    %v678 = vpop.f32.mrb[0].mxu0
    %v679 = vadd.f32 %v517, %v678
    %v680 = vpop.f32.mrb[0].mxu0
    %v681 = vadd.f32 %v522, %v680
    %v682 = vpop.f32.mrb[0].mxu0
    %v683 = vadd.f32 %v522, %v682
    %684 = vmatprep.mubr.bf16.mxu0 0
    %685 = vmatmul.mubr.bf16.gmra.mrb[0].mxu0 %v600
    %v686 = vpop.f32.mrb[0].mxu0
    %v687 = vadd.f32 %v527, %v686
    %v688 = vpop.f32.mrb[0].mxu0
    %v689 = vadd.f32 %v527, %v688
    %v690 = vpop.f32.mrb[0].mxu0
    %v691 = vadd.f32 %v532, %v690
    %v692 = vpop.f32.mrb[0].mxu0
    %v693 = vadd.f32 %v532, %v692
    %694 = vmatprep.mubr.bf16.mxu0 0
    %695 = vmatmul.mubr.bf16.gmra.mrb[0].mxu0 %v601
    %v696 = vpop.f32.mrb[0].mxu0
    %v697 = vadd.f32 %v537, %v696
    %v698 = vpop.f32.mrb[0].mxu0
    %v699 = vadd.f32 %v537, %v698
    %v700 = vpop.f32.mrb[0].mxu0
    %v701 = vadd.f32 %v542, %v700
    %v702 = vpop.f32.mrb[0].mxu0
    %v703 = vadd.f32 %v542, %v702
    %704 = vmatprep.mubr.bf16.mxu0 0
    %705 = vmatmul.mubr.bf16.gmra.mrb[0].mxu0 %v602
    %v706 = vpop.f32.mrb[0].mxu0
    %v707 = vadd.f32 %v547, %v706
    %v708 = vpop.f32.mrb[0].mxu0
    %v709 = vadd.f32 %v547, %v708
    %v710 = vpop.f32.mrb[0].mxu0
    %v711 = vadd.f32 %v552, %v710
    %v712 = vpop.f32.mrb[0].mxu0
    %v713 = vadd.f32 %v552, %v712
    %714 = vmatprep.mubr.bf16.mxu0 0
    %715 = vmatmul.mubr.bf16.gmra.mrb[0].mxu0 %v603
    %v716 = vpop.f32.mrb[0].mxu0
    %v717 = vadd.f32 %v557, %v716
    %v718 = vpop.f32.mrb[0].mxu0
    %v719 = vadd.f32 %v557, %v718
    %v720 = vpop.f32.mrb[0].mxu0
    %v721 = vadd.f32 %v562, %v720
    %v722 = vpop.f32.mrb[0].mxu0
    %v723 = vadd.f32 %v562, %v722
    %724 = vdwg.mxu0
    %725 = vmatprep.subr.bf16.mxu0 %v423
    %726 = vmatpush1.bf16.msra.mxu0 %v422
    %727 = vmatprep.subr.bf16.mxu0 %v427
    %728 = vmatpush1.bf16.msra.mxu0 %v426
    %729 = vmatprep.subr.bf16.mxu0 %v431
    %730 = vmatpush1.bf16.msra.mxu0 %v430
    %731 = vmatprep.subr.bf16.mxu0 %v435
    %732 = vmatpush1.bf16.msra.mxu0 %v434
    %733 = vmatprep.subr.bf16.mxu0 %v439
    %734 = vmatpush1.bf16.msra.mxu0 %v438
    %735 = vmatprep.subr.bf16.mxu0 %v443
    %736 = vmatpush1.bf16.msra.mxu0 %v442
    %737 = vmatprep.subr.bf16.mxu0 %v447
    %738 = vmatpush1.bf16.msra.mxu0 %v446
    %739 = vmatprep.subr.bf16.mxu0 %v451
    %740 = vmatpush1.bf16.msra.mxu0 %v450
    %741 = vmatprep.subr.bf16.mxu0 0
    %742 = vmatpush1.bf16.msra.mxu0 0
    %743 = vmatprep.subr.bf16.mxu0 0
    %744 = vmatpush1.bf16.msra.mxu0 0
    %745 = vmatprep.subr.bf16.mxu0 0
    %746 = vmatpush1.bf16.msra.mxu0 0
    %747 = vmatprep.subr.bf16.mxu0 0
    %748 = vmatpush1.bf16.msra.mxu0 0
    %749 = vmatprep.subr.bf16.mxu0 0
    %750 = vmatpush1.bf16.msra.mxu0 0
    %751 = vmatprep.subr.bf16.mxu0 0
    %752 = vmatpush1.bf16.msra.mxu0 0
    %753 = vmatprep.subr.bf16.mxu0 0
    %754 = vmatpush1.bf16.msra.mxu0 0
    %755 = vmatprep.subr.bf16.mxu0 0
    %756 = vmatpush1.bf16.msra.mxu0 0
    %757 = vmatprep.mubr.bf16.mxu0 0
    %758 = vmatmul.mubr.bf16.gmra.mrb[0].mxu0 %v596
    %v759 = vpop.f32.mrb[0].mxu0
    %v760 = vadd.f32 %v487, %v759
    %v761 = vpop.f32.mrb[0].mxu0
    %v762 = vadd.f32 %v487, %v761
    %v763 = vpop.f32.mrb[0].mxu0
    %v764 = vadd.f32 %v492, %v763
    %v765 = vpop.f32.mrb[0].mxu0
    %v766 = vadd.f32 %v492, %v765
    %767 = vmatprep.mubr.bf16.mxu0 0
    %768 = vmatmul.mubr.bf16.gmra.mrb[0].mxu0 %v597
    %v769 = vpop.f32.mrb[0].mxu0
    %v770 = vadd.f32 %v497, %v769
    %v771 = vpop.f32.mrb[0].mxu0
    %v772 = vadd.f32 %v497, %v771
    %v773 = vpop.f32.mrb[0].mxu0
    %v774 = vadd.f32 %v502, %v773
    %v775 = vpop.f32.mrb[0].mxu0
    %v776 = vadd.f32 %v502, %v775
    %777 = vmatprep.mubr.bf16.mxu0 0
    %778 = vmatmul.mubr.bf16.gmra.mrb[0].mxu0 %v598
    %v779 = vpop.f32.mrb[0].mxu0
    %v780 = vadd.f32 %v507, %v779
    %v781 = vpop.f32.mrb[0].mxu0
    %v782 = vadd.f32 %v507, %v781
    %v783 = vpop.f32.mrb[0].mxu0
    %v784 = vadd.f32 %v512, %v783
    %v785 = vpop.f32.mrb[0].mxu0
    %v786 = vadd.f32 %v512, %v785
    %787 = vmatprep.mubr.bf16.mxu0 0
    %788 = vmatmul.mubr.bf16.gmra.mrb[0].mxu0 %v599
    %v789 = vpop.f32.mrb[0].mxu0
    %v790 = vadd.f32 %v517, %v789
    %v791 = vpop.f32.mrb[0].mxu0
    %v792 = vadd.f32 %v517, %v791
    %v793 = vpop.f32.mrb[0].mxu0
    %v794 = vadd.f32 %v522, %v793
    %v795 = vpop.f32.mrb[0].mxu0
    %v796 = vadd.f32 %v522, %v795
    %797 = vmatprep.mubr.bf16.mxu0 0
    %798 = vmatmul.mubr.bf16.gmra.mrb[0].mxu0 %v600
    %v799 = vpop.f32.mrb[0].mxu0
    %v800 = vadd.f32 %v527, %v799
    %v801 = vpop.f32.mrb[0].mxu0
    %v802 = vadd.f32 %v527, %v801
    %v803 = vpop.f32.mrb[0].mxu0
    %v804 = vadd.f32 %v532, %v803
    %v805 = vpop.f32.mrb[0].mxu0
    %v806 = vadd.f32 %v532, %v805
    %807 = vmatprep.mubr.bf16.mxu0 0
    %808 = vmatmul.mubr.bf16.gmra.mrb[0].mxu0 %v601
    %v809 = vpop.f32.mrb[0].mxu0
    %v810 = vadd.f32 %v537, %v809
    %v811 = vpop.f32.mrb[0].mxu0
    %v812 = vadd.f32 %v537, %v811
    %v813 = vpop.f32.mrb[0].mxu0
    %v814 = vadd.f32 %v542, %v813
    %v815 = vpop.f32.mrb[0].mxu0
    %v816 = vadd.f32 %v542, %v815
    %817 = vmatprep.mubr.bf16.mxu0 0
    %818 = vmatmul.mubr.bf16.gmra.mrb[0].mxu0 %v602
    %v819 = vpop.f32.mrb[0].mxu0
    %v820 = vadd.f32 %v547, %v819
    %v821 = vpop.f32.mrb[0].mxu0
    %v822 = vadd.f32 %v547, %v821
    %v823 = vpop.f32.mrb[0].mxu0
    %v824 = vadd.f32 %v552, %v823
    %v825 = vpop.f32.mrb[0].mxu0
    %v826 = vadd.f32 %v552, %v825
    %827 = vmatprep.mubr.bf16.mxu0 0
    %828 = vmatmul.mubr.bf16.gmra.mrb[0].mxu0 %v603
    %v829 = vpop.f32.mrb[0].mxu0
    %v830 = vadd.f32 %v557, %v829
    %v831 = vpop.f32.mrb[0].mxu0
    %v832 = vadd.f32 %v557, %v831
    %v833 = vpop.f32.mrb[0].mxu0
    %v834 = vadd.f32 %v562, %v833
    %v835 = vpop.f32.mrb[0].mxu0
    %v836 = vadd.f32 %v562, %v835
    %837 = vdwg.mxu0
    %v838 = vmax.f32 %v647, 0.0
    %v839 = vmax.f32 %v649, 0.0
    %v840 = vmax.f32 %v760, 0.0
    %v841 = vmax.f32 %v762, 0.0
    %v842 = vmax.f32 %v651, 0.0
    %v843 = vmax.f32 %v653, 0.0
    %v844 = vmax.f32 %v764, 0.0
    %v845 = vmax.f32 %v766, 0.0
    %v846 = vmax.f32 %v657, 0.0
    %v847 = vmax.f32 %v659, 0.0
    %v848 = vmax.f32 %v770, 0.0
    %v849 = vmax.f32 %v772, 0.0
    %v850 = vmax.f32 %v661, 0.0
    %v851 = vmax.f32 %v663, 0.0
    %v852 = vmax.f32 %v774, 0.0
    %v853 = vmax.f32 %v776, 0.0
    %v854 = vmax.f32 %v667, 0.0
    %v855 = vmax.f32 %v669, 0.0
    %v856 = vmax.f32 %v780, 0.0
    %v857 = vmax.f32 %v782, 0.0
    %v858 = vmax.f32 %v671, 0.0
    %v859 = vmax.f32 %v673, 0.0
    %v860 = vmax.f32 %v784, 0.0
    %v861 = vmax.f32 %v786, 0.0
    %v862 = vmax.f32 %v677, 0.0
    %v863 = vmax.f32 %v679, 0.0
    %v864 = vmax.f32 %v790, 0.0
    %v865 = vmax.f32 %v792, 0.0
    %v866 = vmax.f32 %v681, 0.0
    %v867 = vmax.f32 %v683, 0.0
    %v868 = vmax.f32 %v794, 0.0
    %v869 = vmax.f32 %v796, 0.0
    %v870 = vmax.f32 %v687, 0.0
    %v871 = vmax.f32 %v689, 0.0
    %v872 = vmax.f32 %v800, 0.0
    %v873 = vmax.f32 %v802, 0.0
    %v874 = vmax.f32 %v691, 0.0
    %v875 = vmax.f32 %v693, 0.0
    %v876 = vmax.f32 %v804, 0.0
    %v877 = vmax.f32 %v806, 0.0
    %v878 = vmax.f32 %v697, 0.0
    %v879 = vmax.f32 %v699, 0.0
    %v880 = vmax.f32 %v810, 0.0
    %v881 = vmax.f32 %v812, 0.0
    %v882 = vmax.f32 %v701, 0.0
    %v883 = vmax.f32 %v703, 0.0
    %v884 = vmax.f32 %v814, 0.0
    %v885 = vmax.f32 %v816, 0.0
    %v886 = vmax.f32 %v707, 0.0
    %v887 = vmax.f32 %v709, 0.0
    %v888 = vmax.f32 %v820, 0.0
    %v889 = vmax.f32 %v822, 0.0
    %v890 = vmax.f32 %v711, 0.0
    %v891 = vmax.f32 %v713, 0.0
    %v892 = vmax.f32 %v824, 0.0
    %v893 = vmax.f32 %v826, 0.0
    %v894 = vmax.f32 %v717, 0.0
    %v895 = vmax.f32 %v719, 0.0
    %v896 = vmax.f32 %v830, 0.0
    %v897 = vmax.f32 %v832, 0.0
    %v898 = vmax.f32 %v721, 0.0
    %v899 = vmax.f32 %v723, 0.0
    %v900 = vmax.f32 %v834, 0.0
    %v901 = vmax.f32 %v836, 0.0
    %v902 = vpack.c.bf16 %v842, %v838
    %v903 = vpack.c.bf16 %v843, %v839
    %v904 = vpack.c.bf16 %v844, %v840
    %v905 = vpack.c.bf16 %v845, %v841
    %v906 = vpack.c.bf16 %v850, %v846
    %v907 = vpack.c.bf16 %v851, %v847
    %v908 = vpack.c.bf16 %v852, %v848
    %v909 = vpack.c.bf16 %v853, %v849
    %v910 = vpack.c.bf16 %v858, %v854
    %v911 = vpack.c.bf16 %v859, %v855
    %v912 = vpack.c.bf16 %v860, %v856
    %v913 = vpack.c.bf16 %v861, %v857
    %v914 = vpack.c.bf16 %v866, %v862
    %v915 = vpack.c.bf16 %v867, %v863
    %v916 = vpack.c.bf16 %v868, %v864
    %v917 = vpack.c.bf16 %v869, %v865
    %v918 = vpack.c.bf16 %v874, %v870
    %v919 = vpack.c.bf16 %v875, %v871
    %v920 = vpack.c.bf16 %v876, %v872
    %v921 = vpack.c.bf16 %v877, %v873
    %v922 = vpack.c.bf16 %v882, %v878
    %v923 = vpack.c.bf16 %v883, %v879
    %v924 = vpack.c.bf16 %v884, %v880
    %v925 = vpack.c.bf16 %v885, %v881
    %v926 = vpack.c.bf16 %v890, %v886
    %v927 = vpack.c.bf16 %v891, %v887
    %v928 = vpack.c.bf16 %v892, %v888
    %v929 = vpack.c.bf16 %v893, %v889
    %v930 = vpack.c.bf16 %v898, %v894
    %v931 = vpack.c.bf16 %v899, %v895
    %v932 = vpack.c.bf16 %v900, %v896
    %v933 = vpack.c.bf16 %v901, %v897
    %v934 = vld [vmem:[%s4] sm:$0xf]
    %v935 = vld [vmem:[%s4 + $0x4] sm:$0xf]
    %v936 = vld [vmem:[%s4 + $0x8] sm:$0xf]
    %v937 = vld [vmem:[%s4 + $0xc] sm:$0xf]
    %v938 = vld [vmem:[%s4 + $0x10] sm:$0xf]
    %v939 = vld [vmem:[%s4 + $0x14] sm:$0xf]
    %v940 = vld [vmem:[%s4 + $0x18] sm:$0xf]
    %v941 = vld [vmem:[%s4 + $0x1c] sm:$0xf]
    %v942 = vld [vmem:[%s4 + $0x20] sm:$0xf]
    %v943 = vld [vmem:[%s4 + $0x24] sm:$0xf]
    %v944 = vld [vmem:[%s4 + $0x28] sm:$0xf]
    %v945 = vld [vmem:[%s4 + $0x2c] sm:$0xf]
    %v946 = vld [vmem:[%s4 + $0x30] sm:$0xf]
    %v947 = vld [vmem:[%s4 + $0x34] sm:$0xf]
    %v948 = vld [vmem:[%s4 + $0x38] sm:$0xf]
    %v949 = vld [vmem:[%s4 + $0x3c] sm:$0xf]
    %v950 = vld [vmem:[%s4 + $0x40] sm:$0xf]
    %v951 = vld [vmem:[%s4 + $0x44] sm:$0xf]
    %v952 = vld [vmem:[%s4 + $0x48] sm:$0xf]
    %v953 = vld [vmem:[%s4 + $0x4c] sm:$0xf]
    %v954 = vld [vmem:[%s4 + $0x50] sm:$0xf]
    %v955 = vld [vmem:[%s4 + $0x54] sm:$0xf]
    %v956 = vld [vmem:[%s4 + $0x58] sm:$0xf]
    %v957 = vld [vmem:[%s4 + $0x5c] sm:$0xf]
    %v958 = vld [vmem:[%s4 + $0x60] sm:$0xf]
    %v959 = vld [vmem:[%s4 + $0x64] sm:$0xf]
    %v960 = vld [vmem:[%s4 + $0x68] sm:$0xf]
    %v961 = vld [vmem:[%s4 + $0x6c] sm:$0xf]
    %v962 = vld [vmem:[%s4 + $0x70] sm:$0xf]
    %v963 = vld [vmem:[%s4 + $0x74] sm:$0xf]
    %v964 = vld [vmem:[%s4 + $0x78] sm:$0xf]
    %v965 = vld [vmem:[%s4 + $0x7c] sm:$0xf]
    %v966 = vld [vmem:[%s5] sm:$0xff]
    %v967 = vld [vmem:[%s5 + $0x8] sm:$0xff]
    %v968 = vld [vmem:[%s5 + $0x10] sm:$0xff]
    %v969 = vld [vmem:[%s5 + $0x18] sm:$0xff]
    %v970 = vld [vmem:[%s5 + $0x20] sm:$0xff]
    %v971 = vld [vmem:[%s5 + $0x28] sm:$0xff]
    %v972 = vld [vmem:[%s5 + $0x30] sm:$0xff]
    %v973 = vld [vmem:[%s5 + $0x38] sm:$0xff]
    %v974 = vld [vmem:[%s5 + $0x40] sm:$0xff]
    %v975 = vld [vmem:[%s5 + $0x48] sm:$0xff]
    %v976 = vld [vmem:[%s5 + $0x50] sm:$0xff]
    %v977 = vld [vmem:[%s5 + $0x58] sm:$0xff]
    %v978 = vld [vmem:[%s5 + $0x60] sm:$0xff]
    %v979 = vld [vmem:[%s5 + $0x68] sm:$0xff]
    %v980 = vld [vmem:[%s5 + $0x70] sm:$0xff]
    %v981 = vld [vmem:[%s5 + $0x78] sm:$0xff]
    %v982 = vld [vmem:[%s5 + $0x80] sm:$0xff]
    %v983 = vld [vmem:[%s5 + $0x88] sm:$0xff]
    %v984 = vld [vmem:[%s5 + $0x90] sm:$0xff]
    %v985 = vld [vmem:[%s5 + $0x98] sm:$0xff]
    %v986 = vld [vmem:[%s5 + $0xa0] sm:$0xff]
    %v987 = vld [vmem:[%s5 + $0xa8] sm:$0xff]
    %v988 = vld [vmem:[%s5 + $0xb0] sm:$0xff]
    %v989 = vld [vmem:[%s5 + $0xb8] sm:$0xff]
    %v990 = vld [vmem:[%s5 + $0xc0] sm:$0xff]
    %v991 = vld [vmem:[%s5 + $0xc8] sm:$0xff]
    %v992 = vld [vmem:[%s5 + $0xd0] sm:$0xff]
    %v993 = vld [vmem:[%s5 + $0xd8] sm:$0xff]
    %v994 = vld [vmem:[%s5 + $0xe0] sm:$0xff]
    %v995 = vld [vmem:[%s5 + $0xe8] sm:$0xff]
    %v996 = vld [vmem:[%s5 + $0xf0] sm:$0xff]
    %v997 = vld [vmem:[%s5 + $0xf8] sm:$0xff]
    %999 = vset.pattern.permute.xlu0 0
    %1000 = vperm.xlu0 %999, %v966
    %v1001 = vpop.permute.xlu0 %1000
    %1004 = vset.pattern.permute.xlu0 0
    %1005 = vperm.xlu0 %1004, %v967
    %v1006 = vpop.permute.xlu0 %1005
    %1009 = vset.pattern.permute.xlu0 0
    %1010 = vperm.xlu0 %1009, %v968
    %v1011 = vpop.permute.xlu0 %1010
    %1014 = vset.pattern.permute.xlu0 0
    %1015 = vperm.xlu0 %1014, %v969
    %v1016 = vpop.permute.xlu0 %1015
    %1019 = vset.pattern.permute.xlu0 0
    %1020 = vperm.xlu0 %1019, %v970
    %v1021 = vpop.permute.xlu0 %1020
    %1024 = vset.pattern.permute.xlu0 0
    %1025 = vperm.xlu0 %1024, %v971
    %v1026 = vpop.permute.xlu0 %1025
    %1029 = vset.pattern.permute.xlu0 0
    %1030 = vperm.xlu0 %1029, %v972
    %v1031 = vpop.permute.xlu0 %1030
    %1034 = vset.pattern.permute.xlu0 0
    %1035 = vperm.xlu0 %1034, %v973
    %v1036 = vpop.permute.xlu0 %1035
    %1039 = vset.pattern.permute.xlu0 0
    %1040 = vperm.xlu0 %1039, %v974
    %v1041 = vpop.permute.xlu0 %1040
    %1044 = vset.pattern.permute.xlu0 0
    %1045 = vperm.xlu0 %1044, %v975
    %v1046 = vpop.permute.xlu0 %1045
    %1049 = vset.pattern.permute.xlu0 0
    %1050 = vperm.xlu0 %1049, %v976
    %v1051 = vpop.permute.xlu0 %1050
    %1054 = vset.pattern.permute.xlu0 0
    %1055 = vperm.xlu0 %1054, %v977
    %v1056 = vpop.permute.xlu0 %1055
    %1059 = vset.pattern.permute.xlu0 0
    %1060 = vperm.xlu0 %1059, %v978
    %v1061 = vpop.permute.xlu0 %1060
    %1064 = vset.pattern.permute.xlu0 0
    %1065 = vperm.xlu0 %1064, %v979
    %v1066 = vpop.permute.xlu0 %1065
    %1069 = vset.pattern.permute.xlu0 0
    %1070 = vperm.xlu0 %1069, %v980
    %v1071 = vpop.permute.xlu0 %1070
    %1074 = vset.pattern.permute.xlu0 0
    %1075 = vperm.xlu0 %1074, %v981
    %v1076 = vpop.permute.xlu0 %1075
    %1079 = vset.pattern.permute.xlu0 0
    %1080 = vperm.xlu0 %1079, %v982
    %v1081 = vpop.permute.xlu0 %1080
    %1084 = vset.pattern.permute.xlu0 0
    %1085 = vperm.xlu0 %1084, %v983
    %v1086 = vpop.permute.xlu0 %1085
    %1089 = vset.pattern.permute.xlu0 0
    %1090 = vperm.xlu0 %1089, %v984
    %v1091 = vpop.permute.xlu0 %1090
    %1094 = vset.pattern.permute.xlu0 0
    %1095 = vperm.xlu0 %1094, %v985
    %v1096 = vpop.permute.xlu0 %1095
    %1099 = vset.pattern.permute.xlu0 0
    %1100 = vperm.xlu0 %1099, %v986
    %v1101 = vpop.permute.xlu0 %1100
    %1104 = vset.pattern.permute.xlu0 0
    %1105 = vperm.xlu0 %1104, %v987
    %v1106 = vpop.permute.xlu0 %1105
    %1109 = vset.pattern.permute.xlu0 0
    %1110 = vperm.xlu0 %1109, %v988
    %v1111 = vpop.permute.xlu0 %1110
    %1114 = vset.pattern.permute.xlu0 0
    %1115 = vperm.xlu0 %1114, %v989
    %v1116 = vpop.permute.xlu0 %1115
    %1119 = vset.pattern.permute.xlu0 0
    %1120 = vperm.xlu0 %1119, %v990
    %v1121 = vpop.permute.xlu0 %1120
    %1124 = vset.pattern.permute.xlu0 0
    %1125 = vperm.xlu0 %1124, %v991
    %v1126 = vpop.permute.xlu0 %1125
    %1129 = vset.pattern.permute.xlu0 0
    %1130 = vperm.xlu0 %1129, %v992
    %v1131 = vpop.permute.xlu0 %1130
    %1134 = vset.pattern.permute.xlu0 0
    %1135 = vperm.xlu0 %1134, %v993
    %v1136 = vpop.permute.xlu0 %1135
    %1139 = vset.pattern.permute.xlu0 0
    %1140 = vperm.xlu0 %1139, %v994
    %v1141 = vpop.permute.xlu0 %1140
    %1144 = vset.pattern.permute.xlu0 0
    %1145 = vperm.xlu0 %1144, %v995
    %v1146 = vpop.permute.xlu0 %1145
    %1149 = vset.pattern.permute.xlu0 0
    %1150 = vperm.xlu0 %1149, %v996
    %v1151 = vpop.permute.xlu0 %1150
    %1154 = vset.pattern.permute.xlu0 0
    %1155 = vperm.xlu0 %1154, %v997
    %v1156 = vpop.permute.xlu0 %1155
    %v1190 = vunpack.c.l.b16 %v934
    %v1191 = vunpack.c.l.b16 %v935
    %v1192 = vunpack.c.l.b16 %v936
    %v1193 = vunpack.c.l.b16 %v937
    %v1194 = vunpack.c.l.b16 %v938
    %v1195 = vunpack.c.l.b16 %v939
    %v1196 = vunpack.c.l.b16 %v940
    %v1197 = vunpack.c.l.b16 %v941
    %v1198 = vunpack.c.l.b16 %v942
    %v1199 = vunpack.c.l.b16 %v943
    %v1200 = vunpack.c.l.b16 %v944
    %v1201 = vunpack.c.l.b16 %v945
    %v1202 = vunpack.c.l.b16 %v946
    %v1203 = vunpack.c.l.b16 %v947
    %v1204 = vunpack.c.l.b16 %v948
    %v1205 = vunpack.c.l.b16 %v949
    %v1206 = vunpack.c.l.b16 %v950
    %v1207 = vunpack.c.l.b16 %v951
    %v1208 = vunpack.c.l.b16 %v952
    %v1209 = vunpack.c.l.b16 %v953
    %v1210 = vunpack.c.l.b16 %v954
    %v1211 = vunpack.c.l.b16 %v955
    %v1212 = vunpack.c.l.b16 %v956
    %v1213 = vunpack.c.l.b16 %v957
    %v1214 = vunpack.c.l.b16 %v958
    %v1215 = vunpack.c.l.b16 %v959
    %v1216 = vunpack.c.l.b16 %v960
    %v1217 = vunpack.c.l.b16 %v961
    %v1218 = vunpack.c.l.b16 %v962
    %v1219 = vunpack.c.l.b16 %v963
    %v1220 = vunpack.c.l.b16 %v964
    %v1221 = vunpack.c.l.b16 %v965
    %v1222 = vpack.c.b16 %v1191, %v1190
    %v1223 = vpack.c.b16 %v1193, %v1192
    %v1224 = vpack.c.b16 %v1195, %v1194
    %v1225 = vpack.c.b16 %v1197, %v1196
    %v1226 = vpack.c.b16 %v1199, %v1198
    %v1227 = vpack.c.b16 %v1201, %v1200
    %v1228 = vpack.c.b16 %v1203, %v1202
    %v1229 = vpack.c.b16 %v1205, %v1204
    %v1230 = vpack.c.b16 %v1207, %v1206
    %v1231 = vpack.c.b16 %v1209, %v1208
    %v1232 = vpack.c.b16 %v1211, %v1210
    %v1233 = vpack.c.b16 %v1213, %v1212
    %v1234 = vpack.c.b16 %v1215, %v1214
    %v1235 = vpack.c.b16 %v1217, %v1216
    %v1236 = vpack.c.b16 %v1219, %v1218
    %v1237 = vpack.c.b16 %v1221, %v1220
    %1254 = vmatprep.subr.bf16.mxu0 %v903
    %1255 = vmatpush1.bf16.msra.mxu0 %v902
    %1256 = vmatprep.subr.bf16.mxu0 %v907
    %1257 = vmatpush1.bf16.msra.mxu0 %v906
    %1258 = vmatprep.subr.bf16.mxu0 %v911
    %1259 = vmatpush1.bf16.msra.mxu0 %v910
    %1260 = vmatprep.subr.bf16.mxu0 %v915
    %1261 = vmatpush1.bf16.msra.mxu0 %v914
    %1262 = vmatprep.subr.bf16.mxu0 %v919
    %1263 = vmatpush1.bf16.msra.mxu0 %v918
    %1264 = vmatprep.subr.bf16.mxu0 %v923
    %1265 = vmatpush1.bf16.msra.mxu0 %v922
    %1266 = vmatprep.subr.bf16.mxu0 %v927
    %1267 = vmatpush1.bf16.msra.mxu0 %v926
    %1268 = vmatprep.subr.bf16.mxu0 %v931
    %1269 = vmatpush1.bf16.msra.mxu0 %v930
    %1270 = vmatprep.subr.bf16.mxu0 0
    %1271 = vmatpush1.bf16.msra.mxu0 0
    %1272 = vmatprep.subr.bf16.mxu0 0
    %1273 = vmatpush1.bf16.msra.mxu0 0
    %1274 = vmatprep.subr.bf16.mxu0 0
    %1275 = vmatpush1.bf16.msra.mxu0 0
    %1276 = vmatprep.subr.bf16.mxu0 0
    %1277 = vmatpush1.bf16.msra.mxu0 0
    %1278 = vmatprep.subr.bf16.mxu0 0
    %1279 = vmatpush1.bf16.msra.mxu0 0
    %1280 = vmatprep.subr.bf16.mxu0 0
    %1281 = vmatpush1.bf16.msra.mxu0 0
    %1282 = vmatprep.subr.bf16.mxu0 0
    %1283 = vmatpush1.bf16.msra.mxu0 0
    %1284 = vmatprep.subr.bf16.mxu0 0
    %1285 = vmatpush1.bf16.msra.mxu0 0
    %1286 = vmatprep.mubr.bf16.mxu0 0
    %1287 = vmatmul.mubr.bf16.gmra.mrb[0].mxu0 %v1222
    %v1288 = vpop.f32.mrb[0].mxu0
    %v1289 = vadd.f32 %v1001, %v1288
    %v1290 = vpop.f32.mrb[0].mxu0
    %v1291 = vadd.f32 %v1001, %v1290
    %v1292 = vpop.f32.mrb[0].mxu0
    %v1293 = vadd.f32 %v1006, %v1292
    %v1294 = vpop.f32.mrb[0].mxu0
    %v1295 = vadd.f32 %v1006, %v1294
    %1296 = vmatprep.mubr.bf16.mxu0 0
    %1297 = vmatmul.mubr.bf16.gmra.mrb[0].mxu0 %v1223
    %v1298 = vpop.f32.mrb[0].mxu0
    %v1299 = vadd.f32 %v1011, %v1298
    %v1300 = vpop.f32.mrb[0].mxu0
    %v1301 = vadd.f32 %v1011, %v1300
    %v1302 = vpop.f32.mrb[0].mxu0
    %v1303 = vadd.f32 %v1016, %v1302
    %v1304 = vpop.f32.mrb[0].mxu0
    %v1305 = vadd.f32 %v1016, %v1304
    %1306 = vmatprep.mubr.bf16.mxu0 0
    %1307 = vmatmul.mubr.bf16.gmra.mrb[0].mxu0 %v1224
    %v1308 = vpop.f32.mrb[0].mxu0
    %v1309 = vadd.f32 %v1021, %v1308
    %v1310 = vpop.f32.mrb[0].mxu0
    %v1311 = vadd.f32 %v1021, %v1310
    %v1312 = vpop.f32.mrb[0].mxu0
    %v1313 = vadd.f32 %v1026, %v1312
    %v1314 = vpop.f32.mrb[0].mxu0
    %v1315 = vadd.f32 %v1026, %v1314
    %1316 = vmatprep.mubr.bf16.mxu0 0
    %1317 = vmatmul.mubr.bf16.gmra.mrb[0].mxu0 %v1225
    %v1318 = vpop.f32.mrb[0].mxu0
    %v1319 = vadd.f32 %v1031, %v1318
    %v1320 = vpop.f32.mrb[0].mxu0
    %v1321 = vadd.f32 %v1031, %v1320
    %v1322 = vpop.f32.mrb[0].mxu0
    %v1323 = vadd.f32 %v1036, %v1322
    %v1324 = vpop.f32.mrb[0].mxu0
    %v1325 = vadd.f32 %v1036, %v1324
    %1326 = vmatprep.mubr.bf16.mxu0 0
    %1327 = vmatmul.mubr.bf16.gmra.mrb[0].mxu0 %v1226
    %v1328 = vpop.f32.mrb[0].mxu0
    %v1329 = vadd.f32 %v1041, %v1328
    %v1330 = vpop.f32.mrb[0].mxu0
    %v1331 = vadd.f32 %v1041, %v1330
    %v1332 = vpop.f32.mrb[0].mxu0
    %v1333 = vadd.f32 %v1046, %v1332
    %v1334 = vpop.f32.mrb[0].mxu0
    %v1335 = vadd.f32 %v1046, %v1334
    %1336 = vmatprep.mubr.bf16.mxu0 0
    %1337 = vmatmul.mubr.bf16.gmra.mrb[0].mxu0 %v1227
    %v1338 = vpop.f32.mrb[0].mxu0
    %v1339 = vadd.f32 %v1051, %v1338
    %v1340 = vpop.f32.mrb[0].mxu0
    %v1341 = vadd.f32 %v1051, %v1340
    %v1342 = vpop.f32.mrb[0].mxu0
    %v1343 = vadd.f32 %v1056, %v1342
    %v1344 = vpop.f32.mrb[0].mxu0
    %v1345 = vadd.f32 %v1056, %v1344
    %1346 = vmatprep.mubr.bf16.mxu0 0
    %1347 = vmatmul.mubr.bf16.gmra.mrb[0].mxu0 %v1228
    %v1348 = vpop.f32.mrb[0].mxu0
    %v1349 = vadd.f32 %v1061, %v1348
    %v1350 = vpop.f32.mrb[0].mxu0
    %v1351 = vadd.f32 %v1061, %v1350
    %v1352 = vpop.f32.mrb[0].mxu0
    %v1353 = vadd.f32 %v1066, %v1352
    %v1354 = vpop.f32.mrb[0].mxu0
    %v1355 = vadd.f32 %v1066, %v1354
    %1356 = vmatprep.mubr.bf16.mxu0 0
    %1357 = vmatmul.mubr.bf16.gmra.mrb[0].mxu0 %v1229
    %v1358 = vpop.f32.mrb[0].mxu0
    %v1359 = vadd.f32 %v1071, %v1358
    %v1360 = vpop.f32.mrb[0].mxu0
    %v1361 = vadd.f32 %v1071, %v1360
    %v1362 = vpop.f32.mrb[0].mxu0
    %v1363 = vadd.f32 %v1076, %v1362
    %v1364 = vpop.f32.mrb[0].mxu0
    %v1365 = vadd.f32 %v1076, %v1364
    %1366 = vmatprep.mubr.bf16.mxu0 0
    %1367 = vmatmul.mubr.bf16.gmra.mrb[0].mxu0 %v1230
    %v1368 = vpop.f32.mrb[0].mxu0
    %v1369 = vadd.f32 %v1081, %v1368
    %v1370 = vpop.f32.mrb[0].mxu0
    %v1371 = vadd.f32 %v1081, %v1370
    %v1372 = vpop.f32.mrb[0].mxu0
    %v1373 = vadd.f32 %v1086, %v1372
    %v1374 = vpop.f32.mrb[0].mxu0
    %v1375 = vadd.f32 %v1086, %v1374
    %1376 = vmatprep.mubr.bf16.mxu0 0
    %1377 = vmatmul.mubr.bf16.gmra.mrb[0].mxu0 %v1231
    %v1378 = vpop.f32.mrb[0].mxu0
    %v1379 = vadd.f32 %v1091, %v1378
    %v1380 = vpop.f32.mrb[0].mxu0
    %v1381 = vadd.f32 %v1091, %v1380
    %v1382 = vpop.f32.mrb[0].mxu0
    %v1383 = vadd.f32 %v1096, %v1382
    %v1384 = vpop.f32.mrb[0].mxu0
    %v1385 = vadd.f32 %v1096, %v1384
    %1386 = vmatprep.mubr.bf16.mxu0 0
    %1387 = vmatmul.mubr.bf16.gmra.mrb[0].mxu0 %v1232
    %v1388 = vpop.f32.mrb[0].mxu0
    %v1389 = vadd.f32 %v1101, %v1388
    %v1390 = vpop.f32.mrb[0].mxu0
    %v1391 = vadd.f32 %v1101, %v1390
    %v1392 = vpop.f32.mrb[0].mxu0
    %v1393 = vadd.f32 %v1106, %v1392
    %v1394 = vpop.f32.mrb[0].mxu0
    %v1395 = vadd.f32 %v1106, %v1394
    %1396 = vmatprep.mubr.bf16.mxu0 0
    %1397 = vmatmul.mubr.bf16.gmra.mrb[0].mxu0 %v1233
    %v1398 = vpop.f32.mrb[0].mxu0
    %v1399 = vadd.f32 %v1111, %v1398
    %v1400 = vpop.f32.mrb[0].mxu0
    %v1401 = vadd.f32 %v1111, %v1400
    %v1402 = vpop.f32.mrb[0].mxu0
    %v1403 = vadd.f32 %v1116, %v1402
    %v1404 = vpop.f32.mrb[0].mxu0
    %v1405 = vadd.f32 %v1116, %v1404
    %1406 = vmatprep.mubr.bf16.mxu0 0
    %1407 = vmatmul.mubr.bf16.gmra.mrb[0].mxu0 %v1234
    %v1408 = vpop.f32.mrb[0].mxu0
    %v1409 = vadd.f32 %v1121, %v1408
    %v1410 = vpop.f32.mrb[0].mxu0
    %v1411 = vadd.f32 %v1121, %v1410
    %v1412 = vpop.f32.mrb[0].mxu0
    %v1413 = vadd.f32 %v1126, %v1412
    %v1414 = vpop.f32.mrb[0].mxu0
    %v1415 = vadd.f32 %v1126, %v1414
    %1416 = vmatprep.mubr.bf16.mxu0 0
    %1417 = vmatmul.mubr.bf16.gmra.mrb[0].mxu0 %v1235
    %v1418 = vpop.f32.mrb[0].mxu0
    %v1419 = vadd.f32 %v1131, %v1418
    %v1420 = vpop.f32.mrb[0].mxu0
    %v1421 = vadd.f32 %v1131, %v1420
    %v1422 = vpop.f32.mrb[0].mxu0
    %v1423 = vadd.f32 %v1136, %v1422
    %v1424 = vpop.f32.mrb[0].mxu0
    %v1425 = vadd.f32 %v1136, %v1424
    %1426 = vmatprep.mubr.bf16.mxu0 0
    %1427 = vmatmul.mubr.bf16.gmra.mrb[0].mxu0 %v1236
    %v1428 = vpop.f32.mrb[0].mxu0
    %v1429 = vadd.f32 %v1141, %v1428
    %v1430 = vpop.f32.mrb[0].mxu0
    %v1431 = vadd.f32 %v1141, %v1430
    %v1432 = vpop.f32.mrb[0].mxu0
    %v1433 = vadd.f32 %v1146, %v1432
    %v1434 = vpop.f32.mrb[0].mxu0
    %v1435 = vadd.f32 %v1146, %v1434
    %1436 = vmatprep.mubr.bf16.mxu0 0
    %1437 = vmatmul.mubr.bf16.gmra.mrb[0].mxu0 %v1237
    %v1438 = vpop.f32.mrb[0].mxu0
    %v1439 = vadd.f32 %v1151, %v1438
    %v1440 = vpop.f32.mrb[0].mxu0
    %v1441 = vadd.f32 %v1151, %v1440
    %v1442 = vpop.f32.mrb[0].mxu0
    %v1443 = vadd.f32 %v1156, %v1442
    %v1444 = vpop.f32.mrb[0].mxu0
    %v1445 = vadd.f32 %v1156, %v1444
    %1446 = vdwg.mxu0
    %1447 = vmatprep.subr.bf16.mxu0 %v905
    %1448 = vmatpush1.bf16.msra.mxu0 %v904
    %1449 = vmatprep.subr.bf16.mxu0 %v909
    %1450 = vmatpush1.bf16.msra.mxu0 %v908
    %1451 = vmatprep.subr.bf16.mxu0 %v913
    %1452 = vmatpush1.bf16.msra.mxu0 %v912
    %1453 = vmatprep.subr.bf16.mxu0 %v917
    %1454 = vmatpush1.bf16.msra.mxu0 %v916
    %1455 = vmatprep.subr.bf16.mxu0 %v921
    %1456 = vmatpush1.bf16.msra.mxu0 %v920
    %1457 = vmatprep.subr.bf16.mxu0 %v925
    %1458 = vmatpush1.bf16.msra.mxu0 %v924
    %1459 = vmatprep.subr.bf16.mxu0 %v929
    %1460 = vmatpush1.bf16.msra.mxu0 %v928
    %1461 = vmatprep.subr.bf16.mxu0 %v933
    %1462 = vmatpush1.bf16.msra.mxu0 %v932
    %1463 = vmatprep.subr.bf16.mxu0 0
    %1464 = vmatpush1.bf16.msra.mxu0 0
    %1465 = vmatprep.subr.bf16.mxu0 0
    %1466 = vmatpush1.bf16.msra.mxu0 0
    %1467 = vmatprep.subr.bf16.mxu0 0
    %1468 = vmatpush1.bf16.msra.mxu0 0
    %1469 = vmatprep.subr.bf16.mxu0 0
    %1470 = vmatpush1.bf16.msra.mxu0 0
    %1471 = vmatprep.subr.bf16.mxu0 0
    %1472 = vmatpush1.bf16.msra.mxu0 0
    %1473 = vmatprep.subr.bf16.mxu0 0
    %1474 = vmatpush1.bf16.msra.mxu0 0
    %1475 = vmatprep.subr.bf16.mxu0 0
    %1476 = vmatpush1.bf16.msra.mxu0 0
    %1477 = vmatprep.subr.bf16.mxu0 0
    %1478 = vmatpush1.bf16.msra.mxu0 0
    %1479 = vmatprep.mubr.bf16.mxu0 0
    %1480 = vmatmul.mubr.bf16.gmra.mrb[0].mxu0 %v1222
    %v1481 = vpop.f32.mrb[0].mxu0
    %v1482 = vadd.f32 %v1001, %v1481
    %v1483 = vpop.f32.mrb[0].mxu0
    %v1484 = vadd.f32 %v1001, %v1483
    %v1485 = vpop.f32.mrb[0].mxu0
    %v1486 = vadd.f32 %v1006, %v1485
    %v1487 = vpop.f32.mrb[0].mxu0
    %v1488 = vadd.f32 %v1006, %v1487
    %1489 = vmatprep.mubr.bf16.mxu0 0
    %1490 = vmatmul.mubr.bf16.gmra.mrb[0].mxu0 %v1223
    %v1491 = vpop.f32.mrb[0].mxu0
    %v1492 = vadd.f32 %v1011, %v1491
    %v1493 = vpop.f32.mrb[0].mxu0
    %v1494 = vadd.f32 %v1011, %v1493
    %v1495 = vpop.f32.mrb[0].mxu0
    %v1496 = vadd.f32 %v1016, %v1495
    %v1497 = vpop.f32.mrb[0].mxu0
    %v1498 = vadd.f32 %v1016, %v1497
    %1499 = vmatprep.mubr.bf16.mxu0 0
    %1500 = vmatmul.mubr.bf16.gmra.mrb[0].mxu0 %v1224
    %v1501 = vpop.f32.mrb[0].mxu0
    %v1502 = vadd.f32 %v1021, %v1501
    %v1503 = vpop.f32.mrb[0].mxu0
    %v1504 = vadd.f32 %v1021, %v1503
    %v1505 = vpop.f32.mrb[0].mxu0
    %v1506 = vadd.f32 %v1026, %v1505
    %v1507 = vpop.f32.mrb[0].mxu0
    %v1508 = vadd.f32 %v1026, %v1507
    %1509 = vmatprep.mubr.bf16.mxu0 0
    %1510 = vmatmul.mubr.bf16.gmra.mrb[0].mxu0 %v1225
    %v1511 = vpop.f32.mrb[0].mxu0
    %v1512 = vadd.f32 %v1031, %v1511
    %v1513 = vpop.f32.mrb[0].mxu0
    %v1514 = vadd.f32 %v1031, %v1513
    %v1515 = vpop.f32.mrb[0].mxu0
    %v1516 = vadd.f32 %v1036, %v1515
    %v1517 = vpop.f32.mrb[0].mxu0
    %v1518 = vadd.f32 %v1036, %v1517
    %1519 = vmatprep.mubr.bf16.mxu0 0
    %1520 = vmatmul.mubr.bf16.gmra.mrb[0].mxu0 %v1226
    %v1521 = vpop.f32.mrb[0].mxu0
    %v1522 = vadd.f32 %v1041, %v1521
    %v1523 = vpop.f32.mrb[0].mxu0
    %v1524 = vadd.f32 %v1041, %v1523
    %v1525 = vpop.f32.mrb[0].mxu0
    %v1526 = vadd.f32 %v1046, %v1525
    %v1527 = vpop.f32.mrb[0].mxu0
    %v1528 = vadd.f32 %v1046, %v1527
    %1529 = vmatprep.mubr.bf16.mxu0 0
    %1530 = vmatmul.mubr.bf16.gmra.mrb[0].mxu0 %v1227
    %v1531 = vpop.f32.mrb[0].mxu0
    %v1532 = vadd.f32 %v1051, %v1531
    %v1533 = vpop.f32.mrb[0].mxu0
    %v1534 = vadd.f32 %v1051, %v1533
    %v1535 = vpop.f32.mrb[0].mxu0
    %v1536 = vadd.f32 %v1056, %v1535
    %v1537 = vpop.f32.mrb[0].mxu0
    %v1538 = vadd.f32 %v1056, %v1537
    %1539 = vmatprep.mubr.bf16.mxu0 0
    %1540 = vmatmul.mubr.bf16.gmra.mrb[0].mxu0 %v1228
    %v1541 = vpop.f32.mrb[0].mxu0
    %v1542 = vadd.f32 %v1061, %v1541
    %v1543 = vpop.f32.mrb[0].mxu0
    %v1544 = vadd.f32 %v1061, %v1543
    %v1545 = vpop.f32.mrb[0].mxu0
    %v1546 = vadd.f32 %v1066, %v1545
    %v1547 = vpop.f32.mrb[0].mxu0
    %v1548 = vadd.f32 %v1066, %v1547
    %1549 = vmatprep.mubr.bf16.mxu0 0
    %1550 = vmatmul.mubr.bf16.gmra.mrb[0].mxu0 %v1229
    %v1551 = vpop.f32.mrb[0].mxu0
    %v1552 = vadd.f32 %v1071, %v1551
    %v1553 = vpop.f32.mrb[0].mxu0
    %v1554 = vadd.f32 %v1071, %v1553
    %v1555 = vpop.f32.mrb[0].mxu0
    %v1556 = vadd.f32 %v1076, %v1555
    %v1557 = vpop.f32.mrb[0].mxu0
    %v1558 = vadd.f32 %v1076, %v1557
    %1559 = vmatprep.mubr.bf16.mxu0 0
    %1560 = vmatmul.mubr.bf16.gmra.mrb[0].mxu0 %v1230
    %v1561 = vpop.f32.mrb[0].mxu0
    %v1562 = vadd.f32 %v1081, %v1561
    %v1563 = vpop.f32.mrb[0].mxu0
    %v1564 = vadd.f32 %v1081, %v1563
    %v1565 = vpop.f32.mrb[0].mxu0
    %v1566 = vadd.f32 %v1086, %v1565
    %v1567 = vpop.f32.mrb[0].mxu0
    %v1568 = vadd.f32 %v1086, %v1567
    %1569 = vmatprep.mubr.bf16.mxu0 0
    %1570 = vmatmul.mubr.bf16.gmra.mrb[0].mxu0 %v1231
    %v1571 = vpop.f32.mrb[0].mxu0
    %v1572 = vadd.f32 %v1091, %v1571
    %v1573 = vpop.f32.mrb[0].mxu0
    %v1574 = vadd.f32 %v1091, %v1573
    %v1575 = vpop.f32.mrb[0].mxu0
    %v1576 = vadd.f32 %v1096, %v1575
    %v1577 = vpop.f32.mrb[0].mxu0
    %v1578 = vadd.f32 %v1096, %v1577
    %1579 = vmatprep.mubr.bf16.mxu0 0
    %1580 = vmatmul.mubr.bf16.gmra.mrb[0].mxu0 %v1232
    %v1581 = vpop.f32.mrb[0].mxu0
    %v1582 = vadd.f32 %v1101, %v1581
    %v1583 = vpop.f32.mrb[0].mxu0
    %v1584 = vadd.f32 %v1101, %v1583
    %v1585 = vpop.f32.mrb[0].mxu0
    %v1586 = vadd.f32 %v1106, %v1585
    %v1587 = vpop.f32.mrb[0].mxu0
    %v1588 = vadd.f32 %v1106, %v1587
    %1589 = vmatprep.mubr.bf16.mxu0 0
    %1590 = vmatmul.mubr.bf16.gmra.mrb[0].mxu0 %v1233
    %v1591 = vpop.f32.mrb[0].mxu0
    %v1592 = vadd.f32 %v1111, %v1591
    %v1593 = vpop.f32.mrb[0].mxu0
    %v1594 = vadd.f32 %v1111, %v1593
    %v1595 = vpop.f32.mrb[0].mxu0
    %v1596 = vadd.f32 %v1116, %v1595
    %v1597 = vpop.f32.mrb[0].mxu0
    %v1598 = vadd.f32 %v1116, %v1597
    %1599 = vmatprep.mubr.bf16.mxu0 0
    %1600 = vmatmul.mubr.bf16.gmra.mrb[0].mxu0 %v1234
    %v1601 = vpop.f32.mrb[0].mxu0
    %v1602 = vadd.f32 %v1121, %v1601
    %v1603 = vpop.f32.mrb[0].mxu0
    %v1604 = vadd.f32 %v1121, %v1603
    %v1605 = vpop.f32.mrb[0].mxu0
    %v1606 = vadd.f32 %v1126, %v1605
    %v1607 = vpop.f32.mrb[0].mxu0
    %v1608 = vadd.f32 %v1126, %v1607
    %1609 = vmatprep.mubr.bf16.mxu0 0
    %1610 = vmatmul.mubr.bf16.gmra.mrb[0].mxu0 %v1235
    %v1611 = vpop.f32.mrb[0].mxu0
    %v1612 = vadd.f32 %v1131, %v1611
    %v1613 = vpop.f32.mrb[0].mxu0
    %v1614 = vadd.f32 %v1131, %v1613
    %v1615 = vpop.f32.mrb[0].mxu0
    %v1616 = vadd.f32 %v1136, %v1615
    %v1617 = vpop.f32.mrb[0].mxu0
    %v1618 = vadd.f32 %v1136, %v1617
    %1619 = vmatprep.mubr.bf16.mxu0 0
    %1620 = vmatmul.mubr.bf16.gmra.mrb[0].mxu0 %v1236
    %v1621 = vpop.f32.mrb[0].mxu0
    %v1622 = vadd.f32 %v1141, %v1621
    %v1623 = vpop.f32.mrb[0].mxu0
    %v1624 = vadd.f32 %v1141, %v1623
    %v1625 = vpop.f32.mrb[0].mxu0
    %v1626 = vadd.f32 %v1146, %v1625
    %v1627 = vpop.f32.mrb[0].mxu0
    %v1628 = vadd.f32 %v1146, %v1627
    %1629 = vmatprep.mubr.bf16.mxu0 0
    %1630 = vmatmul.mubr.bf16.gmra.mrb[0].mxu0 %v1237
    %v1631 = vpop.f32.mrb[0].mxu0
    %v1632 = vadd.f32 %v1151, %v1631
    %v1633 = vpop.f32.mrb[0].mxu0
    %v1634 = vadd.f32 %v1151, %v1633
    %v1635 = vpop.f32.mrb[0].mxu0
    %v1636 = vadd.f32 %v1156, %v1635
    %v1637 = vpop.f32.mrb[0].mxu0
    %v1638 = vadd.f32 %v1156, %v1637
    %1639 = vdwg.mxu0
    %v1640 = vmax.f32 %v1289, %v1293
    %v1641 = vmax.f32 %v1640, %v1299
    %v1642 = vmax.f32 %v1641, %v1303
    %v1643 = vmax.f32 %v1642, %v1309
    %v1644 = vmax.f32 %v1643, %v1313
    %v1645 = vmax.f32 %v1644, %v1319
    %v1646 = vmax.f32 %v1645, %v1323
    %v1647 = vmax.f32 %v1646, %v1329
    %v1648 = vmax.f32 %v1647, %v1333
    %v1649 = vmax.f32 %v1648, %v1339
    %v1650 = vmax.f32 %v1649, %v1343
    %v1651 = vmax.f32 %v1650, %v1349
    %v1652 = vmax.f32 %v1651, %v1353
    %v1653 = vmax.f32 %v1652, %v1359
    %v1654 = vmax.f32 %v1653, %v1363
    %v1655 = vmax.f32 %v1654, %v1369
    %v1656 = vmax.f32 %v1655, %v1373
    %v1657 = vmax.f32 %v1656, %v1379
    %v1658 = vmax.f32 %v1657, %v1383
    %v1659 = vmax.f32 %v1658, %v1389
    %v1660 = vmax.f32 %v1659, %v1393
    %v1661 = vmax.f32 %v1660, %v1399
    %v1662 = vmax.f32 %v1661, %v1403
    %v1663 = vmax.f32 %v1662, %v1409
    %v1664 = vmax.f32 %v1663, %v1413
    %v1665 = vmax.f32 %v1664, %v1419
    %v1666 = vmax.f32 %v1665, %v1423
    %v1667 = vmax.f32 %v1666, %v1429
    %v1668 = vmax.f32 %v1667, %v1433
    %v1669 = vmax.f32 %v1668, %v1439
    %v1670 = vmax.f32 %v1669, %v1443
    %v1671 = vrot.slane %v1670, 4
    %v1672 = vmax.f32 %v1670, %v1671
    %v1673 = vrot.slane %v1672, 2
    %v1674 = vmax.f32 %v1672, %v1673
    %v1675 = vrot.slane %v1674, 1
    %v1676 = vmax.f32 %v1674, %v1675
    %v1677 = vmax.f32 %v1291, %v1295
    %v1678 = vmax.f32 %v1677, %v1301
    %v1679 = vmax.f32 %v1678, %v1305
    %v1680 = vmax.f32 %v1679, %v1311
    %v1681 = vmax.f32 %v1680, %v1315
    %v1682 = vmax.f32 %v1681, %v1321
    %v1683 = vmax.f32 %v1682, %v1325
    %v1684 = vmax.f32 %v1683, %v1331
    %v1685 = vmax.f32 %v1684, %v1335
    %v1686 = vmax.f32 %v1685, %v1341
    %v1687 = vmax.f32 %v1686, %v1345
    %v1688 = vmax.f32 %v1687, %v1351
    %v1689 = vmax.f32 %v1688, %v1355
    %v1690 = vmax.f32 %v1689, %v1361
    %v1691 = vmax.f32 %v1690, %v1365
    %v1692 = vmax.f32 %v1691, %v1371
    %v1693 = vmax.f32 %v1692, %v1375
    %v1694 = vmax.f32 %v1693, %v1381
    %v1695 = vmax.f32 %v1694, %v1385
    %v1696 = vmax.f32 %v1695, %v1391
    %v1697 = vmax.f32 %v1696, %v1395
    %v1698 = vmax.f32 %v1697, %v1401
    %v1699 = vmax.f32 %v1698, %v1405
    %v1700 = vmax.f32 %v1699, %v1411
    %v1701 = vmax.f32 %v1700, %v1415
    %v1702 = vmax.f32 %v1701, %v1421
    %v1703 = vmax.f32 %v1702, %v1425
    %v1704 = vmax.f32 %v1703, %v1431
    %v1705 = vmax.f32 %v1704, %v1435
    %v1706 = vmax.f32 %v1705, %v1441
    %v1707 = vmax.f32 %v1706, %v1445
    %v1708 = vrot.slane %v1707, 4
    %v1709 = vmax.f32 %v1707, %v1708
    %v1710 = vrot.slane %v1709, 2
    %v1711 = vmax.f32 %v1709, %v1710
    %v1712 = vrot.slane %v1711, 1
    %v1713 = vmax.f32 %v1711, %v1712
    %v1714 = vmax.f32 %v1482, %v1486
    %v1715 = vmax.f32 %v1714, %v1492
    %v1716 = vmax.f32 %v1715, %v1496
    %v1717 = vmax.f32 %v1716, %v1502
    %v1718 = vmax.f32 %v1717, %v1506
    %v1719 = vmax.f32 %v1718, %v1512
    %v1720 = vmax.f32 %v1719, %v1516
    %v1721 = vmax.f32 %v1720, %v1522
    %v1722 = vmax.f32 %v1721, %v1526
    %v1723 = vmax.f32 %v1722, %v1532
    %v1724 = vmax.f32 %v1723, %v1536
    %v1725 = vmax.f32 %v1724, %v1542
    %v1726 = vmax.f32 %v1725, %v1546
    %v1727 = vmax.f32 %v1726, %v1552
    %v1728 = vmax.f32 %v1727, %v1556
    %v1729 = vmax.f32 %v1728, %v1562
    %v1730 = vmax.f32 %v1729, %v1566
    %v1731 = vmax.f32 %v1730, %v1572
    %v1732 = vmax.f32 %v1731, %v1576
    %v1733 = vmax.f32 %v1732, %v1582
    %v1734 = vmax.f32 %v1733, %v1586
    %v1735 = vmax.f32 %v1734, %v1592
    %v1736 = vmax.f32 %v1735, %v1596
    %v1737 = vmax.f32 %v1736, %v1602
    %v1738 = vmax.f32 %v1737, %v1606
    %v1739 = vmax.f32 %v1738, %v1612
    %v1740 = vmax.f32 %v1739, %v1616
    %v1741 = vmax.f32 %v1740, %v1622
    %v1742 = vmax.f32 %v1741, %v1626
    %v1743 = vmax.f32 %v1742, %v1632
    %v1744 = vmax.f32 %v1743, %v1636
    %v1745 = vrot.slane %v1744, 4
    %v1746 = vmax.f32 %v1744, %v1745
    %v1747 = vrot.slane %v1746, 2
    %v1748 = vmax.f32 %v1746, %v1747
    %v1749 = vrot.slane %v1748, 1
    %v1750 = vmax.f32 %v1748, %v1749
    %v1751 = vmax.f32 %v1484, %v1488
    %v1752 = vmax.f32 %v1751, %v1494
    %v1753 = vmax.f32 %v1752, %v1498
    %v1754 = vmax.f32 %v1753, %v1504
    %v1755 = vmax.f32 %v1754, %v1508
    %v1756 = vmax.f32 %v1755, %v1514
    %v1757 = vmax.f32 %v1756, %v1518
    %v1758 = vmax.f32 %v1757, %v1524
    %v1759 = vmax.f32 %v1758, %v1528
    %v1760 = vmax.f32 %v1759, %v1534
    %v1761 = vmax.f32 %v1760, %v1538
    %v1762 = vmax.f32 %v1761, %v1544
    %v1763 = vmax.f32 %v1762, %v1548
    %v1764 = vmax.f32 %v1763, %v1554
    %v1765 = vmax.f32 %v1764, %v1558
    %v1766 = vmax.f32 %v1765, %v1564
    %v1767 = vmax.f32 %v1766, %v1568
    %v1768 = vmax.f32 %v1767, %v1574
    %v1769 = vmax.f32 %v1768, %v1578
    %v1770 = vmax.f32 %v1769, %v1584
    %v1771 = vmax.f32 %v1770, %v1588
    %v1772 = vmax.f32 %v1771, %v1594
    %v1773 = vmax.f32 %v1772, %v1598
    %v1774 = vmax.f32 %v1773, %v1604
    %v1775 = vmax.f32 %v1774, %v1608
    %v1776 = vmax.f32 %v1775, %v1614
    %v1777 = vmax.f32 %v1776, %v1618
    %v1778 = vmax.f32 %v1777, %v1624
    %v1779 = vmax.f32 %v1778, %v1628
    %v1780 = vmax.f32 %v1779, %v1634
    %v1781 = vmax.f32 %v1780, %v1638
    %v1782 = vrot.slane %v1781, 4
    %v1783 = vmax.f32 %v1781, %v1782
    %v1784 = vrot.slane %v1783, 2
    %v1785 = vmax.f32 %v1783, %v1784
    %v1786 = vrot.slane %v1785, 1
    %v1787 = vmax.f32 %v1785, %v1786
    %v1788 = vlaneseq
    %v1789 = vshrl.u32 %v1788, 7
    %v1790 = vadd.s32 %v1789, 8
    %v1791 = vadd.s32 %v1789, 16
    %v1792 = vadd.s32 %v1789, 24
    %v1793 = vadd.s32 %v1789, 32
    %v1794 = vadd.s32 %v1789, 40
    %v1795 = vadd.s32 %v1789, 48
    %v1796 = vadd.s32 %v1789, 56
    %v1797 = vadd.s32 %v1789, 64
    %v1798 = vadd.s32 %v1789, 72
    %v1799 = vadd.s32 %v1789, 80
    %v1800 = vadd.s32 %v1789, 88
    %v1801 = vadd.s32 %v1789, 96
    %v1802 = vadd.s32 %v1789, 104
    %v1803 = vadd.s32 %v1789, 112
    %v1804 = vadd.s32 %v1789, 120
    %v1805 = vadd.s32 %v1789, 128
    %v1806 = vadd.s32 %v1789, 136
    %v1807 = vadd.s32 %v1789, 144
    %v1808 = vadd.s32 %v1789, 152
    %v1809 = vadd.s32 %v1789, 160
    %v1810 = vadd.s32 %v1789, 168
    %v1811 = vadd.s32 %v1789, 176
    %v1812 = vadd.s32 %v1789, 184
    %v1813 = vadd.s32 %v1789, 192
    %v1814 = vadd.s32 %v1789, 200
    %v1815 = vadd.s32 %v1789, 208
    %v1816 = vadd.s32 %v1789, 216
    %v1817 = vadd.s32 %v1789, 224
    %v1818 = vadd.s32 %v1789, 232
    %v1819 = vadd.s32 %v1789, 240
    %v1820 = vadd.s32 %v1789, 248
    %vm1821 = vcmp.eq.f32.partialorder %v1289, %v1676
    %vm1822 = vcmp.eq.f32.partialorder %v1291, %v1713
    %vm1823 = vcmp.eq.f32.partialorder %v1482, %v1750
    %vm1824 = vcmp.eq.f32.partialorder %v1484, %v1787
    %vm1825 = vcmp.eq.f32.partialorder %v1293, %v1676
    %vm1826 = vcmp.eq.f32.partialorder %v1295, %v1713
    %vm1827 = vcmp.eq.f32.partialorder %v1486, %v1750
    %vm1828 = vcmp.eq.f32.partialorder %v1488, %v1787
    %vm1829 = vcmp.eq.f32.partialorder %v1299, %v1676
    %vm1830 = vcmp.eq.f32.partialorder %v1301, %v1713
    %vm1831 = vcmp.eq.f32.partialorder %v1492, %v1750
    %vm1832 = vcmp.eq.f32.partialorder %v1494, %v1787
    %vm1833 = vcmp.eq.f32.partialorder %v1303, %v1676
    %vm1834 = vcmp.eq.f32.partialorder %v1305, %v1713
    %vm1835 = vcmp.eq.f32.partialorder %v1496, %v1750
    %vm1836 = vcmp.eq.f32.partialorder %v1498, %v1787
    %vm1837 = vcmp.eq.f32.partialorder %v1309, %v1676
    %vm1838 = vcmp.eq.f32.partialorder %v1311, %v1713
    %vm1839 = vcmp.eq.f32.partialorder %v1502, %v1750
    %vm1840 = vcmp.eq.f32.partialorder %v1504, %v1787
    %vm1841 = vcmp.eq.f32.partialorder %v1313, %v1676
    %vm1842 = vcmp.eq.f32.partialorder %v1315, %v1713
    %vm1843 = vcmp.eq.f32.partialorder %v1506, %v1750
    %vm1844 = vcmp.eq.f32.partialorder %v1508, %v1787
    %vm1845 = vcmp.eq.f32.partialorder %v1319, %v1676
    %vm1846 = vcmp.eq.f32.partialorder %v1321, %v1713
    %vm1847 = vcmp.eq.f32.partialorder %v1512, %v1750
    %vm1848 = vcmp.eq.f32.partialorder %v1514, %v1787
    %vm1849 = vcmp.eq.f32.partialorder %v1323, %v1676
    %vm1850 = vcmp.eq.f32.partialorder %v1325, %v1713
    %vm1851 = vcmp.eq.f32.partialorder %v1516, %v1750
    %vm1852 = vcmp.eq.f32.partialorder %v1518, %v1787
    %vm1853 = vcmp.eq.f32.partialorder %v1329, %v1676
    %vm1854 = vcmp.eq.f32.partialorder %v1331, %v1713
    %vm1855 = vcmp.eq.f32.partialorder %v1522, %v1750
    %vm1856 = vcmp.eq.f32.partialorder %v1524, %v1787
    %vm1857 = vcmp.eq.f32.partialorder %v1333, %v1676
    %vm1858 = vcmp.eq.f32.partialorder %v1335, %v1713
    %vm1859 = vcmp.eq.f32.partialorder %v1526, %v1750
    %vm1860 = vcmp.eq.f32.partialorder %v1528, %v1787
    %vm1861 = vcmp.eq.f32.partialorder %v1339, %v1676
    %vm1862 = vcmp.eq.f32.partialorder %v1341, %v1713
    %vm1863 = vcmp.eq.f32.partialorder %v1532, %v1750
    %vm1864 = vcmp.eq.f32.partialorder %v1534, %v1787
    %vm1865 = vcmp.eq.f32.partialorder %v1343, %v1676
    %vm1866 = vcmp.eq.f32.partialorder %v1345, %v1713
    %vm1867 = vcmp.eq.f32.partialorder %v1536, %v1750
    %vm1868 = vcmp.eq.f32.partialorder %v1538, %v1787
    %vm1869 = vcmp.eq.f32.partialorder %v1349, %v1676
    %vm1870 = vcmp.eq.f32.partialorder %v1351, %v1713
    %vm1871 = vcmp.eq.f32.partialorder %v1542, %v1750
    %vm1872 = vcmp.eq.f32.partialorder %v1544, %v1787
    %vm1873 = vcmp.eq.f32.partialorder %v1353, %v1676
    %vm1874 = vcmp.eq.f32.partialorder %v1355, %v1713
    %vm1875 = vcmp.eq.f32.partialorder %v1546, %v1750
    %vm1876 = vcmp.eq.f32.partialorder %v1548, %v1787
    %vm1877 = vcmp.eq.f32.partialorder %v1359, %v1676
    %vm1878 = vcmp.eq.f32.partialorder %v1361, %v1713
    %vm1879 = vcmp.eq.f32.partialorder %v1552, %v1750
    %vm1880 = vcmp.eq.f32.partialorder %v1554, %v1787
    %vm1881 = vcmp.eq.f32.partialorder %v1363, %v1676
    %vm1882 = vcmp.eq.f32.partialorder %v1365, %v1713
    %vm1883 = vcmp.eq.f32.partialorder %v1556, %v1750
    %vm1884 = vcmp.eq.f32.partialorder %v1558, %v1787
    %vm1885 = vcmp.eq.f32.partialorder %v1369, %v1676
    %vm1886 = vcmp.eq.f32.partialorder %v1371, %v1713
    %vm1887 = vcmp.eq.f32.partialorder %v1562, %v1750
    %vm1888 = vcmp.eq.f32.partialorder %v1564, %v1787
    %vm1889 = vcmp.eq.f32.partialorder %v1373, %v1676
    %vm1890 = vcmp.eq.f32.partialorder %v1375, %v1713
    %vm1891 = vcmp.eq.f32.partialorder %v1566, %v1750
    %vm1892 = vcmp.eq.f32.partialorder %v1568, %v1787
    %vm1893 = vcmp.eq.f32.partialorder %v1379, %v1676
    %vm1894 = vcmp.eq.f32.partialorder %v1381, %v1713
    %vm1895 = vcmp.eq.f32.partialorder %v1572, %v1750
    %vm1896 = vcmp.eq.f32.partialorder %v1574, %v1787
    %vm1897 = vcmp.eq.f32.partialorder %v1383, %v1676
    %vm1898 = vcmp.eq.f32.partialorder %v1385, %v1713
    %vm1899 = vcmp.eq.f32.partialorder %v1576, %v1750
    %vm1900 = vcmp.eq.f32.partialorder %v1578, %v1787
    %vm1901 = vcmp.eq.f32.partialorder %v1389, %v1676
    %vm1902 = vcmp.eq.f32.partialorder %v1391, %v1713
    %vm1903 = vcmp.eq.f32.partialorder %v1582, %v1750
    %vm1904 = vcmp.eq.f32.partialorder %v1584, %v1787
    %vm1905 = vcmp.eq.f32.partialorder %v1393, %v1676
    %vm1906 = vcmp.eq.f32.partialorder %v1395, %v1713
    %vm1907 = vcmp.eq.f32.partialorder %v1586, %v1750
    %vm1908 = vcmp.eq.f32.partialorder %v1588, %v1787
    %vm1909 = vcmp.eq.f32.partialorder %v1399, %v1676
    %vm1910 = vcmp.eq.f32.partialorder %v1401, %v1713
    %vm1911 = vcmp.eq.f32.partialorder %v1592, %v1750
    %vm1912 = vcmp.eq.f32.partialorder %v1594, %v1787
    %vm1913 = vcmp.eq.f32.partialorder %v1403, %v1676
    %vm1914 = vcmp.eq.f32.partialorder %v1405, %v1713
    %vm1915 = vcmp.eq.f32.partialorder %v1596, %v1750
    %vm1916 = vcmp.eq.f32.partialorder %v1598, %v1787
    %vm1917 = vcmp.eq.f32.partialorder %v1409, %v1676
    %vm1918 = vcmp.eq.f32.partialorder %v1411, %v1713
    %vm1919 = vcmp.eq.f32.partialorder %v1602, %v1750
    %vm1920 = vcmp.eq.f32.partialorder %v1604, %v1787
    %vm1921 = vcmp.eq.f32.partialorder %v1413, %v1676
    %vm1922 = vcmp.eq.f32.partialorder %v1415, %v1713
    %vm1923 = vcmp.eq.f32.partialorder %v1606, %v1750
    %vm1924 = vcmp.eq.f32.partialorder %v1608, %v1787
    %vm1925 = vcmp.eq.f32.partialorder %v1419, %v1676
    %vm1926 = vcmp.eq.f32.partialorder %v1421, %v1713
    %vm1927 = vcmp.eq.f32.partialorder %v1612, %v1750
    %vm1928 = vcmp.eq.f32.partialorder %v1614, %v1787
    %vm1929 = vcmp.eq.f32.partialorder %v1423, %v1676
    %vm1930 = vcmp.eq.f32.partialorder %v1425, %v1713
    %vm1931 = vcmp.eq.f32.partialorder %v1616, %v1750
    %vm1932 = vcmp.eq.f32.partialorder %v1618, %v1787
    %vm1933 = vcmp.eq.f32.partialorder %v1429, %v1676
    %vm1934 = vcmp.eq.f32.partialorder %v1431, %v1713
    %vm1935 = vcmp.eq.f32.partialorder %v1622, %v1750
    %vm1936 = vcmp.eq.f32.partialorder %v1624, %v1787
    %vm1937 = vcmp.eq.f32.partialorder %v1433, %v1676
    %vm1938 = vcmp.eq.f32.partialorder %v1435, %v1713
    %vm1939 = vcmp.eq.f32.partialorder %v1626, %v1750
    %vm1940 = vcmp.eq.f32.partialorder %v1628, %v1787
    %vm1941 = vcmp.eq.f32.partialorder %v1439, %v1676
    %vm1942 = vcmp.eq.f32.partialorder %v1441, %v1713
    %vm1943 = vcmp.eq.f32.partialorder %v1632, %v1750
    %vm1944 = vcmp.eq.f32.partialorder %v1634, %v1787
    %vm1945 = vcmp.eq.f32.partialorder %v1443, %v1676
    %vm1946 = vcmp.eq.f32.partialorder %v1445, %v1713
    %vm1947 = vcmp.eq.f32.partialorder %v1636, %v1750
    %vm1948 = vcmp.eq.f32.partialorder %v1638, %v1787
    %v1949 = vsel %vm1821, %v1789, 512
    %v1950 = vsel %vm1822, %v1789, 512
    %v1951 = vsel %vm1823, %v1789, 512
    %v1952 = vsel %vm1824, %v1789, 512
    %v1953 = vsel %vm1825, %v1790, 512
    %v1954 = vsel %vm1826, %v1790, 512
    %v1955 = vsel %vm1827, %v1790, 512
    %v1956 = vsel %vm1828, %v1790, 512
    %v1957 = vsel %vm1829, %v1791, 512
    %v1958 = vsel %vm1830, %v1791, 512
    %v1959 = vsel %vm1831, %v1791, 512
    %v1960 = vsel %vm1832, %v1791, 512
    %v1961 = vsel %vm1833, %v1792, 512
    %v1962 = vsel %vm1834, %v1792, 512
    %v1963 = vsel %vm1835, %v1792, 512
    %v1964 = vsel %vm1836, %v1792, 512
    %v1965 = vsel %vm1837, %v1793, 512
    %v1966 = vsel %vm1838, %v1793, 512
    %v1967 = vsel %vm1839, %v1793, 512
    %v1968 = vsel %vm1840, %v1793, 512
    %v1969 = vsel %vm1841, %v1794, 512
    %v1970 = vsel %vm1842, %v1794, 512
    %v1971 = vsel %vm1843, %v1794, 512
    %v1972 = vsel %vm1844, %v1794, 512
    %v1973 = vsel %vm1845, %v1795, 512
    %v1974 = vsel %vm1846, %v1795, 512
    %v1975 = vsel %vm1847, %v1795, 512
    %v1976 = vsel %vm1848, %v1795, 512
    %v1977 = vsel %vm1849, %v1796, 512
    %v1978 = vsel %vm1850, %v1796, 512
    %v1979 = vsel %vm1851, %v1796, 512
    %v1980 = vsel %vm1852, %v1796, 512
    %v1981 = vsel %vm1853, %v1797, 512
    %v1982 = vsel %vm1854, %v1797, 512
    %v1983 = vsel %vm1855, %v1797, 512
    %v1984 = vsel %vm1856, %v1797, 512
    %v1985 = vsel %vm1857, %v1798, 512
    %v1986 = vsel %vm1858, %v1798, 512
    %v1987 = vsel %vm1859, %v1798, 512
    %v1988 = vsel %vm1860, %v1798, 512
    %v1989 = vsel %vm1861, %v1799, 512
    %v1990 = vsel %vm1862, %v1799, 512
    %v1991 = vsel %vm1863, %v1799, 512
    %v1992 = vsel %vm1864, %v1799, 512
    %v1993 = vsel %vm1865, %v1800, 512
    %v1994 = vsel %vm1866, %v1800, 512
    %v1995 = vsel %vm1867, %v1800, 512
    %v1996 = vsel %vm1868, %v1800, 512
    %v1997 = vsel %vm1869, %v1801, 512
    %v1998 = vsel %vm1870, %v1801, 512
    %v1999 = vsel %vm1871, %v1801, 512
    %v2000 = vsel %vm1872, %v1801, 512
    %v2001 = vsel %vm1873, %v1802, 512
    %v2002 = vsel %vm1874, %v1802, 512
    %v2003 = vsel %vm1875, %v1802, 512
    %v2004 = vsel %vm1876, %v1802, 512
    %v2005 = vsel %vm1877, %v1803, 512
    %v2006 = vsel %vm1878, %v1803, 512
    %v2007 = vsel %vm1879, %v1803, 512
    %v2008 = vsel %vm1880, %v1803, 512
    %v2009 = vsel %vm1881, %v1804, 512
    %v2010 = vsel %vm1882, %v1804, 512
    %v2011 = vsel %vm1883, %v1804, 512
    %v2012 = vsel %vm1884, %v1804, 512
    %v2013 = vsel %vm1885, %v1805, 512
    %v2014 = vsel %vm1886, %v1805, 512
    %v2015 = vsel %vm1887, %v1805, 512
    %v2016 = vsel %vm1888, %v1805, 512
    %v2017 = vsel %vm1889, %v1806, 512
    %v2018 = vsel %vm1890, %v1806, 512
    %v2019 = vsel %vm1891, %v1806, 512
    %v2020 = vsel %vm1892, %v1806, 512
    %v2021 = vsel %vm1893, %v1807, 512
    %v2022 = vsel %vm1894, %v1807, 512
    %v2023 = vsel %vm1895, %v1807, 512
    %v2024 = vsel %vm1896, %v1807, 512
    %v2025 = vsel %vm1897, %v1808, 512
    %v2026 = vsel %vm1898, %v1808, 512
    %v2027 = vsel %vm1899, %v1808, 512
    %v2028 = vsel %vm1900, %v1808, 512
    %v2029 = vsel %vm1901, %v1809, 512
    %v2030 = vsel %vm1902, %v1809, 512
    %v2031 = vsel %vm1903, %v1809, 512
    %v2032 = vsel %vm1904, %v1809, 512
    %v2033 = vsel %vm1905, %v1810, 512
    %v2034 = vsel %vm1906, %v1810, 512
    %v2035 = vsel %vm1907, %v1810, 512
    %v2036 = vsel %vm1908, %v1810, 512
    %v2037 = vsel %vm1909, %v1811, 512
    %v2038 = vsel %vm1910, %v1811, 512
    %v2039 = vsel %vm1911, %v1811, 512
    %v2040 = vsel %vm1912, %v1811, 512
    %v2041 = vsel %vm1913, %v1812, 512
    %v2042 = vsel %vm1914, %v1812, 512
    %v2043 = vsel %vm1915, %v1812, 512
    %v2044 = vsel %vm1916, %v1812, 512
    %v2045 = vsel %vm1917, %v1813, 512
    %v2046 = vsel %vm1918, %v1813, 512
    %v2047 = vsel %vm1919, %v1813, 512
    %v2048 = vsel %vm1920, %v1813, 512
    %v2049 = vsel %vm1921, %v1814, 512
    %v2050 = vsel %vm1922, %v1814, 512
    %v2051 = vsel %vm1923, %v1814, 512
    %v2052 = vsel %vm1924, %v1814, 512
    %v2053 = vsel %vm1925, %v1815, 512
    %v2054 = vsel %vm1926, %v1815, 512
    %v2055 = vsel %vm1927, %v1815, 512
    %v2056 = vsel %vm1928, %v1815, 512
    %v2057 = vsel %vm1929, %v1816, 512
    %v2058 = vsel %vm1930, %v1816, 512
    %v2059 = vsel %vm1931, %v1816, 512
    %v2060 = vsel %vm1932, %v1816, 512
    %v2061 = vsel %vm1933, %v1817, 512
    %v2062 = vsel %vm1934, %v1817, 512
    %v2063 = vsel %vm1935, %v1817, 512
    %v2064 = vsel %vm1936, %v1817, 512
    %v2065 = vsel %vm1937, %v1818, 512
    %v2066 = vsel %vm1938, %v1818, 512
    %v2067 = vsel %vm1939, %v1818, 512
    %v2068 = vsel %vm1940, %v1818, 512
    %v2069 = vsel %vm1941, %v1819, 512
    %v2070 = vsel %vm1942, %v1819, 512
    %v2071 = vsel %vm1943, %v1819, 512
    %v2072 = vsel %vm1944, %v1819, 512
    %v2073 = vsel %vm1945, %v1820, 512
    %v2074 = vsel %vm1946, %v1820, 512
    %v2075 = vsel %vm1947, %v1820, 512
    %v2076 = vsel %vm1948, %v1820, 512
    %vm2077 = vcmp.lt.s32.totalorder %v1949, %v1953
    %v2078 = vsel %vm2077, %v1949, %v1953
    %vm2079 = vcmp.lt.s32.totalorder %v2078, %v1957
    %v2080 = vsel %vm2079, %v2078, %v1957
    %vm2081 = vcmp.lt.s32.totalorder %v2080, %v1961
    %v2082 = vsel %vm2081, %v2080, %v1961
    %vm2083 = vcmp.lt.s32.totalorder %v2082, %v1965
    %v2084 = vsel %vm2083, %v2082, %v1965
    %vm2085 = vcmp.lt.s32.totalorder %v2084, %v1969
    %v2086 = vsel %vm2085, %v2084, %v1969
    %vm2087 = vcmp.lt.s32.totalorder %v2086, %v1973
    %v2088 = vsel %vm2087, %v2086, %v1973
    %vm2089 = vcmp.lt.s32.totalorder %v2088, %v1977
    %v2090 = vsel %vm2089, %v2088, %v1977
    %vm2091 = vcmp.lt.s32.totalorder %v2090, %v1981
    %v2092 = vsel %vm2091, %v2090, %v1981
    %vm2093 = vcmp.lt.s32.totalorder %v2092, %v1985
    %v2094 = vsel %vm2093, %v2092, %v1985
    %vm2095 = vcmp.lt.s32.totalorder %v2094, %v1989
    %v2096 = vsel %vm2095, %v2094, %v1989
    %vm2097 = vcmp.lt.s32.totalorder %v2096, %v1993
    %v2098 = vsel %vm2097, %v2096, %v1993
    %vm2099 = vcmp.lt.s32.totalorder %v2098, %v1997
    %v2100 = vsel %vm2099, %v2098, %v1997
    %vm2101 = vcmp.lt.s32.totalorder %v2100, %v2001
    %v2102 = vsel %vm2101, %v2100, %v2001
    %vm2103 = vcmp.lt.s32.totalorder %v2102, %v2005
    %v2104 = vsel %vm2103, %v2102, %v2005
    %vm2105 = vcmp.lt.s32.totalorder %v2104, %v2009
    %v2106 = vsel %vm2105, %v2104, %v2009
    %vm2107 = vcmp.lt.s32.totalorder %v2106, %v2013
    %v2108 = vsel %vm2107, %v2106, %v2013
    %vm2109 = vcmp.lt.s32.totalorder %v2108, %v2017
    %v2110 = vsel %vm2109, %v2108, %v2017
    %vm2111 = vcmp.lt.s32.totalorder %v2110, %v2021
    %v2112 = vsel %vm2111, %v2110, %v2021
    %vm2113 = vcmp.lt.s32.totalorder %v2112, %v2025
    %v2114 = vsel %vm2113, %v2112, %v2025
    %vm2115 = vcmp.lt.s32.totalorder %v2114, %v2029
    %v2116 = vsel %vm2115, %v2114, %v2029
    %vm2117 = vcmp.lt.s32.totalorder %v2116, %v2033
    %v2118 = vsel %vm2117, %v2116, %v2033
    %vm2119 = vcmp.lt.s32.totalorder %v2118, %v2037
    %v2120 = vsel %vm2119, %v2118, %v2037
    %vm2121 = vcmp.lt.s32.totalorder %v2120, %v2041
    %v2122 = vsel %vm2121, %v2120, %v2041
    %vm2123 = vcmp.lt.s32.totalorder %v2122, %v2045
    %v2124 = vsel %vm2123, %v2122, %v2045
    %vm2125 = vcmp.lt.s32.totalorder %v2124, %v2049
    %v2126 = vsel %vm2125, %v2124, %v2049
    %vm2127 = vcmp.lt.s32.totalorder %v2126, %v2053
    %v2128 = vsel %vm2127, %v2126, %v2053
    %vm2129 = vcmp.lt.s32.totalorder %v2128, %v2057
    %v2130 = vsel %vm2129, %v2128, %v2057
    %vm2131 = vcmp.lt.s32.totalorder %v2130, %v2061
    %v2132 = vsel %vm2131, %v2130, %v2061
    %vm2133 = vcmp.lt.s32.totalorder %v2132, %v2065
    %v2134 = vsel %vm2133, %v2132, %v2065
    %vm2135 = vcmp.lt.s32.totalorder %v2134, %v2069
    %v2136 = vsel %vm2135, %v2134, %v2069
    %vm2137 = vcmp.lt.s32.totalorder %v2136, %v2073
    %v2138 = vsel %vm2137, %v2136, %v2073
    %v2139 = vrot.slane %v2138, 4
    %vm2140 = vcmp.lt.s32.totalorder %v2138, %v2139
    %v2141 = vsel %vm2140, %v2138, %v2139
    %v2142 = vrot.slane %v2141, 2
    %vm2143 = vcmp.lt.s32.totalorder %v2141, %v2142
    %v2144 = vsel %vm2143, %v2141, %v2142
    %v2145 = vrot.slane %v2144, 1
    %vm2146 = vcmp.lt.s32.totalorder %v2144, %v2145
    %v2147 = vsel %vm2146, %v2144, %v2145
    %vm2148 = vcmp.lt.s32.totalorder %v1950, %v1954
    %v2149 = vsel %vm2148, %v1950, %v1954
    %vm2150 = vcmp.lt.s32.totalorder %v2149, %v1958
    %v2151 = vsel %vm2150, %v2149, %v1958
    %vm2152 = vcmp.lt.s32.totalorder %v2151, %v1962
    %v2153 = vsel %vm2152, %v2151, %v1962
    %vm2154 = vcmp.lt.s32.totalorder %v2153, %v1966
    %v2155 = vsel %vm2154, %v2153, %v1966
    %vm2156 = vcmp.lt.s32.totalorder %v2155, %v1970
    %v2157 = vsel %vm2156, %v2155, %v1970
    %vm2158 = vcmp.lt.s32.totalorder %v2157, %v1974
    %v2159 = vsel %vm2158, %v2157, %v1974
    %vm2160 = vcmp.lt.s32.totalorder %v2159, %v1978
    %v2161 = vsel %vm2160, %v2159, %v1978
    %vm2162 = vcmp.lt.s32.totalorder %v2161, %v1982
    %v2163 = vsel %vm2162, %v2161, %v1982
    %vm2164 = vcmp.lt.s32.totalorder %v2163, %v1986
    %v2165 = vsel %vm2164, %v2163, %v1986
    %vm2166 = vcmp.lt.s32.totalorder %v2165, %v1990
    %v2167 = vsel %vm2166, %v2165, %v1990
    %vm2168 = vcmp.lt.s32.totalorder %v2167, %v1994
    %v2169 = vsel %vm2168, %v2167, %v1994
    %vm2170 = vcmp.lt.s32.totalorder %v2169, %v1998
    %v2171 = vsel %vm2170, %v2169, %v1998
    %vm2172 = vcmp.lt.s32.totalorder %v2171, %v2002
    %v2173 = vsel %vm2172, %v2171, %v2002
    %vm2174 = vcmp.lt.s32.totalorder %v2173, %v2006
    %v2175 = vsel %vm2174, %v2173, %v2006
    %vm2176 = vcmp.lt.s32.totalorder %v2175, %v2010
    %v2177 = vsel %vm2176, %v2175, %v2010
    %vm2178 = vcmp.lt.s32.totalorder %v2177, %v2014
    %v2179 = vsel %vm2178, %v2177, %v2014
    %vm2180 = vcmp.lt.s32.totalorder %v2179, %v2018
    %v2181 = vsel %vm2180, %v2179, %v2018
    %vm2182 = vcmp.lt.s32.totalorder %v2181, %v2022
    %v2183 = vsel %vm2182, %v2181, %v2022
    %vm2184 = vcmp.lt.s32.totalorder %v2183, %v2026
    %v2185 = vsel %vm2184, %v2183, %v2026
    %vm2186 = vcmp.lt.s32.totalorder %v2185, %v2030
    %v2187 = vsel %vm2186, %v2185, %v2030
    %vm2188 = vcmp.lt.s32.totalorder %v2187, %v2034
    %v2189 = vsel %vm2188, %v2187, %v2034
    %vm2190 = vcmp.lt.s32.totalorder %v2189, %v2038
    %v2191 = vsel %vm2190, %v2189, %v2038
    %vm2192 = vcmp.lt.s32.totalorder %v2191, %v2042
    %v2193 = vsel %vm2192, %v2191, %v2042
    %vm2194 = vcmp.lt.s32.totalorder %v2193, %v2046
    %v2195 = vsel %vm2194, %v2193, %v2046
    %vm2196 = vcmp.lt.s32.totalorder %v2195, %v2050
    %v2197 = vsel %vm2196, %v2195, %v2050
    %vm2198 = vcmp.lt.s32.totalorder %v2197, %v2054
    %v2199 = vsel %vm2198, %v2197, %v2054
    %vm2200 = vcmp.lt.s32.totalorder %v2199, %v2058
    %v2201 = vsel %vm2200, %v2199, %v2058
    %vm2202 = vcmp.lt.s32.totalorder %v2201, %v2062
    %v2203 = vsel %vm2202, %v2201, %v2062
    %vm2204 = vcmp.lt.s32.totalorder %v2203, %v2066
    %v2205 = vsel %vm2204, %v2203, %v2066
    %vm2206 = vcmp.lt.s32.totalorder %v2205, %v2070
    %v2207 = vsel %vm2206, %v2205, %v2070
    %vm2208 = vcmp.lt.s32.totalorder %v2207, %v2074
    %v2209 = vsel %vm2208, %v2207, %v2074
    %v2210 = vrot.slane %v2209, 4
    %vm2211 = vcmp.lt.s32.totalorder %v2209, %v2210
    %v2212 = vsel %vm2211, %v2209, %v2210
    %v2213 = vrot.slane %v2212, 2
    %vm2214 = vcmp.lt.s32.totalorder %v2212, %v2213
    %v2215 = vsel %vm2214, %v2212, %v2213
    %v2216 = vrot.slane %v2215, 1
    %vm2217 = vcmp.lt.s32.totalorder %v2215, %v2216
    %v2218 = vsel %vm2217, %v2215, %v2216
    %vm2219 = vcmp.lt.s32.totalorder %v1951, %v1955
    %v2220 = vsel %vm2219, %v1951, %v1955
    %vm2221 = vcmp.lt.s32.totalorder %v2220, %v1959
    %v2222 = vsel %vm2221, %v2220, %v1959
    %vm2223 = vcmp.lt.s32.totalorder %v2222, %v1963
    %v2224 = vsel %vm2223, %v2222, %v1963
    %vm2225 = vcmp.lt.s32.totalorder %v2224, %v1967
    %v2226 = vsel %vm2225, %v2224, %v1967
    %vm2227 = vcmp.lt.s32.totalorder %v2226, %v1971
    %v2228 = vsel %vm2227, %v2226, %v1971
    %vm2229 = vcmp.lt.s32.totalorder %v2228, %v1975
    %v2230 = vsel %vm2229, %v2228, %v1975
    %vm2231 = vcmp.lt.s32.totalorder %v2230, %v1979
    %v2232 = vsel %vm2231, %v2230, %v1979
    %vm2233 = vcmp.lt.s32.totalorder %v2232, %v1983
    %v2234 = vsel %vm2233, %v2232, %v1983
    %vm2235 = vcmp.lt.s32.totalorder %v2234, %v1987
    %v2236 = vsel %vm2235, %v2234, %v1987
    %vm2237 = vcmp.lt.s32.totalorder %v2236, %v1991
    %v2238 = vsel %vm2237, %v2236, %v1991
    %vm2239 = vcmp.lt.s32.totalorder %v2238, %v1995
    %v2240 = vsel %vm2239, %v2238, %v1995
    %vm2241 = vcmp.lt.s32.totalorder %v2240, %v1999
    %v2242 = vsel %vm2241, %v2240, %v1999
    %vm2243 = vcmp.lt.s32.totalorder %v2242, %v2003
    %v2244 = vsel %vm2243, %v2242, %v2003
    %vm2245 = vcmp.lt.s32.totalorder %v2244, %v2007
    %v2246 = vsel %vm2245, %v2244, %v2007
    %vm2247 = vcmp.lt.s32.totalorder %v2246, %v2011
    %v2248 = vsel %vm2247, %v2246, %v2011
    %vm2249 = vcmp.lt.s32.totalorder %v2248, %v2015
    %v2250 = vsel %vm2249, %v2248, %v2015
    %vm2251 = vcmp.lt.s32.totalorder %v2250, %v2019
    %v2252 = vsel %vm2251, %v2250, %v2019
    %vm2253 = vcmp.lt.s32.totalorder %v2252, %v2023
    %v2254 = vsel %vm2253, %v2252, %v2023
    %vm2255 = vcmp.lt.s32.totalorder %v2254, %v2027
    %v2256 = vsel %vm2255, %v2254, %v2027
    %vm2257 = vcmp.lt.s32.totalorder %v2256, %v2031
    %v2258 = vsel %vm2257, %v2256, %v2031
    %vm2259 = vcmp.lt.s32.totalorder %v2258, %v2035
    %v2260 = vsel %vm2259, %v2258, %v2035
    %vm2261 = vcmp.lt.s32.totalorder %v2260, %v2039
    %v2262 = vsel %vm2261, %v2260, %v2039
    %vm2263 = vcmp.lt.s32.totalorder %v2262, %v2043
    %v2264 = vsel %vm2263, %v2262, %v2043
    %vm2265 = vcmp.lt.s32.totalorder %v2264, %v2047
    %v2266 = vsel %vm2265, %v2264, %v2047
    %vm2267 = vcmp.lt.s32.totalorder %v2266, %v2051
    %v2268 = vsel %vm2267, %v2266, %v2051
    %vm2269 = vcmp.lt.s32.totalorder %v2268, %v2055
    %v2270 = vsel %vm2269, %v2268, %v2055
    %vm2271 = vcmp.lt.s32.totalorder %v2270, %v2059
    %v2272 = vsel %vm2271, %v2270, %v2059
    %vm2273 = vcmp.lt.s32.totalorder %v2272, %v2063
    %v2274 = vsel %vm2273, %v2272, %v2063
    %vm2275 = vcmp.lt.s32.totalorder %v2274, %v2067
    %v2276 = vsel %vm2275, %v2274, %v2067
    %vm2277 = vcmp.lt.s32.totalorder %v2276, %v2071
    %v2278 = vsel %vm2277, %v2276, %v2071
    %vm2279 = vcmp.lt.s32.totalorder %v2278, %v2075
    %v2280 = vsel %vm2279, %v2278, %v2075
    %v2281 = vrot.slane %v2280, 4
    %vm2282 = vcmp.lt.s32.totalorder %v2280, %v2281
    %v2283 = vsel %vm2282, %v2280, %v2281
    %v2284 = vrot.slane %v2283, 2
    %vm2285 = vcmp.lt.s32.totalorder %v2283, %v2284
    %v2286 = vsel %vm2285, %v2283, %v2284
    %v2287 = vrot.slane %v2286, 1
    %vm2288 = vcmp.lt.s32.totalorder %v2286, %v2287
    %v2289 = vsel %vm2288, %v2286, %v2287
    %vm2290 = vcmp.lt.s32.totalorder %v1952, %v1956
    %v2291 = vsel %vm2290, %v1952, %v1956
    %vm2292 = vcmp.lt.s32.totalorder %v2291, %v1960
    %v2293 = vsel %vm2292, %v2291, %v1960
    %vm2294 = vcmp.lt.s32.totalorder %v2293, %v1964
    %v2295 = vsel %vm2294, %v2293, %v1964
    %vm2296 = vcmp.lt.s32.totalorder %v2295, %v1968
    %v2297 = vsel %vm2296, %v2295, %v1968
    %vm2298 = vcmp.lt.s32.totalorder %v2297, %v1972
    %v2299 = vsel %vm2298, %v2297, %v1972
    %vm2300 = vcmp.lt.s32.totalorder %v2299, %v1976
    %v2301 = vsel %vm2300, %v2299, %v1976
    %vm2302 = vcmp.lt.s32.totalorder %v2301, %v1980
    %v2303 = vsel %vm2302, %v2301, %v1980
    %vm2304 = vcmp.lt.s32.totalorder %v2303, %v1984
    %v2305 = vsel %vm2304, %v2303, %v1984
    %vm2306 = vcmp.lt.s32.totalorder %v2305, %v1988
    %v2307 = vsel %vm2306, %v2305, %v1988
    %vm2308 = vcmp.lt.s32.totalorder %v2307, %v1992
    %v2309 = vsel %vm2308, %v2307, %v1992
    %vm2310 = vcmp.lt.s32.totalorder %v2309, %v1996
    %v2311 = vsel %vm2310, %v2309, %v1996
    %vm2312 = vcmp.lt.s32.totalorder %v2311, %v2000
    %v2313 = vsel %vm2312, %v2311, %v2000
    %vm2314 = vcmp.lt.s32.totalorder %v2313, %v2004
    %v2315 = vsel %vm2314, %v2313, %v2004
    %vm2316 = vcmp.lt.s32.totalorder %v2315, %v2008
    %v2317 = vsel %vm2316, %v2315, %v2008
    %vm2318 = vcmp.lt.s32.totalorder %v2317, %v2012
    %v2319 = vsel %vm2318, %v2317, %v2012
    %vm2320 = vcmp.lt.s32.totalorder %v2319, %v2016
    %v2321 = vsel %vm2320, %v2319, %v2016
    %vm2322 = vcmp.lt.s32.totalorder %v2321, %v2020
    %v2323 = vsel %vm2322, %v2321, %v2020
    %vm2324 = vcmp.lt.s32.totalorder %v2323, %v2024
    %v2325 = vsel %vm2324, %v2323, %v2024
    %vm2326 = vcmp.lt.s32.totalorder %v2325, %v2028
    %v2327 = vsel %vm2326, %v2325, %v2028
    %vm2328 = vcmp.lt.s32.totalorder %v2327, %v2032
    %v2329 = vsel %vm2328, %v2327, %v2032
    %vm2330 = vcmp.lt.s32.totalorder %v2329, %v2036
    %v2331 = vsel %vm2330, %v2329, %v2036
    %vm2332 = vcmp.lt.s32.totalorder %v2331, %v2040
    %v2333 = vsel %vm2332, %v2331, %v2040
    %vm2334 = vcmp.lt.s32.totalorder %v2333, %v2044
    %v2335 = vsel %vm2334, %v2333, %v2044
    %vm2336 = vcmp.lt.s32.totalorder %v2335, %v2048
    %v2337 = vsel %vm2336, %v2335, %v2048
    %vm2338 = vcmp.lt.s32.totalorder %v2337, %v2052
    %v2339 = vsel %vm2338, %v2337, %v2052
    %vm2340 = vcmp.lt.s32.totalorder %v2339, %v2056
    %v2341 = vsel %vm2340, %v2339, %v2056
    %vm2342 = vcmp.lt.s32.totalorder %v2341, %v2060
    %v2343 = vsel %vm2342, %v2341, %v2060
    %vm2344 = vcmp.lt.s32.totalorder %v2343, %v2064
    %v2345 = vsel %vm2344, %v2343, %v2064
    %vm2346 = vcmp.lt.s32.totalorder %v2345, %v2068
    %v2347 = vsel %vm2346, %v2345, %v2068
    %vm2348 = vcmp.lt.s32.totalorder %v2347, %v2072
    %v2349 = vsel %vm2348, %v2347, %v2072
    %vm2350 = vcmp.lt.s32.totalorder %v2349, %v2076
    %v2351 = vsel %vm2350, %v2349, %v2076
    %v2352 = vrot.slane %v2351, 4
    %vm2353 = vcmp.lt.s32.totalorder %v2351, %v2352
    %v2354 = vsel %vm2353, %v2351, %v2352
    %v2355 = vrot.slane %v2354, 2
    %vm2356 = vcmp.lt.s32.totalorder %v2354, %v2355
    %v2357 = vsel %vm2356, %v2354, %v2355
    %v2358 = vrot.slane %v2357, 1
    %vm2359 = vcmp.lt.s32.totalorder %v2357, %v2358
    %v2360 = vsel %vm2359, %v2357, %v2358
    %v2361 = vstv 0
    %v2362 = vadd.s32 %v2147, %v2361
    %v2363 = vadd.s32 %v2218, %v2361
    %v2364 = vadd.s32 %v2289, %v2361
    %v2365 = vadd.s32 %v2360, %v2361
    %vm2366 = vcmp.gt.f32.partialorder %v1676, -inf
    %vm2367 = vcmp.gt.f32.partialorder %v1713, -inf
    %vm2368 = vcmp.gt.f32.partialorder %v1750, -inf
    %vm2369 = vcmp.gt.f32.partialorder %v1787, -inf
    %v2370 = vsel %vm2366, %v1676, -inf
    %v2371 = vsel %vm2367, %v1713, -inf
    %v2372 = vsel %vm2368, %v1750, -inf
    %v2373 = vsel %vm2369, %v1787, -inf
    %v2374 = vsel %vm2366, %v2362, 0
    %v2375 = vsel %vm2367, %v2363, 0
    %v2376 = vsel %vm2368, %v2364, 0
    %v2377 = vsel %vm2369, %v2365, 0
    %s2378 = scalar_lea.vmem %s4, 128
    %v2379 = vld [vmem:[%s2378] sm:$0xf]
    %v2380 = vld [vmem:[%s2378 + $0x4] sm:$0xf]
    %v2381 = vld [vmem:[%s2378 + $0x8] sm:$0xf]
    %v2382 = vld [vmem:[%s2378 + $0xc] sm:$0xf]
    %v2383 = vld [vmem:[%s2378 + $0x10] sm:$0xf]
    %v2384 = vld [vmem:[%s2378 + $0x14] sm:$0xf]
    %v2385 = vld [vmem:[%s2378 + $0x18] sm:$0xf]
    %v2386 = vld [vmem:[%s2378 + $0x1c] sm:$0xf]
    %v2387 = vld [vmem:[%s2378 + $0x20] sm:$0xf]
    %v2388 = vld [vmem:[%s2378 + $0x24] sm:$0xf]
    %v2389 = vld [vmem:[%s2378 + $0x28] sm:$0xf]
    %v2390 = vld [vmem:[%s2378 + $0x2c] sm:$0xf]
    %v2391 = vld [vmem:[%s2378 + $0x30] sm:$0xf]
    %v2392 = vld [vmem:[%s2378 + $0x34] sm:$0xf]
    %v2393 = vld [vmem:[%s2378 + $0x38] sm:$0xf]
    %v2394 = vld [vmem:[%s2378 + $0x3c] sm:$0xf]
    %v2395 = vld [vmem:[%s2378 + $0x40] sm:$0xf]
    %v2396 = vld [vmem:[%s2378 + $0x44] sm:$0xf]
    %v2397 = vld [vmem:[%s2378 + $0x48] sm:$0xf]
    %v2398 = vld [vmem:[%s2378 + $0x4c] sm:$0xf]
    %v2399 = vld [vmem:[%s2378 + $0x50] sm:$0xf]
    %v2400 = vld [vmem:[%s2378 + $0x54] sm:$0xf]
    %v2401 = vld [vmem:[%s2378 + $0x58] sm:$0xf]
    %v2402 = vld [vmem:[%s2378 + $0x5c] sm:$0xf]
    %v2403 = vld [vmem:[%s2378 + $0x60] sm:$0xf]
    %v2404 = vld [vmem:[%s2378 + $0x64] sm:$0xf]
    %v2405 = vld [vmem:[%s2378 + $0x68] sm:$0xf]
    %v2406 = vld [vmem:[%s2378 + $0x6c] sm:$0xf]
    %v2407 = vld [vmem:[%s2378 + $0x70] sm:$0xf]
    %v2408 = vld [vmem:[%s2378 + $0x74] sm:$0xf]
    %v2409 = vld [vmem:[%s2378 + $0x78] sm:$0xf]
    %v2410 = vld [vmem:[%s2378 + $0x7c] sm:$0xf]
    %s2411 = scalar_lea.vmem %s5, 256
    %v2412 = vld [vmem:[%s2411] sm:$0xff]
    %v2413 = vld [vmem:[%s2411 + $0x8] sm:$0xff]
    %v2414 = vld [vmem:[%s2411 + $0x10] sm:$0xff]
    %v2415 = vld [vmem:[%s2411 + $0x18] sm:$0xff]
    %v2416 = vld [vmem:[%s2411 + $0x20] sm:$0xff]
    %v2417 = vld [vmem:[%s2411 + $0x28] sm:$0xff]
    %v2418 = vld [vmem:[%s2411 + $0x30] sm:$0xff]
    %v2419 = vld [vmem:[%s2411 + $0x38] sm:$0xff]
    %v2420 = vld [vmem:[%s2411 + $0x40] sm:$0xff]
    %v2421 = vld [vmem:[%s2411 + $0x48] sm:$0xff]
    %v2422 = vld [vmem:[%s2411 + $0x50] sm:$0xff]
    %v2423 = vld [vmem:[%s2411 + $0x58] sm:$0xff]
    %v2424 = vld [vmem:[%s2411 + $0x60] sm:$0xff]
    %v2425 = vld [vmem:[%s2411 + $0x68] sm:$0xff]
    %v2426 = vld [vmem:[%s2411 + $0x70] sm:$0xff]
    %v2427 = vld [vmem:[%s2411 + $0x78] sm:$0xff]
    %v2428 = vld [vmem:[%s2411 + $0x80] sm:$0xff]
    %v2429 = vld [vmem:[%s2411 + $0x88] sm:$0xff]
    %v2430 = vld [vmem:[%s2411 + $0x90] sm:$0xff]
    %v2431 = vld [vmem:[%s2411 + $0x98] sm:$0xff]
    %v2432 = vld [vmem:[%s2411 + $0xa0] sm:$0xff]
    %v2433 = vld [vmem:[%s2411 + $0xa8] sm:$0xff]
    %v2434 = vld [vmem:[%s2411 + $0xb0] sm:$0xff]
    %v2435 = vld [vmem:[%s2411 + $0xb8] sm:$0xff]
    %v2436 = vld [vmem:[%s2411 + $0xc0] sm:$0xff]
    %v2437 = vld [vmem:[%s2411 + $0xc8] sm:$0xff]
    %v2438 = vld [vmem:[%s2411 + $0xd0] sm:$0xff]
    %v2439 = vld [vmem:[%s2411 + $0xd8] sm:$0xff]
    %v2440 = vld [vmem:[%s2411 + $0xe0] sm:$0xff]
    %v2441 = vld [vmem:[%s2411 + $0xe8] sm:$0xff]
    %v2442 = vld [vmem:[%s2411 + $0xf0] sm:$0xff]
    %v2443 = vld [vmem:[%s2411 + $0xf8] sm:$0xff]
    %2445 = vset.pattern.permute.xlu0 0
    %2446 = vperm.xlu0 %2445, %v2412
    %v2447 = vpop.permute.xlu0 %2446
    %2450 = vset.pattern.permute.xlu0 0
    %2451 = vperm.xlu0 %2450, %v2413
    %v2452 = vpop.permute.xlu0 %2451
    %2455 = vset.pattern.permute.xlu0 0
    %2456 = vperm.xlu0 %2455, %v2414
    %v2457 = vpop.permute.xlu0 %2456
    %2460 = vset.pattern.permute.xlu0 0
    %2461 = vperm.xlu0 %2460, %v2415
    %v2462 = vpop.permute.xlu0 %2461
    %2465 = vset.pattern.permute.xlu0 0
    %2466 = vperm.xlu0 %2465, %v2416
    %v2467 = vpop.permute.xlu0 %2466
    %2470 = vset.pattern.permute.xlu0 0
    %2471 = vperm.xlu0 %2470, %v2417
    %v2472 = vpop.permute.xlu0 %2471
    %2475 = vset.pattern.permute.xlu0 0
    %2476 = vperm.xlu0 %2475, %v2418
    %v2477 = vpop.permute.xlu0 %2476
    %2480 = vset.pattern.permute.xlu0 0
    %2481 = vperm.xlu0 %2480, %v2419
    %v2482 = vpop.permute.xlu0 %2481
    %2485 = vset.pattern.permute.xlu0 0
    %2486 = vperm.xlu0 %2485, %v2420
    %v2487 = vpop.permute.xlu0 %2486
    %2490 = vset.pattern.permute.xlu0 0
    %2491 = vperm.xlu0 %2490, %v2421
    %v2492 = vpop.permute.xlu0 %2491
    %2495 = vset.pattern.permute.xlu0 0
    %2496 = vperm.xlu0 %2495, %v2422
    %v2497 = vpop.permute.xlu0 %2496
    %2500 = vset.pattern.permute.xlu0 0
    %2501 = vperm.xlu0 %2500, %v2423
    %v2502 = vpop.permute.xlu0 %2501
    %2505 = vset.pattern.permute.xlu0 0
    %2506 = vperm.xlu0 %2505, %v2424
    %v2507 = vpop.permute.xlu0 %2506
    %2510 = vset.pattern.permute.xlu0 0
    %2511 = vperm.xlu0 %2510, %v2425
    %v2512 = vpop.permute.xlu0 %2511
    %2515 = vset.pattern.permute.xlu0 0
    %2516 = vperm.xlu0 %2515, %v2426
    %v2517 = vpop.permute.xlu0 %2516
    %2520 = vset.pattern.permute.xlu0 0
    %2521 = vperm.xlu0 %2520, %v2427
    %v2522 = vpop.permute.xlu0 %2521
    %2525 = vset.pattern.permute.xlu0 0
    %2526 = vperm.xlu0 %2525, %v2428
    %v2527 = vpop.permute.xlu0 %2526
    %2530 = vset.pattern.permute.xlu0 0
    %2531 = vperm.xlu0 %2530, %v2429
    %v2532 = vpop.permute.xlu0 %2531
    %2535 = vset.pattern.permute.xlu0 0
    %2536 = vperm.xlu0 %2535, %v2430
    %v2537 = vpop.permute.xlu0 %2536
    %2540 = vset.pattern.permute.xlu0 0
    %2541 = vperm.xlu0 %2540, %v2431
    %v2542 = vpop.permute.xlu0 %2541
    %2545 = vset.pattern.permute.xlu0 0
    %2546 = vperm.xlu0 %2545, %v2432
    %v2547 = vpop.permute.xlu0 %2546
    %2550 = vset.pattern.permute.xlu0 0
    %2551 = vperm.xlu0 %2550, %v2433
    %v2552 = vpop.permute.xlu0 %2551
    %2555 = vset.pattern.permute.xlu0 0
    %2556 = vperm.xlu0 %2555, %v2434
    %v2557 = vpop.permute.xlu0 %2556
    %2560 = vset.pattern.permute.xlu0 0
    %2561 = vperm.xlu0 %2560, %v2435
    %v2562 = vpop.permute.xlu0 %2561
    %2565 = vset.pattern.permute.xlu0 0
    %2566 = vperm.xlu0 %2565, %v2436
    %v2567 = vpop.permute.xlu0 %2566
    %2570 = vset.pattern.permute.xlu0 0
    %2571 = vperm.xlu0 %2570, %v2437
    %v2572 = vpop.permute.xlu0 %2571
    %2575 = vset.pattern.permute.xlu0 0
    %2576 = vperm.xlu0 %2575, %v2438
    %v2577 = vpop.permute.xlu0 %2576
    %2580 = vset.pattern.permute.xlu0 0
    %2581 = vperm.xlu0 %2580, %v2439
    %v2582 = vpop.permute.xlu0 %2581
    %2585 = vset.pattern.permute.xlu0 0
    %2586 = vperm.xlu0 %2585, %v2440
    %v2587 = vpop.permute.xlu0 %2586
    %2590 = vset.pattern.permute.xlu0 0
    %2591 = vperm.xlu0 %2590, %v2441
    %v2592 = vpop.permute.xlu0 %2591
    %2595 = vset.pattern.permute.xlu0 0
    %2596 = vperm.xlu0 %2595, %v2442
    %v2597 = vpop.permute.xlu0 %2596
    %2600 = vset.pattern.permute.xlu0 0
    %2601 = vperm.xlu0 %2600, %v2443
    %v2602 = vpop.permute.xlu0 %2601
    %v2636 = vunpack.c.l.b16 %v2379
    %v2637 = vunpack.c.l.b16 %v2380
    %v2638 = vunpack.c.l.b16 %v2381
    %v2639 = vunpack.c.l.b16 %v2382
    %v2640 = vunpack.c.l.b16 %v2383
    %v2641 = vunpack.c.l.b16 %v2384
    %v2642 = vunpack.c.l.b16 %v2385
    %v2643 = vunpack.c.l.b16 %v2386
    %v2644 = vunpack.c.l.b16 %v2387
    %v2645 = vunpack.c.l.b16 %v2388
    %v2646 = vunpack.c.l.b16 %v2389
    %v2647 = vunpack.c.l.b16 %v2390
    %v2648 = vunpack.c.l.b16 %v2391
    %v2649 = vunpack.c.l.b16 %v2392
    %v2650 = vunpack.c.l.b16 %v2393
    %v2651 = vunpack.c.l.b16 %v2394
    %v2652 = vunpack.c.l.b16 %v2395
    %v2653 = vunpack.c.l.b16 %v2396
    %v2654 = vunpack.c.l.b16 %v2397
    %v2655 = vunpack.c.l.b16 %v2398
    %v2656 = vunpack.c.l.b16 %v2399
    %v2657 = vunpack.c.l.b16 %v2400
    %v2658 = vunpack.c.l.b16 %v2401
    %v2659 = vunpack.c.l.b16 %v2402
    %v2660 = vunpack.c.l.b16 %v2403
    %v2661 = vunpack.c.l.b16 %v2404
    %v2662 = vunpack.c.l.b16 %v2405
    %v2663 = vunpack.c.l.b16 %v2406
    %v2664 = vunpack.c.l.b16 %v2407
    %v2665 = vunpack.c.l.b16 %v2408
    %v2666 = vunpack.c.l.b16 %v2409
    %v2667 = vunpack.c.l.b16 %v2410
    %v2668 = vpack.c.b16 %v2637, %v2636
    %v2669 = vpack.c.b16 %v2639, %v2638
    %v2670 = vpack.c.b16 %v2641, %v2640
    %v2671 = vpack.c.b16 %v2643, %v2642
    %v2672 = vpack.c.b16 %v2645, %v2644
    %v2673 = vpack.c.b16 %v2647, %v2646
    %v2674 = vpack.c.b16 %v2649, %v2648
    %v2675 = vpack.c.b16 %v2651, %v2650
    %v2676 = vpack.c.b16 %v2653, %v2652
    %v2677 = vpack.c.b16 %v2655, %v2654
    %v2678 = vpack.c.b16 %v2657, %v2656
    %v2679 = vpack.c.b16 %v2659, %v2658
    %v2680 = vpack.c.b16 %v2661, %v2660
    %v2681 = vpack.c.b16 %v2663, %v2662
    %v2682 = vpack.c.b16 %v2665, %v2664
    %v2683 = vpack.c.b16 %v2667, %v2666
    %2700 = vmatprep.subr.bf16.mxu0 %v903
    %2701 = vmatpush1.bf16.msra.mxu0 %v902
    %2702 = vmatprep.subr.bf16.mxu0 %v907
    %2703 = vmatpush1.bf16.msra.mxu0 %v906
    %2704 = vmatprep.subr.bf16.mxu0 %v911
    %2705 = vmatpush1.bf16.msra.mxu0 %v910
    %2706 = vmatprep.subr.bf16.mxu0 %v915
    %2707 = vmatpush1.bf16.msra.mxu0 %v914
    %2708 = vmatprep.subr.bf16.mxu0 %v919
    %2709 = vmatpush1.bf16.msra.mxu0 %v918
    %2710 = vmatprep.subr.bf16.mxu0 %v923
    %2711 = vmatpush1.bf16.msra.mxu0 %v922
    %2712 = vmatprep.subr.bf16.mxu0 %v927
    %2713 = vmatpush1.bf16.msra.mxu0 %v926
    %2714 = vmatprep.subr.bf16.mxu0 %v931
    %2715 = vmatpush1.bf16.msra.mxu0 %v930
    %2716 = vmatprep.subr.bf16.mxu0 0
    %2717 = vmatpush1.bf16.msra.mxu0 0
    %2718 = vmatprep.subr.bf16.mxu0 0
    %2719 = vmatpush1.bf16.msra.mxu0 0
    %2720 = vmatprep.subr.bf16.mxu0 0
    %2721 = vmatpush1.bf16.msra.mxu0 0
    %2722 = vmatprep.subr.bf16.mxu0 0
    %2723 = vmatpush1.bf16.msra.mxu0 0
    %2724 = vmatprep.subr.bf16.mxu0 0
    %2725 = vmatpush1.bf16.msra.mxu0 0
    %2726 = vmatprep.subr.bf16.mxu0 0
    %2727 = vmatpush1.bf16.msra.mxu0 0
    %2728 = vmatprep.subr.bf16.mxu0 0
    %2729 = vmatpush1.bf16.msra.mxu0 0
    %2730 = vmatprep.subr.bf16.mxu0 0
    %2731 = vmatpush1.bf16.msra.mxu0 0
    %2732 = vmatprep.mubr.bf16.mxu0 0
    %2733 = vmatmul.mubr.bf16.gmra.mrb[0].mxu0 %v2668
    %v2734 = vpop.f32.mrb[0].mxu0
    %v2735 = vadd.f32 %v2447, %v2734
    %v2736 = vpop.f32.mrb[0].mxu0
    %v2737 = vadd.f32 %v2447, %v2736
    %v2738 = vpop.f32.mrb[0].mxu0
    %v2739 = vadd.f32 %v2452, %v2738
    %v2740 = vpop.f32.mrb[0].mxu0
    %v2741 = vadd.f32 %v2452, %v2740
    %2742 = vmatprep.mubr.bf16.mxu0 0
    %2743 = vmatmul.mubr.bf16.gmra.mrb[0].mxu0 %v2669
    %v2744 = vpop.f32.mrb[0].mxu0
    %v2745 = vadd.f32 %v2457, %v2744
    %v2746 = vpop.f32.mrb[0].mxu0
    %v2747 = vadd.f32 %v2457, %v2746
    %v2748 = vpop.f32.mrb[0].mxu0
    %v2749 = vadd.f32 %v2462, %v2748
    %v2750 = vpop.f32.mrb[0].mxu0
    %v2751 = vadd.f32 %v2462, %v2750
    %2752 = vmatprep.mubr.bf16.mxu0 0
    %2753 = vmatmul.mubr.bf16.gmra.mrb[0].mxu0 %v2670
    %v2754 = vpop.f32.mrb[0].mxu0
    %v2755 = vadd.f32 %v2467, %v2754
    %v2756 = vpop.f32.mrb[0].mxu0
    %v2757 = vadd.f32 %v2467, %v2756
    %v2758 = vpop.f32.mrb[0].mxu0
    %v2759 = vadd.f32 %v2472, %v2758
    %v2760 = vpop.f32.mrb[0].mxu0
    %v2761 = vadd.f32 %v2472, %v2760
    %2762 = vmatprep.mubr.bf16.mxu0 0
    %2763 = vmatmul.mubr.bf16.gmra.mrb[0].mxu0 %v2671
    %v2764 = vpop.f32.mrb[0].mxu0
    %v2765 = vadd.f32 %v2477, %v2764
    %v2766 = vpop.f32.mrb[0].mxu0
    %v2767 = vadd.f32 %v2477, %v2766
    %v2768 = vpop.f32.mrb[0].mxu0
    %v2769 = vadd.f32 %v2482, %v2768
    %v2770 = vpop.f32.mrb[0].mxu0
    %v2771 = vadd.f32 %v2482, %v2770
    %2772 = vmatprep.mubr.bf16.mxu0 0
    %2773 = vmatmul.mubr.bf16.gmra.mrb[0].mxu0 %v2672
    %v2774 = vpop.f32.mrb[0].mxu0
    %v2775 = vadd.f32 %v2487, %v2774
    %v2776 = vpop.f32.mrb[0].mxu0
    %v2777 = vadd.f32 %v2487, %v2776
    %v2778 = vpop.f32.mrb[0].mxu0
    %v2779 = vadd.f32 %v2492, %v2778
    %v2780 = vpop.f32.mrb[0].mxu0
    %v2781 = vadd.f32 %v2492, %v2780
    %2782 = vmatprep.mubr.bf16.mxu0 0
    %2783 = vmatmul.mubr.bf16.gmra.mrb[0].mxu0 %v2673
    %v2784 = vpop.f32.mrb[0].mxu0
    %v2785 = vadd.f32 %v2497, %v2784
    %v2786 = vpop.f32.mrb[0].mxu0
    %v2787 = vadd.f32 %v2497, %v2786
    %v2788 = vpop.f32.mrb[0].mxu0
    %v2789 = vadd.f32 %v2502, %v2788
    %v2790 = vpop.f32.mrb[0].mxu0
    %v2791 = vadd.f32 %v2502, %v2790
    %2792 = vmatprep.mubr.bf16.mxu0 0
    %2793 = vmatmul.mubr.bf16.gmra.mrb[0].mxu0 %v2674
    %v2794 = vpop.f32.mrb[0].mxu0
    %v2795 = vadd.f32 %v2507, %v2794
    %v2796 = vpop.f32.mrb[0].mxu0
    %v2797 = vadd.f32 %v2507, %v2796
    %v2798 = vpop.f32.mrb[0].mxu0
    %v2799 = vadd.f32 %v2512, %v2798
    %v2800 = vpop.f32.mrb[0].mxu0
    %v2801 = vadd.f32 %v2512, %v2800
    %2802 = vmatprep.mubr.bf16.mxu0 0
    %2803 = vmatmul.mubr.bf16.gmra.mrb[0].mxu0 %v2675
    %v2804 = vpop.f32.mrb[0].mxu0
    %v2805 = vadd.f32 %v2517, %v2804
    %v2806 = vpop.f32.mrb[0].mxu0
    %v2807 = vadd.f32 %v2517, %v2806
    %v2808 = vpop.f32.mrb[0].mxu0
    %v2809 = vadd.f32 %v2522, %v2808
    %v2810 = vpop.f32.mrb[0].mxu0
    %v2811 = vadd.f32 %v2522, %v2810
    %2812 = vmatprep.mubr.bf16.mxu0 0
    %2813 = vmatmul.mubr.bf16.gmra.mrb[0].mxu0 %v2676
    %v2814 = vpop.f32.mrb[0].mxu0
    %v2815 = vadd.f32 %v2527, %v2814
    %v2816 = vpop.f32.mrb[0].mxu0
    %v2817 = vadd.f32 %v2527, %v2816
    %v2818 = vpop.f32.mrb[0].mxu0
    %v2819 = vadd.f32 %v2532, %v2818
    %v2820 = vpop.f32.mrb[0].mxu0
    %v2821 = vadd.f32 %v2532, %v2820
    %2822 = vmatprep.mubr.bf16.mxu0 0
    %2823 = vmatmul.mubr.bf16.gmra.mrb[0].mxu0 %v2677
    %v2824 = vpop.f32.mrb[0].mxu0
    %v2825 = vadd.f32 %v2537, %v2824
    %v2826 = vpop.f32.mrb[0].mxu0
    %v2827 = vadd.f32 %v2537, %v2826
    %v2828 = vpop.f32.mrb[0].mxu0
    %v2829 = vadd.f32 %v2542, %v2828
    %v2830 = vpop.f32.mrb[0].mxu0
    %v2831 = vadd.f32 %v2542, %v2830
    %2832 = vmatprep.mubr.bf16.mxu0 0
    %2833 = vmatmul.mubr.bf16.gmra.mrb[0].mxu0 %v2678
    %v2834 = vpop.f32.mrb[0].mxu0
    %v2835 = vadd.f32 %v2547, %v2834
    %v2836 = vpop.f32.mrb[0].mxu0
    %v2837 = vadd.f32 %v2547, %v2836
    %v2838 = vpop.f32.mrb[0].mxu0
    %v2839 = vadd.f32 %v2552, %v2838
    %v2840 = vpop.f32.mrb[0].mxu0
    %v2841 = vadd.f32 %v2552, %v2840
    %2842 = vmatprep.mubr.bf16.mxu0 0
    %2843 = vmatmul.mubr.bf16.gmra.mrb[0].mxu0 %v2679
    %v2844 = vpop.f32.mrb[0].mxu0
    %v2845 = vadd.f32 %v2557, %v2844
    %v2846 = vpop.f32.mrb[0].mxu0
    %v2847 = vadd.f32 %v2557, %v2846
    %v2848 = vpop.f32.mrb[0].mxu0
    %v2849 = vadd.f32 %v2562, %v2848
    %v2850 = vpop.f32.mrb[0].mxu0
    %v2851 = vadd.f32 %v2562, %v2850
    %2852 = vmatprep.mubr.bf16.mxu0 0
    %2853 = vmatmul.mubr.bf16.gmra.mrb[0].mxu0 %v2680
    %v2854 = vpop.f32.mrb[0].mxu0
    %v2855 = vadd.f32 %v2567, %v2854
    %v2856 = vpop.f32.mrb[0].mxu0
    %v2857 = vadd.f32 %v2567, %v2856
    %v2858 = vpop.f32.mrb[0].mxu0
    %v2859 = vadd.f32 %v2572, %v2858
    %v2860 = vpop.f32.mrb[0].mxu0
    %v2861 = vadd.f32 %v2572, %v2860
    %2862 = vmatprep.mubr.bf16.mxu0 0
    %2863 = vmatmul.mubr.bf16.gmra.mrb[0].mxu0 %v2681
    %v2864 = vpop.f32.mrb[0].mxu0
    %v2865 = vadd.f32 %v2577, %v2864
    %v2866 = vpop.f32.mrb[0].mxu0
    %v2867 = vadd.f32 %v2577, %v2866
    %v2868 = vpop.f32.mrb[0].mxu0
    %v2869 = vadd.f32 %v2582, %v2868
    %v2870 = vpop.f32.mrb[0].mxu0
    %v2871 = vadd.f32 %v2582, %v2870
    %2872 = vmatprep.mubr.bf16.mxu0 0
    %2873 = vmatmul.mubr.bf16.gmra.mrb[0].mxu0 %v2682
    %v2874 = vpop.f32.mrb[0].mxu0
    %v2875 = vadd.f32 %v2587, %v2874
    %v2876 = vpop.f32.mrb[0].mxu0
    %v2877 = vadd.f32 %v2587, %v2876
    %v2878 = vpop.f32.mrb[0].mxu0
    %v2879 = vadd.f32 %v2592, %v2878
    %v2880 = vpop.f32.mrb[0].mxu0
    %v2881 = vadd.f32 %v2592, %v2880
    %2882 = vmatprep.mubr.bf16.mxu0 0
    %2883 = vmatmul.mubr.bf16.gmra.mrb[0].mxu0 %v2683
    %v2884 = vpop.f32.mrb[0].mxu0
    %v2885 = vadd.f32 %v2597, %v2884
    %v2886 = vpop.f32.mrb[0].mxu0
    %v2887 = vadd.f32 %v2597, %v2886
    %v2888 = vpop.f32.mrb[0].mxu0
    %v2889 = vadd.f32 %v2602, %v2888
    %v2890 = vpop.f32.mrb[0].mxu0
    %v2891 = vadd.f32 %v2602, %v2890
    %2892 = vdwg.mxu0
    %2893 = vmatprep.subr.bf16.mxu0 %v905
    %2894 = vmatpush1.bf16.msra.mxu0 %v904
    %2895 = vmatprep.subr.bf16.mxu0 %v909
    %2896 = vmatpush1.bf16.msra.mxu0 %v908
    %2897 = vmatprep.subr.bf16.mxu0 %v913
    %2898 = vmatpush1.bf16.msra.mxu0 %v912
    %2899 = vmatprep.subr.bf16.mxu0 %v917
    %2900 = vmatpush1.bf16.msra.mxu0 %v916
    %2901 = vmatprep.subr.bf16.mxu0 %v921
    %2902 = vmatpush1.bf16.msra.mxu0 %v920
    %2903 = vmatprep.subr.bf16.mxu0 %v925
    %2904 = vmatpush1.bf16.msra.mxu0 %v924
    %2905 = vmatprep.subr.bf16.mxu0 %v929
    %2906 = vmatpush1.bf16.msra.mxu0 %v928
    %2907 = vmatprep.subr.bf16.mxu0 %v933
    %2908 = vmatpush1.bf16.msra.mxu0 %v932
    %2909 = vmatprep.subr.bf16.mxu0 0
    %2910 = vmatpush1.bf16.msra.mxu0 0
    %2911 = vmatprep.subr.bf16.mxu0 0
    %2912 = vmatpush1.bf16.msra.mxu0 0
    %2913 = vmatprep.subr.bf16.mxu0 0
    %2914 = vmatpush1.bf16.msra.mxu0 0
    %2915 = vmatprep.subr.bf16.mxu0 0
    %2916 = vmatpush1.bf16.msra.mxu0 0
    %2917 = vmatprep.subr.bf16.mxu0 0
    %2918 = vmatpush1.bf16.msra.mxu0 0
    %2919 = vmatprep.subr.bf16.mxu0 0
    %2920 = vmatpush1.bf16.msra.mxu0 0
    %2921 = vmatprep.subr.bf16.mxu0 0
    %2922 = vmatpush1.bf16.msra.mxu0 0
    %2923 = vmatprep.subr.bf16.mxu0 0
    %2924 = vmatpush1.bf16.msra.mxu0 0
    %2925 = vmatprep.mubr.bf16.mxu0 0
    %2926 = vmatmul.mubr.bf16.gmra.mrb[0].mxu0 %v2668
    %v2927 = vpop.f32.mrb[0].mxu0
    %v2928 = vadd.f32 %v2447, %v2927
    %v2929 = vpop.f32.mrb[0].mxu0
    %v2930 = vadd.f32 %v2447, %v2929
    %v2931 = vpop.f32.mrb[0].mxu0
    %v2932 = vadd.f32 %v2452, %v2931
    %v2933 = vpop.f32.mrb[0].mxu0
    %v2934 = vadd.f32 %v2452, %v2933
    %2935 = vmatprep.mubr.bf16.mxu0 0
    %2936 = vmatmul.mubr.bf16.gmra.mrb[0].mxu0 %v2669
    %v2937 = vpop.f32.mrb[0].mxu0
    %v2938 = vadd.f32 %v2457, %v2937
    %v2939 = vpop.f32.mrb[0].mxu0
    %v2940 = vadd.f32 %v2457, %v2939
    %v2941 = vpop.f32.mrb[0].mxu0
    %v2942 = vadd.f32 %v2462, %v2941
    %v2943 = vpop.f32.mrb[0].mxu0
    %v2944 = vadd.f32 %v2462, %v2943
    %2945 = vmatprep.mubr.bf16.mxu0 0
    %2946 = vmatmul.mubr.bf16.gmra.mrb[0].mxu0 %v2670
    %v2947 = vpop.f32.mrb[0].mxu0
    %v2948 = vadd.f32 %v2467, %v2947
    %v2949 = vpop.f32.mrb[0].mxu0
    %v2950 = vadd.f32 %v2467, %v2949
    %v2951 = vpop.f32.mrb[0].mxu0
    %v2952 = vadd.f32 %v2472, %v2951
    %v2953 = vpop.f32.mrb[0].mxu0
    %v2954 = vadd.f32 %v2472, %v2953
    %2955 = vmatprep.mubr.bf16.mxu0 0
    %2956 = vmatmul.mubr.bf16.gmra.mrb[0].mxu0 %v2671
    %v2957 = vpop.f32.mrb[0].mxu0
    %v2958 = vadd.f32 %v2477, %v2957
    %v2959 = vpop.f32.mrb[0].mxu0
    %v2960 = vadd.f32 %v2477, %v2959
    %v2961 = vpop.f32.mrb[0].mxu0
    %v2962 = vadd.f32 %v2482, %v2961
    %v2963 = vpop.f32.mrb[0].mxu0
    %v2964 = vadd.f32 %v2482, %v2963
    %2965 = vmatprep.mubr.bf16.mxu0 0
    %2966 = vmatmul.mubr.bf16.gmra.mrb[0].mxu0 %v2672
    %v2967 = vpop.f32.mrb[0].mxu0
    %v2968 = vadd.f32 %v2487, %v2967
    %v2969 = vpop.f32.mrb[0].mxu0
    %v2970 = vadd.f32 %v2487, %v2969
    %v2971 = vpop.f32.mrb[0].mxu0
    %v2972 = vadd.f32 %v2492, %v2971
    %v2973 = vpop.f32.mrb[0].mxu0
    %v2974 = vadd.f32 %v2492, %v2973
    %2975 = vmatprep.mubr.bf16.mxu0 0
    %2976 = vmatmul.mubr.bf16.gmra.mrb[0].mxu0 %v2673
    %v2977 = vpop.f32.mrb[0].mxu0
    %v2978 = vadd.f32 %v2497, %v2977
    %v2979 = vpop.f32.mrb[0].mxu0
    %v2980 = vadd.f32 %v2497, %v2979
    %v2981 = vpop.f32.mrb[0].mxu0
    %v2982 = vadd.f32 %v2502, %v2981
    %v2983 = vpop.f32.mrb[0].mxu0
    %v2984 = vadd.f32 %v2502, %v2983
    %2985 = vmatprep.mubr.bf16.mxu0 0
    %2986 = vmatmul.mubr.bf16.gmra.mrb[0].mxu0 %v2674
    %v2987 = vpop.f32.mrb[0].mxu0
    %v2988 = vadd.f32 %v2507, %v2987
    %v2989 = vpop.f32.mrb[0].mxu0
    %v2990 = vadd.f32 %v2507, %v2989
    %v2991 = vpop.f32.mrb[0].mxu0
    %v2992 = vadd.f32 %v2512, %v2991
    %v2993 = vpop.f32.mrb[0].mxu0
    %v2994 = vadd.f32 %v2512, %v2993
    %2995 = vmatprep.mubr.bf16.mxu0 0
    %2996 = vmatmul.mubr.bf16.gmra.mrb[0].mxu0 %v2675
    %v2997 = vpop.f32.mrb[0].mxu0
    %v2998 = vadd.f32 %v2517, %v2997
    %v2999 = vpop.f32.mrb[0].mxu0
    %v3000 = vadd.f32 %v2517, %v2999
    %v3001 = vpop.f32.mrb[0].mxu0
    %v3002 = vadd.f32 %v2522, %v3001
    %v3003 = vpop.f32.mrb[0].mxu0
    %v3004 = vadd.f32 %v2522, %v3003
    %3005 = vmatprep.mubr.bf16.mxu0 0
    %3006 = vmatmul.mubr.bf16.gmra.mrb[0].mxu0 %v2676
    %v3007 = vpop.f32.mrb[0].mxu0
    %v3008 = vadd.f32 %v2527, %v3007
    %v3009 = vpop.f32.mrb[0].mxu0
    %v3010 = vadd.f32 %v2527, %v3009
    %v3011 = vpop.f32.mrb[0].mxu0
    %v3012 = vadd.f32 %v2532, %v3011
    %v3013 = vpop.f32.mrb[0].mxu0
    %v3014 = vadd.f32 %v2532, %v3013
    %3015 = vmatprep.mubr.bf16.mxu0 0
    %3016 = vmatmul.mubr.bf16.gmra.mrb[0].mxu0 %v2677
    %v3017 = vpop.f32.mrb[0].mxu0
    %v3018 = vadd.f32 %v2537, %v3017
    %v3019 = vpop.f32.mrb[0].mxu0
    %v3020 = vadd.f32 %v2537, %v3019
    %v3021 = vpop.f32.mrb[0].mxu0
    %v3022 = vadd.f32 %v2542, %v3021
    %v3023 = vpop.f32.mrb[0].mxu0
    %v3024 = vadd.f32 %v2542, %v3023
    %3025 = vmatprep.mubr.bf16.mxu0 0
    %3026 = vmatmul.mubr.bf16.gmra.mrb[0].mxu0 %v2678
    %v3027 = vpop.f32.mrb[0].mxu0
    %v3028 = vadd.f32 %v2547, %v3027
    %v3029 = vpop.f32.mrb[0].mxu0
    %v3030 = vadd.f32 %v2547, %v3029
    %v3031 = vpop.f32.mrb[0].mxu0
    %v3032 = vadd.f32 %v2552, %v3031
    %v3033 = vpop.f32.mrb[0].mxu0
    %v3034 = vadd.f32 %v2552, %v3033
    %3035 = vmatprep.mubr.bf16.mxu0 0
    %3036 = vmatmul.mubr.bf16.gmra.mrb[0].mxu0 %v2679
    %v3037 = vpop.f32.mrb[0].mxu0
    %v3038 = vadd.f32 %v2557, %v3037
    %v3039 = vpop.f32.mrb[0].mxu0
    %v3040 = vadd.f32 %v2557, %v3039
    %v3041 = vpop.f32.mrb[0].mxu0
    %v3042 = vadd.f32 %v2562, %v3041
    %v3043 = vpop.f32.mrb[0].mxu0
    %v3044 = vadd.f32 %v2562, %v3043
    %3045 = vmatprep.mubr.bf16.mxu0 0
    %3046 = vmatmul.mubr.bf16.gmra.mrb[0].mxu0 %v2680
    %v3047 = vpop.f32.mrb[0].mxu0
    %v3048 = vadd.f32 %v2567, %v3047
    %v3049 = vpop.f32.mrb[0].mxu0
    %v3050 = vadd.f32 %v2567, %v3049
    %v3051 = vpop.f32.mrb[0].mxu0
    %v3052 = vadd.f32 %v2572, %v3051
    %v3053 = vpop.f32.mrb[0].mxu0
    %v3054 = vadd.f32 %v2572, %v3053
    %3055 = vmatprep.mubr.bf16.mxu0 0
    %3056 = vmatmul.mubr.bf16.gmra.mrb[0].mxu0 %v2681
    %v3057 = vpop.f32.mrb[0].mxu0
    %v3058 = vadd.f32 %v2577, %v3057
    %v3059 = vpop.f32.mrb[0].mxu0
    %v3060 = vadd.f32 %v2577, %v3059
    %v3061 = vpop.f32.mrb[0].mxu0
    %v3062 = vadd.f32 %v2582, %v3061
    %v3063 = vpop.f32.mrb[0].mxu0
    %v3064 = vadd.f32 %v2582, %v3063
    %3065 = vmatprep.mubr.bf16.mxu0 0
    %3066 = vmatmul.mubr.bf16.gmra.mrb[0].mxu0 %v2682
    %v3067 = vpop.f32.mrb[0].mxu0
    %v3068 = vadd.f32 %v2587, %v3067
    %v3069 = vpop.f32.mrb[0].mxu0
    %v3070 = vadd.f32 %v2587, %v3069
    %v3071 = vpop.f32.mrb[0].mxu0
    %v3072 = vadd.f32 %v2592, %v3071
    %v3073 = vpop.f32.mrb[0].mxu0
    %v3074 = vadd.f32 %v2592, %v3073
    %3075 = vmatprep.mubr.bf16.mxu0 0
    %3076 = vmatmul.mubr.bf16.gmra.mrb[0].mxu0 %v2683
    %v3077 = vpop.f32.mrb[0].mxu0
    %v3078 = vadd.f32 %v2597, %v3077
    %v3079 = vpop.f32.mrb[0].mxu0
    %v3080 = vadd.f32 %v2597, %v3079
    %v3081 = vpop.f32.mrb[0].mxu0
    %v3082 = vadd.f32 %v2602, %v3081
    %v3083 = vpop.f32.mrb[0].mxu0
    %v3084 = vadd.f32 %v2602, %v3083
    %3085 = vdwg.mxu0
    %v3086 = vmax.f32 %v2735, %v2739
    %v3087 = vmax.f32 %v3086, %v2745
    %v3088 = vmax.f32 %v3087, %v2749
    %v3089 = vmax.f32 %v3088, %v2755
    %v3090 = vmax.f32 %v3089, %v2759
    %v3091 = vmax.f32 %v3090, %v2765
    %v3092 = vmax.f32 %v3091, %v2769
    %v3093 = vmax.f32 %v3092, %v2775
    %v3094 = vmax.f32 %v3093, %v2779
    %v3095 = vmax.f32 %v3094, %v2785
    %v3096 = vmax.f32 %v3095, %v2789
    %v3097 = vmax.f32 %v3096, %v2795
    %v3098 = vmax.f32 %v3097, %v2799
    %v3099 = vmax.f32 %v3098, %v2805
    %v3100 = vmax.f32 %v3099, %v2809
    %v3101 = vmax.f32 %v3100, %v2815
    %v3102 = vmax.f32 %v3101, %v2819
    %v3103 = vmax.f32 %v3102, %v2825
    %v3104 = vmax.f32 %v3103, %v2829
    %v3105 = vmax.f32 %v3104, %v2835
    %v3106 = vmax.f32 %v3105, %v2839
    %v3107 = vmax.f32 %v3106, %v2845
    %v3108 = vmax.f32 %v3107, %v2849
    %v3109 = vmax.f32 %v3108, %v2855
    %v3110 = vmax.f32 %v3109, %v2859
    %v3111 = vmax.f32 %v3110, %v2865
    %v3112 = vmax.f32 %v3111, %v2869
    %v3113 = vmax.f32 %v3112, %v2875
    %v3114 = vmax.f32 %v3113, %v2879
    %v3115 = vmax.f32 %v3114, %v2885
    %v3116 = vmax.f32 %v3115, %v2889
    %v3117 = vrot.slane %v3116, 4
    %v3118 = vmax.f32 %v3116, %v3117
    %v3119 = vrot.slane %v3118, 2
    %v3120 = vmax.f32 %v3118, %v3119
    %v3121 = vrot.slane %v3120, 1
    %v3122 = vmax.f32 %v3120, %v3121
    %v3123 = vmax.f32 %v2737, %v2741
    %v3124 = vmax.f32 %v3123, %v2747
    %v3125 = vmax.f32 %v3124, %v2751
    %v3126 = vmax.f32 %v3125, %v2757
    %v3127 = vmax.f32 %v3126, %v2761
    %v3128 = vmax.f32 %v3127, %v2767
    %v3129 = vmax.f32 %v3128, %v2771
    %v3130 = vmax.f32 %v3129, %v2777
    %v3131 = vmax.f32 %v3130, %v2781
    %v3132 = vmax.f32 %v3131, %v2787
    %v3133 = vmax.f32 %v3132, %v2791
    %v3134 = vmax.f32 %v3133, %v2797
    %v3135 = vmax.f32 %v3134, %v2801
    %v3136 = vmax.f32 %v3135, %v2807
    %v3137 = vmax.f32 %v3136, %v2811
    %v3138 = vmax.f32 %v3137, %v2817
    %v3139 = vmax.f32 %v3138, %v2821
    %v3140 = vmax.f32 %v3139, %v2827
    %v3141 = vmax.f32 %v3140, %v2831
    %v3142 = vmax.f32 %v3141, %v2837
    %v3143 = vmax.f32 %v3142, %v2841
    %v3144 = vmax.f32 %v3143, %v2847
    %v3145 = vmax.f32 %v3144, %v2851
    %v3146 = vmax.f32 %v3145, %v2857
    %v3147 = vmax.f32 %v3146, %v2861
    %v3148 = vmax.f32 %v3147, %v2867
    %v3149 = vmax.f32 %v3148, %v2871
    %v3150 = vmax.f32 %v3149, %v2877
    %v3151 = vmax.f32 %v3150, %v2881
    %v3152 = vmax.f32 %v3151, %v2887
    %v3153 = vmax.f32 %v3152, %v2891
    %v3154 = vrot.slane %v3153, 4
    %v3155 = vmax.f32 %v3153, %v3154
    %v3156 = vrot.slane %v3155, 2
    %v3157 = vmax.f32 %v3155, %v3156
    %v3158 = vrot.slane %v3157, 1
    %v3159 = vmax.f32 %v3157, %v3158
    %v3160 = vmax.f32 %v2928, %v2932
    %v3161 = vmax.f32 %v3160, %v2938
    %v3162 = vmax.f32 %v3161, %v2942
    %v3163 = vmax.f32 %v3162, %v2948
    %v3164 = vmax.f32 %v3163, %v2952
    %v3165 = vmax.f32 %v3164, %v2958
    %v3166 = vmax.f32 %v3165, %v2962
    %v3167 = vmax.f32 %v3166, %v2968
    %v3168 = vmax.f32 %v3167, %v2972
    %v3169 = vmax.f32 %v3168, %v2978
    %v3170 = vmax.f32 %v3169, %v2982
    %v3171 = vmax.f32 %v3170, %v2988
    %v3172 = vmax.f32 %v3171, %v2992
    %v3173 = vmax.f32 %v3172, %v2998
    %v3174 = vmax.f32 %v3173, %v3002
    %v3175 = vmax.f32 %v3174, %v3008
    %v3176 = vmax.f32 %v3175, %v3012
    %v3177 = vmax.f32 %v3176, %v3018
    %v3178 = vmax.f32 %v3177, %v3022
    %v3179 = vmax.f32 %v3178, %v3028
    %v3180 = vmax.f32 %v3179, %v3032
    %v3181 = vmax.f32 %v3180, %v3038
    %v3182 = vmax.f32 %v3181, %v3042
    %v3183 = vmax.f32 %v3182, %v3048
    %v3184 = vmax.f32 %v3183, %v3052
    %v3185 = vmax.f32 %v3184, %v3058
    %v3186 = vmax.f32 %v3185, %v3062
    %v3187 = vmax.f32 %v3186, %v3068
    %v3188 = vmax.f32 %v3187, %v3072
    %v3189 = vmax.f32 %v3188, %v3078
    %v3190 = vmax.f32 %v3189, %v3082
    %v3191 = vrot.slane %v3190, 4
    %v3192 = vmax.f32 %v3190, %v3191
    %v3193 = vrot.slane %v3192, 2
    %v3194 = vmax.f32 %v3192, %v3193
    %v3195 = vrot.slane %v3194, 1
    %v3196 = vmax.f32 %v3194, %v3195
    %v3197 = vmax.f32 %v2930, %v2934
    %v3198 = vmax.f32 %v3197, %v2940
    %v3199 = vmax.f32 %v3198, %v2944
    %v3200 = vmax.f32 %v3199, %v2950
    %v3201 = vmax.f32 %v3200, %v2954
    %v3202 = vmax.f32 %v3201, %v2960
    %v3203 = vmax.f32 %v3202, %v2964
    %v3204 = vmax.f32 %v3203, %v2970
    %v3205 = vmax.f32 %v3204, %v2974
    %v3206 = vmax.f32 %v3205, %v2980
    %v3207 = vmax.f32 %v3206, %v2984
    %v3208 = vmax.f32 %v3207, %v2990
    %v3209 = vmax.f32 %v3208, %v2994
    %v3210 = vmax.f32 %v3209, %v3000
    %v3211 = vmax.f32 %v3210, %v3004
    %v3212 = vmax.f32 %v3211, %v3010
    %v3213 = vmax.f32 %v3212, %v3014
    %v3214 = vmax.f32 %v3213, %v3020
    %v3215 = vmax.f32 %v3214, %v3024
    %v3216 = vmax.f32 %v3215, %v3030
    %v3217 = vmax.f32 %v3216, %v3034
    %v3218 = vmax.f32 %v3217, %v3040
    %v3219 = vmax.f32 %v3218, %v3044
    %v3220 = vmax.f32 %v3219, %v3050
    %v3221 = vmax.f32 %v3220, %v3054
    %v3222 = vmax.f32 %v3221, %v3060
    %v3223 = vmax.f32 %v3222, %v3064
    %v3224 = vmax.f32 %v3223, %v3070
    %v3225 = vmax.f32 %v3224, %v3074
    %v3226 = vmax.f32 %v3225, %v3080
    %v3227 = vmax.f32 %v3226, %v3084
    %v3228 = vrot.slane %v3227, 4
    %v3229 = vmax.f32 %v3227, %v3228
    %v3230 = vrot.slane %v3229, 2
    %v3231 = vmax.f32 %v3229, %v3230
    %v3232 = vrot.slane %v3231, 1
    %v3233 = vmax.f32 %v3231, %v3232
    %vm3234 = vcmp.eq.f32.partialorder %v2735, %v3122
    %vm3235 = vcmp.eq.f32.partialorder %v2737, %v3159
    %vm3236 = vcmp.eq.f32.partialorder %v2928, %v3196
    %vm3237 = vcmp.eq.f32.partialorder %v2930, %v3233
    %vm3238 = vcmp.eq.f32.partialorder %v2739, %v3122
    %vm3239 = vcmp.eq.f32.partialorder %v2741, %v3159
    %vm3240 = vcmp.eq.f32.partialorder %v2932, %v3196
    %vm3241 = vcmp.eq.f32.partialorder %v2934, %v3233
    %vm3242 = vcmp.eq.f32.partialorder %v2745, %v3122
    %vm3243 = vcmp.eq.f32.partialorder %v2747, %v3159
    %vm3244 = vcmp.eq.f32.partialorder %v2938, %v3196
    %vm3245 = vcmp.eq.f32.partialorder %v2940, %v3233
    %vm3246 = vcmp.eq.f32.partialorder %v2749, %v3122
    %vm3247 = vcmp.eq.f32.partialorder %v2751, %v3159
    %vm3248 = vcmp.eq.f32.partialorder %v2942, %v3196
    %vm3249 = vcmp.eq.f32.partialorder %v2944, %v3233
    %vm3250 = vcmp.eq.f32.partialorder %v2755, %v3122
    %vm3251 = vcmp.eq.f32.partialorder %v2757, %v3159
    %vm3252 = vcmp.eq.f32.partialorder %v2948, %v3196
    %vm3253 = vcmp.eq.f32.partialorder %v2950, %v3233
    %vm3254 = vcmp.eq.f32.partialorder %v2759, %v3122
    %vm3255 = vcmp.eq.f32.partialorder %v2761, %v3159
    %vm3256 = vcmp.eq.f32.partialorder %v2952, %v3196
    %vm3257 = vcmp.eq.f32.partialorder %v2954, %v3233
    %vm3258 = vcmp.eq.f32.partialorder %v2765, %v3122
    %vm3259 = vcmp.eq.f32.partialorder %v2767, %v3159
    %vm3260 = vcmp.eq.f32.partialorder %v2958, %v3196
    %vm3261 = vcmp.eq.f32.partialorder %v2960, %v3233
    %vm3262 = vcmp.eq.f32.partialorder %v2769, %v3122
    %vm3263 = vcmp.eq.f32.partialorder %v2771, %v3159
    %vm3264 = vcmp.eq.f32.partialorder %v2962, %v3196
    %vm3265 = vcmp.eq.f32.partialorder %v2964, %v3233
    %vm3266 = vcmp.eq.f32.partialorder %v2775, %v3122
    %vm3267 = vcmp.eq.f32.partialorder %v2777, %v3159
    %vm3268 = vcmp.eq.f32.partialorder %v2968, %v3196
    %vm3269 = vcmp.eq.f32.partialorder %v2970, %v3233
    %vm3270 = vcmp.eq.f32.partialorder %v2779, %v3122
    %vm3271 = vcmp.eq.f32.partialorder %v2781, %v3159
    %vm3272 = vcmp.eq.f32.partialorder %v2972, %v3196
    %vm3273 = vcmp.eq.f32.partialorder %v2974, %v3233
    %vm3274 = vcmp.eq.f32.partialorder %v2785, %v3122
    %vm3275 = vcmp.eq.f32.partialorder %v2787, %v3159
    %vm3276 = vcmp.eq.f32.partialorder %v2978, %v3196
    %vm3277 = vcmp.eq.f32.partialorder %v2980, %v3233
    %vm3278 = vcmp.eq.f32.partialorder %v2789, %v3122
    %vm3279 = vcmp.eq.f32.partialorder %v2791, %v3159
    %vm3280 = vcmp.eq.f32.partialorder %v2982, %v3196
    %vm3281 = vcmp.eq.f32.partialorder %v2984, %v3233
    %vm3282 = vcmp.eq.f32.partialorder %v2795, %v3122
    %vm3283 = vcmp.eq.f32.partialorder %v2797, %v3159
    %vm3284 = vcmp.eq.f32.partialorder %v2988, %v3196
    %vm3285 = vcmp.eq.f32.partialorder %v2990, %v3233
    %vm3286 = vcmp.eq.f32.partialorder %v2799, %v3122
    %vm3287 = vcmp.eq.f32.partialorder %v2801, %v3159
    %vm3288 = vcmp.eq.f32.partialorder %v2992, %v3196
    %vm3289 = vcmp.eq.f32.partialorder %v2994, %v3233
    %vm3290 = vcmp.eq.f32.partialorder %v2805, %v3122
    %vm3291 = vcmp.eq.f32.partialorder %v2807, %v3159
    %vm3292 = vcmp.eq.f32.partialorder %v2998, %v3196
    %vm3293 = vcmp.eq.f32.partialorder %v3000, %v3233
    %vm3294 = vcmp.eq.f32.partialorder %v2809, %v3122
    %vm3295 = vcmp.eq.f32.partialorder %v2811, %v3159
    %vm3296 = vcmp.eq.f32.partialorder %v3002, %v3196
    %vm3297 = vcmp.eq.f32.partialorder %v3004, %v3233
    %vm3298 = vcmp.eq.f32.partialorder %v2815, %v3122
    %vm3299 = vcmp.eq.f32.partialorder %v2817, %v3159
    %vm3300 = vcmp.eq.f32.partialorder %v3008, %v3196
    %vm3301 = vcmp.eq.f32.partialorder %v3010, %v3233
    %vm3302 = vcmp.eq.f32.partialorder %v2819, %v3122
    %vm3303 = vcmp.eq.f32.partialorder %v2821, %v3159
    %vm3304 = vcmp.eq.f32.partialorder %v3012, %v3196
    %vm3305 = vcmp.eq.f32.partialorder %v3014, %v3233
    %vm3306 = vcmp.eq.f32.partialorder %v2825, %v3122
    %vm3307 = vcmp.eq.f32.partialorder %v2827, %v3159
    %vm3308 = vcmp.eq.f32.partialorder %v3018, %v3196
    %vm3309 = vcmp.eq.f32.partialorder %v3020, %v3233
    %vm3310 = vcmp.eq.f32.partialorder %v2829, %v3122
    %vm3311 = vcmp.eq.f32.partialorder %v2831, %v3159
    %vm3312 = vcmp.eq.f32.partialorder %v3022, %v3196
    %vm3313 = vcmp.eq.f32.partialorder %v3024, %v3233
    %vm3314 = vcmp.eq.f32.partialorder %v2835, %v3122
    %vm3315 = vcmp.eq.f32.partialorder %v2837, %v3159
    %vm3316 = vcmp.eq.f32.partialorder %v3028, %v3196
    %vm3317 = vcmp.eq.f32.partialorder %v3030, %v3233
    %vm3318 = vcmp.eq.f32.partialorder %v2839, %v3122
    %vm3319 = vcmp.eq.f32.partialorder %v2841, %v3159
    %vm3320 = vcmp.eq.f32.partialorder %v3032, %v3196
    %vm3321 = vcmp.eq.f32.partialorder %v3034, %v3233
    %vm3322 = vcmp.eq.f32.partialorder %v2845, %v3122
    %vm3323 = vcmp.eq.f32.partialorder %v2847, %v3159
    %vm3324 = vcmp.eq.f32.partialorder %v3038, %v3196
    %vm3325 = vcmp.eq.f32.partialorder %v3040, %v3233
    %vm3326 = vcmp.eq.f32.partialorder %v2849, %v3122
    %vm3327 = vcmp.eq.f32.partialorder %v2851, %v3159
    %vm3328 = vcmp.eq.f32.partialorder %v3042, %v3196
    %vm3329 = vcmp.eq.f32.partialorder %v3044, %v3233
    %vm3330 = vcmp.eq.f32.partialorder %v2855, %v3122
    %vm3331 = vcmp.eq.f32.partialorder %v2857, %v3159
    %vm3332 = vcmp.eq.f32.partialorder %v3048, %v3196
    %vm3333 = vcmp.eq.f32.partialorder %v3050, %v3233
    %vm3334 = vcmp.eq.f32.partialorder %v2859, %v3122
    %vm3335 = vcmp.eq.f32.partialorder %v2861, %v3159
    %vm3336 = vcmp.eq.f32.partialorder %v3052, %v3196
    %vm3337 = vcmp.eq.f32.partialorder %v3054, %v3233
    %vm3338 = vcmp.eq.f32.partialorder %v2865, %v3122
    %vm3339 = vcmp.eq.f32.partialorder %v2867, %v3159
    %vm3340 = vcmp.eq.f32.partialorder %v3058, %v3196
    %vm3341 = vcmp.eq.f32.partialorder %v3060, %v3233
    %vm3342 = vcmp.eq.f32.partialorder %v2869, %v3122
    %vm3343 = vcmp.eq.f32.partialorder %v2871, %v3159
    %vm3344 = vcmp.eq.f32.partialorder %v3062, %v3196
    %vm3345 = vcmp.eq.f32.partialorder %v3064, %v3233
    %vm3346 = vcmp.eq.f32.partialorder %v2875, %v3122
    %vm3347 = vcmp.eq.f32.partialorder %v2877, %v3159
    %vm3348 = vcmp.eq.f32.partialorder %v3068, %v3196
    %vm3349 = vcmp.eq.f32.partialorder %v3070, %v3233
    %vm3350 = vcmp.eq.f32.partialorder %v2879, %v3122
    %vm3351 = vcmp.eq.f32.partialorder %v2881, %v3159
    %vm3352 = vcmp.eq.f32.partialorder %v3072, %v3196
    %vm3353 = vcmp.eq.f32.partialorder %v3074, %v3233
    %vm3354 = vcmp.eq.f32.partialorder %v2885, %v3122
    %vm3355 = vcmp.eq.f32.partialorder %v2887, %v3159
    %vm3356 = vcmp.eq.f32.partialorder %v3078, %v3196
    %vm3357 = vcmp.eq.f32.partialorder %v3080, %v3233
    %vm3358 = vcmp.eq.f32.partialorder %v2889, %v3122
    %vm3359 = vcmp.eq.f32.partialorder %v2891, %v3159
    %vm3360 = vcmp.eq.f32.partialorder %v3082, %v3196
    %vm3361 = vcmp.eq.f32.partialorder %v3084, %v3233
    %v3362 = vsel %vm3234, %v1789, 512
    %v3363 = vsel %vm3235, %v1789, 512
    %v3364 = vsel %vm3236, %v1789, 512
    %v3365 = vsel %vm3237, %v1789, 512
    %v3366 = vsel %vm3238, %v1790, 512
    %v3367 = vsel %vm3239, %v1790, 512
    %v3368 = vsel %vm3240, %v1790, 512
    %v3369 = vsel %vm3241, %v1790, 512
    %v3370 = vsel %vm3242, %v1791, 512
    %v3371 = vsel %vm3243, %v1791, 512
    %v3372 = vsel %vm3244, %v1791, 512
    %v3373 = vsel %vm3245, %v1791, 512
    %v3374 = vsel %vm3246, %v1792, 512
    %v3375 = vsel %vm3247, %v1792, 512
    %v3376 = vsel %vm3248, %v1792, 512
    %v3377 = vsel %vm3249, %v1792, 512
    %v3378 = vsel %vm3250, %v1793, 512
    %v3379 = vsel %vm3251, %v1793, 512
    %v3380 = vsel %vm3252, %v1793, 512
    %v3381 = vsel %vm3253, %v1793, 512
    %v3382 = vsel %vm3254, %v1794, 512
    %v3383 = vsel %vm3255, %v1794, 512
    %v3384 = vsel %vm3256, %v1794, 512
    %v3385 = vsel %vm3257, %v1794, 512
    %v3386 = vsel %vm3258, %v1795, 512
    %v3387 = vsel %vm3259, %v1795, 512
    %v3388 = vsel %vm3260, %v1795, 512
    %v3389 = vsel %vm3261, %v1795, 512
    %v3390 = vsel %vm3262, %v1796, 512
    %v3391 = vsel %vm3263, %v1796, 512
    %v3392 = vsel %vm3264, %v1796, 512
    %v3393 = vsel %vm3265, %v1796, 512
    %v3394 = vsel %vm3266, %v1797, 512
    %v3395 = vsel %vm3267, %v1797, 512
    %v3396 = vsel %vm3268, %v1797, 512
    %v3397 = vsel %vm3269, %v1797, 512
    %v3398 = vsel %vm3270, %v1798, 512
    %v3399 = vsel %vm3271, %v1798, 512
    %v3400 = vsel %vm3272, %v1798, 512
    %v3401 = vsel %vm3273, %v1798, 512
    %v3402 = vsel %vm3274, %v1799, 512
    %v3403 = vsel %vm3275, %v1799, 512
    %v3404 = vsel %vm3276, %v1799, 512
    %v3405 = vsel %vm3277, %v1799, 512
    %v3406 = vsel %vm3278, %v1800, 512
    %v3407 = vsel %vm3279, %v1800, 512
    %v3408 = vsel %vm3280, %v1800, 512
    %v3409 = vsel %vm3281, %v1800, 512
    %v3410 = vsel %vm3282, %v1801, 512
    %v3411 = vsel %vm3283, %v1801, 512
    %v3412 = vsel %vm3284, %v1801, 512
    %v3413 = vsel %vm3285, %v1801, 512
    %v3414 = vsel %vm3286, %v1802, 512
    %v3415 = vsel %vm3287, %v1802, 512
    %v3416 = vsel %vm3288, %v1802, 512
    %v3417 = vsel %vm3289, %v1802, 512
    %v3418 = vsel %vm3290, %v1803, 512
    %v3419 = vsel %vm3291, %v1803, 512
    %v3420 = vsel %vm3292, %v1803, 512
    %v3421 = vsel %vm3293, %v1803, 512
    %v3422 = vsel %vm3294, %v1804, 512
    %v3423 = vsel %vm3295, %v1804, 512
    %v3424 = vsel %vm3296, %v1804, 512
    %v3425 = vsel %vm3297, %v1804, 512
    %v3426 = vsel %vm3298, %v1805, 512
    %v3427 = vsel %vm3299, %v1805, 512
    %v3428 = vsel %vm3300, %v1805, 512
    %v3429 = vsel %vm3301, %v1805, 512
    %v3430 = vsel %vm3302, %v1806, 512
    %v3431 = vsel %vm3303, %v1806, 512
    %v3432 = vsel %vm3304, %v1806, 512
    %v3433 = vsel %vm3305, %v1806, 512
    %v3434 = vsel %vm3306, %v1807, 512
    %v3435 = vsel %vm3307, %v1807, 512
    %v3436 = vsel %vm3308, %v1807, 512
    %v3437 = vsel %vm3309, %v1807, 512
    %v3438 = vsel %vm3310, %v1808, 512
    %v3439 = vsel %vm3311, %v1808, 512
    %v3440 = vsel %vm3312, %v1808, 512
    %v3441 = vsel %vm3313, %v1808, 512
    %v3442 = vsel %vm3314, %v1809, 512
    %v3443 = vsel %vm3315, %v1809, 512
    %v3444 = vsel %vm3316, %v1809, 512
    %v3445 = vsel %vm3317, %v1809, 512
    %v3446 = vsel %vm3318, %v1810, 512
    %v3447 = vsel %vm3319, %v1810, 512
    %v3448 = vsel %vm3320, %v1810, 512
    %v3449 = vsel %vm3321, %v1810, 512
    %v3450 = vsel %vm3322, %v1811, 512
    %v3451 = vsel %vm3323, %v1811, 512
    %v3452 = vsel %vm3324, %v1811, 512
    %v3453 = vsel %vm3325, %v1811, 512
    %v3454 = vsel %vm3326, %v1812, 512
    %v3455 = vsel %vm3327, %v1812, 512
    %v3456 = vsel %vm3328, %v1812, 512
    %v3457 = vsel %vm3329, %v1812, 512
    %v3458 = vsel %vm3330, %v1813, 512
    %v3459 = vsel %vm3331, %v1813, 512
    %v3460 = vsel %vm3332, %v1813, 512
    %v3461 = vsel %vm3333, %v1813, 512
    %v3462 = vsel %vm3334, %v1814, 512
    %v3463 = vsel %vm3335, %v1814, 512
    %v3464 = vsel %vm3336, %v1814, 512
    %v3465 = vsel %vm3337, %v1814, 512
    %v3466 = vsel %vm3338, %v1815, 512
    %v3467 = vsel %vm3339, %v1815, 512
    %v3468 = vsel %vm3340, %v1815, 512
    %v3469 = vsel %vm3341, %v1815, 512
    %v3470 = vsel %vm3342, %v1816, 512
    %v3471 = vsel %vm3343, %v1816, 512
    %v3472 = vsel %vm3344, %v1816, 512
    %v3473 = vsel %vm3345, %v1816, 512
    %v3474 = vsel %vm3346, %v1817, 512
    %v3475 = vsel %vm3347, %v1817, 512
    %v3476 = vsel %vm3348, %v1817, 512
    %v3477 = vsel %vm3349, %v1817, 512
    %v3478 = vsel %vm3350, %v1818, 512
    %v3479 = vsel %vm3351, %v1818, 512
    %v3480 = vsel %vm3352, %v1818, 512
    %v3481 = vsel %vm3353, %v1818, 512
    %v3482 = vsel %vm3354, %v1819, 512
    %v3483 = vsel %vm3355, %v1819, 512
    %v3484 = vsel %vm3356, %v1819, 512
    %v3485 = vsel %vm3357, %v1819, 512
    %v3486 = vsel %vm3358, %v1820, 512
    %v3487 = vsel %vm3359, %v1820, 512
    %v3488 = vsel %vm3360, %v1820, 512
    %v3489 = vsel %vm3361, %v1820, 512
    %vm3490 = vcmp.lt.s32.totalorder %v3362, %v3366
    %v3491 = vsel %vm3490, %v3362, %v3366
    %vm3492 = vcmp.lt.s32.totalorder %v3491, %v3370
    %v3493 = vsel %vm3492, %v3491, %v3370
    %vm3494 = vcmp.lt.s32.totalorder %v3493, %v3374
    %v3495 = vsel %vm3494, %v3493, %v3374
    %vm3496 = vcmp.lt.s32.totalorder %v3495, %v3378
    %v3497 = vsel %vm3496, %v3495, %v3378
    %vm3498 = vcmp.lt.s32.totalorder %v3497, %v3382
    %v3499 = vsel %vm3498, %v3497, %v3382
    %vm3500 = vcmp.lt.s32.totalorder %v3499, %v3386
    %v3501 = vsel %vm3500, %v3499, %v3386
    %vm3502 = vcmp.lt.s32.totalorder %v3501, %v3390
    %v3503 = vsel %vm3502, %v3501, %v3390
    %vm3504 = vcmp.lt.s32.totalorder %v3503, %v3394
    %v3505 = vsel %vm3504, %v3503, %v3394
    %vm3506 = vcmp.lt.s32.totalorder %v3505, %v3398
    %v3507 = vsel %vm3506, %v3505, %v3398
    %vm3508 = vcmp.lt.s32.totalorder %v3507, %v3402
    %v3509 = vsel %vm3508, %v3507, %v3402
    %vm3510 = vcmp.lt.s32.totalorder %v3509, %v3406
    %v3511 = vsel %vm3510, %v3509, %v3406
    %vm3512 = vcmp.lt.s32.totalorder %v3511, %v3410
    %v3513 = vsel %vm3512, %v3511, %v3410
    %vm3514 = vcmp.lt.s32.totalorder %v3513, %v3414
    %v3515 = vsel %vm3514, %v3513, %v3414
    %vm3516 = vcmp.lt.s32.totalorder %v3515, %v3418
    %v3517 = vsel %vm3516, %v3515, %v3418
    %vm3518 = vcmp.lt.s32.totalorder %v3517, %v3422
    %v3519 = vsel %vm3518, %v3517, %v3422
    %vm3520 = vcmp.lt.s32.totalorder %v3519, %v3426
    %v3521 = vsel %vm3520, %v3519, %v3426
    %vm3522 = vcmp.lt.s32.totalorder %v3521, %v3430
    %v3523 = vsel %vm3522, %v3521, %v3430
    %vm3524 = vcmp.lt.s32.totalorder %v3523, %v3434
    %v3525 = vsel %vm3524, %v3523, %v3434
    %vm3526 = vcmp.lt.s32.totalorder %v3525, %v3438
    %v3527 = vsel %vm3526, %v3525, %v3438
    %vm3528 = vcmp.lt.s32.totalorder %v3527, %v3442
    %v3529 = vsel %vm3528, %v3527, %v3442
    %vm3530 = vcmp.lt.s32.totalorder %v3529, %v3446
    %v3531 = vsel %vm3530, %v3529, %v3446
    %vm3532 = vcmp.lt.s32.totalorder %v3531, %v3450
    %v3533 = vsel %vm3532, %v3531, %v3450
    %vm3534 = vcmp.lt.s32.totalorder %v3533, %v3454
    %v3535 = vsel %vm3534, %v3533, %v3454
    %vm3536 = vcmp.lt.s32.totalorder %v3535, %v3458
    %v3537 = vsel %vm3536, %v3535, %v3458
    %vm3538 = vcmp.lt.s32.totalorder %v3537, %v3462
    %v3539 = vsel %vm3538, %v3537, %v3462
    %vm3540 = vcmp.lt.s32.totalorder %v3539, %v3466
    %v3541 = vsel %vm3540, %v3539, %v3466
    %vm3542 = vcmp.lt.s32.totalorder %v3541, %v3470
    %v3543 = vsel %vm3542, %v3541, %v3470
    %vm3544 = vcmp.lt.s32.totalorder %v3543, %v3474
    %v3545 = vsel %vm3544, %v3543, %v3474
    %vm3546 = vcmp.lt.s32.totalorder %v3545, %v3478
    %v3547 = vsel %vm3546, %v3545, %v3478
    %vm3548 = vcmp.lt.s32.totalorder %v3547, %v3482
    %v3549 = vsel %vm3548, %v3547, %v3482
    %vm3550 = vcmp.lt.s32.totalorder %v3549, %v3486
    %v3551 = vsel %vm3550, %v3549, %v3486
    %v3552 = vrot.slane %v3551, 4
    %vm3553 = vcmp.lt.s32.totalorder %v3551, %v3552
    %v3554 = vsel %vm3553, %v3551, %v3552
    %v3555 = vrot.slane %v3554, 2
    %vm3556 = vcmp.lt.s32.totalorder %v3554, %v3555
    %v3557 = vsel %vm3556, %v3554, %v3555
    %v3558 = vrot.slane %v3557, 1
    %vm3559 = vcmp.lt.s32.totalorder %v3557, %v3558
    %v3560 = vsel %vm3559, %v3557, %v3558
    %vm3561 = vcmp.lt.s32.totalorder %v3363, %v3367
    %v3562 = vsel %vm3561, %v3363, %v3367
    %vm3563 = vcmp.lt.s32.totalorder %v3562, %v3371
    %v3564 = vsel %vm3563, %v3562, %v3371
    %vm3565 = vcmp.lt.s32.totalorder %v3564, %v3375
    %v3566 = vsel %vm3565, %v3564, %v3375
    %vm3567 = vcmp.lt.s32.totalorder %v3566, %v3379
    %v3568 = vsel %vm3567, %v3566, %v3379
    %vm3569 = vcmp.lt.s32.totalorder %v3568, %v3383
    %v3570 = vsel %vm3569, %v3568, %v3383
    %vm3571 = vcmp.lt.s32.totalorder %v3570, %v3387
    %v3572 = vsel %vm3571, %v3570, %v3387
    %vm3573 = vcmp.lt.s32.totalorder %v3572, %v3391
    %v3574 = vsel %vm3573, %v3572, %v3391
    %vm3575 = vcmp.lt.s32.totalorder %v3574, %v3395
    %v3576 = vsel %vm3575, %v3574, %v3395
    %vm3577 = vcmp.lt.s32.totalorder %v3576, %v3399
    %v3578 = vsel %vm3577, %v3576, %v3399
    %vm3579 = vcmp.lt.s32.totalorder %v3578, %v3403
    %v3580 = vsel %vm3579, %v3578, %v3403
    %vm3581 = vcmp.lt.s32.totalorder %v3580, %v3407
    %v3582 = vsel %vm3581, %v3580, %v3407
    %vm3583 = vcmp.lt.s32.totalorder %v3582, %v3411
    %v3584 = vsel %vm3583, %v3582, %v3411
    %vm3585 = vcmp.lt.s32.totalorder %v3584, %v3415
    %v3586 = vsel %vm3585, %v3584, %v3415
    %vm3587 = vcmp.lt.s32.totalorder %v3586, %v3419
    %v3588 = vsel %vm3587, %v3586, %v3419
    %vm3589 = vcmp.lt.s32.totalorder %v3588, %v3423
    %v3590 = vsel %vm3589, %v3588, %v3423
    %vm3591 = vcmp.lt.s32.totalorder %v3590, %v3427
    %v3592 = vsel %vm3591, %v3590, %v3427
    %vm3593 = vcmp.lt.s32.totalorder %v3592, %v3431
    %v3594 = vsel %vm3593, %v3592, %v3431
    %vm3595 = vcmp.lt.s32.totalorder %v3594, %v3435
    %v3596 = vsel %vm3595, %v3594, %v3435
    %vm3597 = vcmp.lt.s32.totalorder %v3596, %v3439
    %v3598 = vsel %vm3597, %v3596, %v3439
    %vm3599 = vcmp.lt.s32.totalorder %v3598, %v3443
    %v3600 = vsel %vm3599, %v3598, %v3443
    %vm3601 = vcmp.lt.s32.totalorder %v3600, %v3447
    %v3602 = vsel %vm3601, %v3600, %v3447
    %vm3603 = vcmp.lt.s32.totalorder %v3602, %v3451
    %v3604 = vsel %vm3603, %v3602, %v3451
    %vm3605 = vcmp.lt.s32.totalorder %v3604, %v3455
    %v3606 = vsel %vm3605, %v3604, %v3455
    %vm3607 = vcmp.lt.s32.totalorder %v3606, %v3459
    %v3608 = vsel %vm3607, %v3606, %v3459
    %vm3609 = vcmp.lt.s32.totalorder %v3608, %v3463
    %v3610 = vsel %vm3609, %v3608, %v3463
    %vm3611 = vcmp.lt.s32.totalorder %v3610, %v3467
    %v3612 = vsel %vm3611, %v3610, %v3467
    %vm3613 = vcmp.lt.s32.totalorder %v3612, %v3471
    %v3614 = vsel %vm3613, %v3612, %v3471
    %vm3615 = vcmp.lt.s32.totalorder %v3614, %v3475
    %v3616 = vsel %vm3615, %v3614, %v3475
    %vm3617 = vcmp.lt.s32.totalorder %v3616, %v3479
    %v3618 = vsel %vm3617, %v3616, %v3479
    %vm3619 = vcmp.lt.s32.totalorder %v3618, %v3483
    %v3620 = vsel %vm3619, %v3618, %v3483
    %vm3621 = vcmp.lt.s32.totalorder %v3620, %v3487
    %v3622 = vsel %vm3621, %v3620, %v3487
    %v3623 = vrot.slane %v3622, 4
    %vm3624 = vcmp.lt.s32.totalorder %v3622, %v3623
    %v3625 = vsel %vm3624, %v3622, %v3623
    %v3626 = vrot.slane %v3625, 2
    %vm3627 = vcmp.lt.s32.totalorder %v3625, %v3626
    %v3628 = vsel %vm3627, %v3625, %v3626
    %v3629 = vrot.slane %v3628, 1
    %vm3630 = vcmp.lt.s32.totalorder %v3628, %v3629
    %v3631 = vsel %vm3630, %v3628, %v3629
    %vm3632 = vcmp.lt.s32.totalorder %v3364, %v3368
    %v3633 = vsel %vm3632, %v3364, %v3368
    %vm3634 = vcmp.lt.s32.totalorder %v3633, %v3372
    %v3635 = vsel %vm3634, %v3633, %v3372
    %vm3636 = vcmp.lt.s32.totalorder %v3635, %v3376
    %v3637 = vsel %vm3636, %v3635, %v3376
    %vm3638 = vcmp.lt.s32.totalorder %v3637, %v3380
    %v3639 = vsel %vm3638, %v3637, %v3380
    %vm3640 = vcmp.lt.s32.totalorder %v3639, %v3384
    %v3641 = vsel %vm3640, %v3639, %v3384
    %vm3642 = vcmp.lt.s32.totalorder %v3641, %v3388
    %v3643 = vsel %vm3642, %v3641, %v3388
    %vm3644 = vcmp.lt.s32.totalorder %v3643, %v3392
    %v3645 = vsel %vm3644, %v3643, %v3392
    %vm3646 = vcmp.lt.s32.totalorder %v3645, %v3396
    %v3647 = vsel %vm3646, %v3645, %v3396
    %vm3648 = vcmp.lt.s32.totalorder %v3647, %v3400
    %v3649 = vsel %vm3648, %v3647, %v3400
    %vm3650 = vcmp.lt.s32.totalorder %v3649, %v3404
    %v3651 = vsel %vm3650, %v3649, %v3404
    %vm3652 = vcmp.lt.s32.totalorder %v3651, %v3408
    %v3653 = vsel %vm3652, %v3651, %v3408
    %vm3654 = vcmp.lt.s32.totalorder %v3653, %v3412
    %v3655 = vsel %vm3654, %v3653, %v3412
    %vm3656 = vcmp.lt.s32.totalorder %v3655, %v3416
    %v3657 = vsel %vm3656, %v3655, %v3416
    %vm3658 = vcmp.lt.s32.totalorder %v3657, %v3420
    %v3659 = vsel %vm3658, %v3657, %v3420
    %vm3660 = vcmp.lt.s32.totalorder %v3659, %v3424
    %v3661 = vsel %vm3660, %v3659, %v3424
    %vm3662 = vcmp.lt.s32.totalorder %v3661, %v3428
    %v3663 = vsel %vm3662, %v3661, %v3428
    %vm3664 = vcmp.lt.s32.totalorder %v3663, %v3432
    %v3665 = vsel %vm3664, %v3663, %v3432
    %vm3666 = vcmp.lt.s32.totalorder %v3665, %v3436
    %v3667 = vsel %vm3666, %v3665, %v3436
    %vm3668 = vcmp.lt.s32.totalorder %v3667, %v3440
    %v3669 = vsel %vm3668, %v3667, %v3440
    %vm3670 = vcmp.lt.s32.totalorder %v3669, %v3444
    %v3671 = vsel %vm3670, %v3669, %v3444
    %vm3672 = vcmp.lt.s32.totalorder %v3671, %v3448
    %v3673 = vsel %vm3672, %v3671, %v3448
    %vm3674 = vcmp.lt.s32.totalorder %v3673, %v3452
    %v3675 = vsel %vm3674, %v3673, %v3452
    %vm3676 = vcmp.lt.s32.totalorder %v3675, %v3456
    %v3677 = vsel %vm3676, %v3675, %v3456
    %vm3678 = vcmp.lt.s32.totalorder %v3677, %v3460
    %v3679 = vsel %vm3678, %v3677, %v3460
    %vm3680 = vcmp.lt.s32.totalorder %v3679, %v3464
    %v3681 = vsel %vm3680, %v3679, %v3464
    %vm3682 = vcmp.lt.s32.totalorder %v3681, %v3468
    %v3683 = vsel %vm3682, %v3681, %v3468
    %vm3684 = vcmp.lt.s32.totalorder %v3683, %v3472
    %v3685 = vsel %vm3684, %v3683, %v3472
    %vm3686 = vcmp.lt.s32.totalorder %v3685, %v3476
    %v3687 = vsel %vm3686, %v3685, %v3476
    %vm3688 = vcmp.lt.s32.totalorder %v3687, %v3480
    %v3689 = vsel %vm3688, %v3687, %v3480
    %vm3690 = vcmp.lt.s32.totalorder %v3689, %v3484
    %v3691 = vsel %vm3690, %v3689, %v3484
    %vm3692 = vcmp.lt.s32.totalorder %v3691, %v3488
    %v3693 = vsel %vm3692, %v3691, %v3488
    %v3694 = vrot.slane %v3693, 4
    %vm3695 = vcmp.lt.s32.totalorder %v3693, %v3694
    %v3696 = vsel %vm3695, %v3693, %v3694
    %v3697 = vrot.slane %v3696, 2
    %vm3698 = vcmp.lt.s32.totalorder %v3696, %v3697
    %v3699 = vsel %vm3698, %v3696, %v3697
    %v3700 = vrot.slane %v3699, 1
    %vm3701 = vcmp.lt.s32.totalorder %v3699, %v3700
    %v3702 = vsel %vm3701, %v3699, %v3700
    %vm3703 = vcmp.lt.s32.totalorder %v3365, %v3369
    %v3704 = vsel %vm3703, %v3365, %v3369
    %vm3705 = vcmp.lt.s32.totalorder %v3704, %v3373
    %v3706 = vsel %vm3705, %v3704, %v3373
    %vm3707 = vcmp.lt.s32.totalorder %v3706, %v3377
    %v3708 = vsel %vm3707, %v3706, %v3377
    %vm3709 = vcmp.lt.s32.totalorder %v3708, %v3381
    %v3710 = vsel %vm3709, %v3708, %v3381
    %vm3711 = vcmp.lt.s32.totalorder %v3710, %v3385
    %v3712 = vsel %vm3711, %v3710, %v3385
    %vm3713 = vcmp.lt.s32.totalorder %v3712, %v3389
    %v3714 = vsel %vm3713, %v3712, %v3389
    %vm3715 = vcmp.lt.s32.totalorder %v3714, %v3393
    %v3716 = vsel %vm3715, %v3714, %v3393
    %vm3717 = vcmp.lt.s32.totalorder %v3716, %v3397
    %v3718 = vsel %vm3717, %v3716, %v3397
    %vm3719 = vcmp.lt.s32.totalorder %v3718, %v3401
    %v3720 = vsel %vm3719, %v3718, %v3401
    %vm3721 = vcmp.lt.s32.totalorder %v3720, %v3405
    %v3722 = vsel %vm3721, %v3720, %v3405
    %vm3723 = vcmp.lt.s32.totalorder %v3722, %v3409
    %v3724 = vsel %vm3723, %v3722, %v3409
    %vm3725 = vcmp.lt.s32.totalorder %v3724, %v3413
    %v3726 = vsel %vm3725, %v3724, %v3413
    %vm3727 = vcmp.lt.s32.totalorder %v3726, %v3417
    %v3728 = vsel %vm3727, %v3726, %v3417
    %vm3729 = vcmp.lt.s32.totalorder %v3728, %v3421
    %v3730 = vsel %vm3729, %v3728, %v3421
    %vm3731 = vcmp.lt.s32.totalorder %v3730, %v3425
    %v3732 = vsel %vm3731, %v3730, %v3425
    %vm3733 = vcmp.lt.s32.totalorder %v3732, %v3429
    %v3734 = vsel %vm3733, %v3732, %v3429
    %vm3735 = vcmp.lt.s32.totalorder %v3734, %v3433
    %v3736 = vsel %vm3735, %v3734, %v3433
    %vm3737 = vcmp.lt.s32.totalorder %v3736, %v3437
    %v3738 = vsel %vm3737, %v3736, %v3437
    %vm3739 = vcmp.lt.s32.totalorder %v3738, %v3441
    %v3740 = vsel %vm3739, %v3738, %v3441
    %vm3741 = vcmp.lt.s32.totalorder %v3740, %v3445
    %v3742 = vsel %vm3741, %v3740, %v3445
    %vm3743 = vcmp.lt.s32.totalorder %v3742, %v3449
    %v3744 = vsel %vm3743, %v3742, %v3449
    %vm3745 = vcmp.lt.s32.totalorder %v3744, %v3453
    %v3746 = vsel %vm3745, %v3744, %v3453
    %vm3747 = vcmp.lt.s32.totalorder %v3746, %v3457
    %v3748 = vsel %vm3747, %v3746, %v3457
    %vm3749 = vcmp.lt.s32.totalorder %v3748, %v3461
    %v3750 = vsel %vm3749, %v3748, %v3461
    %vm3751 = vcmp.lt.s32.totalorder %v3750, %v3465
    %v3752 = vsel %vm3751, %v3750, %v3465
    %vm3753 = vcmp.lt.s32.totalorder %v3752, %v3469
    %v3754 = vsel %vm3753, %v3752, %v3469
    %vm3755 = vcmp.lt.s32.totalorder %v3754, %v3473
    %v3756 = vsel %vm3755, %v3754, %v3473
    %vm3757 = vcmp.lt.s32.totalorder %v3756, %v3477
    %v3758 = vsel %vm3757, %v3756, %v3477
    %vm3759 = vcmp.lt.s32.totalorder %v3758, %v3481
    %v3760 = vsel %vm3759, %v3758, %v3481
    %vm3761 = vcmp.lt.s32.totalorder %v3760, %v3485
    %v3762 = vsel %vm3761, %v3760, %v3485
    %vm3763 = vcmp.lt.s32.totalorder %v3762, %v3489
    %v3764 = vsel %vm3763, %v3762, %v3489
    %v3765 = vrot.slane %v3764, 4
    %vm3766 = vcmp.lt.s32.totalorder %v3764, %v3765
    %v3767 = vsel %vm3766, %v3764, %v3765
    %v3768 = vrot.slane %v3767, 2
    %vm3769 = vcmp.lt.s32.totalorder %v3767, %v3768
    %v3770 = vsel %vm3769, %v3767, %v3768
    %v3771 = vrot.slane %v3770, 1
    %vm3772 = vcmp.lt.s32.totalorder %v3770, %v3771
    %v3773 = vsel %vm3772, %v3770, %v3771
    %v3774 = vstv 256
    %v3775 = vadd.s32 %v3560, %v3774
    %v3776 = vadd.s32 %v3631, %v3774
    %v3777 = vadd.s32 %v3702, %v3774
    %v3778 = vadd.s32 %v3773, %v3774
    %vm3779 = vcmp.gt.f32.partialorder %v3122, %v2370
    %vm3780 = vcmp.gt.f32.partialorder %v3159, %v2371
    %vm3781 = vcmp.gt.f32.partialorder %v3196, %v2372
    %vm3782 = vcmp.gt.f32.partialorder %v3233, %v2373
    %v3783 = vsel %vm3779, %v3775, %v2374
    %v3784 = vsel %vm3780, %v3776, %v2375
    %v3785 = vsel %vm3781, %v3777, %v2376
    %v3786 = vsel %vm3782, %v3778, %v2377
    %v3787 = vcombine.low %v3783, %v3784
    %v3788 = vcombine.low %v3785, %v3786
    %v3790 = vunpack.c.l.s4 1966171168
    %v3791 = vunpack.c.0.s8 %v3790
    %v3792 = vlaneseq
    %v3793 = vshrl.u32 %v3792, 7
    %v3794 = vsub.s32 %v3791, %v3793
    %v3795 = vrot.slane %v3787, %v3794
    %v3797 = vunpack.c.l.s4 1966171168
    %v3798 = vunpack.c.0.s8 %v3797
    %v3799 = vlaneseq
    %v3800 = vshrl.u32 %v3799, 7
    %v3801 = vsub.s32 %v3798, %v3800
    %v3802 = vrot.slane %v3788, %v3801
    %v3803 = vcombine.low %v3795, %v3802
    %v3805 = vunpack.c.l.s4 1966171168
    %v3806 = vunpack.c.0.s8 %v3805
    %v3807 = vlaneseq
    %v3808 = vshrl.u32 %v3807, 7
    %v3809 = vsub.s32 %v3806, %v3808
    %v3810 = vrot.slane %v3803, %v3809
    %v3811 = vlaneseq
    %vm3812 = vcmp.ge.s32.totalorder %v3811, 0
    %vm3813 = vcmp.lt.s32.totalorder %v3811, 512
    %vm3814 = vmand %vm3812, %vm3813
    %3815 = vst.msk [vmem:[#allocation2] sm:$0xf] %vm3814, %v3810
    // Predicated region
    $region26: #{tpu_custom_call.1} parent=1 // pred_check
      _
    $region27: #{tpu_custom_call.1} parent=1 // pred_check_branch
      %3817 = sbr.rel (0) target = $region29
    $region28: #{tpu_custom_call.1} parent=1 // pred_region
      %s3819 = ssub.s32 64, 64
      %3820 = vsyncadd [#allocation3], %s3819
      %s3822 = sshll.u32 [#allocation2], 4
      %s3823 = int_to_ptr.vmem [resolvable:$true] %s3822
      %3825 = dma.vmem_to_hbm [thread:$0]  %s3823, 64, %s6, [#allocation3]
    $region29: #{tpu_custom_call.1} parent=1 // pred_fallthru
      _
    // Predicated region
    $region30: #{tpu_custom_call.1} parent=1 // pred_check
      _
    $region31: #{tpu_custom_call.1} parent=1 // pred_check_branch
      %3827 = sbr.rel (0) target = $region33
    $region32: #{tpu_custom_call.1} parent=1 // pred_region
      %3828 = dma.done [#allocation3], 64
    $region33: #{tpu_custom_call.1} parent=1 // pred_fallthru
      _
    %3829 = vsyncpa [#allocation3], 1

</llo_original>
